<compile_context>
chip_gen: v6e
topology: v6e:2x2x1
jax: 0.10.0
libtpu: 0.0.40
codegen_flags: <defaults>
</compile_context>

<pallas_src>
import jax
import jax.numpy as jnp
from jax import lax
from jax.experimental import pallas as pl
from jax.experimental.pallas import tpu as pltpu

EPS = 1e-5
_MXU_MIN_C = 64  # below this, conv runs on the VPU (broadcast-FMA); at/above, on the MXU


def _round_up(v, m):
    return ((v + m - 1) // m) * m


def _vmem_limit_bytes():
    """Generation-aware VMEM limit: leave ~16 MiB headroom below physical capacity."""
    default_cap = 64 * 1024 * 1024
    try:
        cap = int(getattr(pltpu.get_tpu_info(), "vmem_capacity_bytes", default_cap))
    except Exception:  # pragma: no cover - conservative fallback
        cap = default_cap
    return max(32 * 1024 * 1024, cap - 16 * 1024 * 1024)


def _make_residual_block_kernel(N, C, H, W, CP, LP, use_mxu, use_bf16):
    Hp, Wp = H + 2, W + 2
    L = N * Hp * Wp
    inv_cnt = 1.0 / float(N * H * W)      # BN count = number of valid pixels
    # flat lane offsets of the 9 conv taps relative to the centre pixel, t = ky*3 + kx
    tap_offsets = [(ky - 1) * Wp + (kx - 1) for ky in range(3) for kx in range(3)]

    def shift_tap(v, d):
        # rolled[l] = v[l + d] (jnp.roll semantics with shift = -d).  Wrap-around lanes only
        # affect padded-border / tail output pixels, which are masked out of BN stats and
        # discarded by the wrapper slice.
        if d == 0:
            return v
        return pltpu.roll(v, shift=(-d) % LP, axis=1)

    if use_mxu:
        def conv3x3(v, w_ref):
            # w_ref: (9, CP, CP).  9 accumulating matmuls -> no 9x im2col slab in VMEM.
            vv = v.astype(jnp.bfloat16) if use_bf16 else v
            acc = jnp.zeros((CP, LP), jnp.float32)
            for t, d in enumerate(tap_offsets):
                acc = acc + jnp.dot(w_ref[t], shift_tap(vv, d),
                                    preferred_element_type=jnp.float32)
            return acc
    else:
        def conv3x3(v, w_ref):
            # Small-C path: per-tap, per-input-channel broadcast FMA on the VPU.
            # w_ref: (CP, 9*CP), column (t*CP + ci) = w[:, ci, ky, kx].
            wmat = w_ref[...]
            acc = jnp.zeros((CP, LP), jnp.float32)
            for t, d in enumerate(tap_offsets):
                vr = shift_tap(v, d)
                for ci in range(C):                                 # padded channels are zero
                    col = wmat[:, t * CP + ci: t * CP + ci + 1]     # (CP, 1)
                    acc = acc + col * vr[ci:ci + 1, :]              # (CP,1)*(1,LP) -> (CP,LP)
            return acc

    def batchnorm(acc, gamma, beta, mask):
        # Single-pass masked batch statistics (training mode, biased variance), with the two
        # reductions fused into one XLU pass by stacking along the sublane axis.
        am = acc * mask                                             # (CP, LP)
        stacked = jnp.concatenate([am, am * acc], axis=0)           # (2*CP, LP)
        sums = jnp.sum(stacked, axis=1, keepdims=True)              # (2*CP, 1)
        mean = sums[:CP] * inv_cnt
        var = jnp.maximum(sums[CP:] * inv_cnt - mean * mean, 0.0)   # guard cancellation
        scale = gamma * lax.rsqrt(var + EPS)                        # EUP rsqrt
        bias = beta - mean * scale
        return acc * scale + bias                                   # one FMA per element

    def kernel(x_ref, mask_ref, w1_ref, w2_ref, g1_ref, b1_ref, g2_ref, b2_ref, out_ref):
        # x_ref   : (CP, LP) f32, channels on sublanes, flat padded (n, y, x) on lanes,
        #           zeros at the padded border, padded channels and the lane tail [L, LP).
        # mask_ref: (1, LP) f32, 1.0 at interior (valid) pixels, 0.0 elsewhere.
        # w*_ref  : (CP, 9*CP) [VPU path] or (9, CP, CP) [MXU path] conv weights.
        # g*,b*   : (CP, 1) batchnorm affine params (zeros for padded channels).
        # out_ref : (CP, LP) f32.
        mask = mask_ref[...]                                        # (1, LP)
        x = x_ref[...]                                              # (CP, LP)

        # ---- conv1 + bn1 + relu --------------------------------------------------
        acc1 = conv3x3(x, w1_ref)
        h = jnp.maximum(batchnorm(acc1, g1_ref[...], b1_ref[...], mask), 0.0)
        # zero the padded-grid border / tail lanes => exact zero-padding for conv2
        h = h * mask

        # ---- conv2 + bn2 ---------------------------------------------------------
        acc2 = conv3x3(h, w2_ref)
        h2 = batchnorm(acc2, g2_ref[...], b2_ref[...], mask)

        # ---- residual add + relu (x is lane-aligned; border/tail lanes discarded) -
        out_ref[...] = jnp.maximum(h2 + x, 0.0).astype(out_ref.dtype)

    return kernel


def residual_block_forward(x_nchw, w1, w2, g1, b1, g2, b2):
    """x_nchw: (N, C, H, W); w1, w2: (C, C, 3, 3) (PyTorch OIHW, no bias); g*, b*: (C,)."""
    N, C, H, W = x_nchw.shape
    Hp, Wp = H + 2, W + 2
    L = N * Hp * Wp
    LP = _round_up(L, 128)           # lane axis padded to a multiple of 128 (lane-dense stores)
    CP = _round_up(C, 8)             # channels padded to a full sublane tile
    use_mxu = C >= _MXU_MIN_C
    use_bf16 = use_mxu               # bf16 conv operands only on the production MXU path

    # channels-first, flattened zero-padded spatial, lane tail zero-padded to LP (no halo pad)
    xpad = jnp.pad(x_nchw.astype(jnp.float32), ((0, 0), (0, 0), (1, 1), (1, 1)))
    xflat = jnp.transpose(xpad, (1, 0, 2, 3)).reshape(C, L)
    x_in = jnp.pad(xflat, ((0, CP - C), (0, LP - L)))               # (CP, LP)

    # interior-pixel mask (shape-only constant, 3 KB)
    # TODO(synk): generate in-kernel from broadcasted_iota + static div/mod to drop this input.
    mask = jnp.zeros((N, Hp, Wp), jnp.float32).at[:, 1:-1, 1:-1].set(1.0).reshape(1, L)
    mask = jnp.pad(mask, ((0, 0), (0, LP - L)))                     # (1, LP)

    if use_mxu:
        def prep_w(w):
            # OIHW -> (9, CP, CP), tap t = ky*3 + kx
            wt = jnp.transpose(w, (2, 3, 0, 1)).reshape(9, C, C)
            wt = jnp.pad(wt, ((0, 0), (0, CP - C), (0, CP - C)))
            return wt.astype(jnp.bfloat16 if use_bf16 else jnp.float32)
    else:
        def prep_w(w):
            # OIHW -> (CP, 9*CP), column index = (ky*3 + kx)*CP + ci
            wt = jnp.transpose(w, (0, 2, 3, 1))                     # (O, 3, 3, I)
            wt = jnp.pad(wt, ((0, CP - C), (0, 0), (0, 0), (0, CP - C)))
            return wt.reshape(CP, 9 * CP).astype(jnp.float32)

    def prep_p(p):
        return jnp.pad(p.astype(jnp.float32), (0, CP - C)).reshape(CP, 1)

    kernel = _make_residual_block_kernel(N, C, H, W, CP, LP, use_mxu, use_bf16)

    out_flat = pl.pallas_call(
        kernel,
        out_shape=jax.ShapeDtypeStruct((CP, LP), jnp.float32),
        in_specs=[pl.BlockSpec(memory_space=pltpu.MemorySpace.VMEM)] * 8,
        out_specs=pl.BlockSpec(memory_space=pltpu.MemorySpace.VMEM),
        compiler_params=pltpu.CompilerParams(vmem_limit_bytes=_vmem_limit_bytes()),
    )(x_in, mask, prep_w(w1), prep_w(w2), prep_p(g1), prep_p(b1), prep_p(g2), prep_p(b2))

    out = out_flat[:C, :L].reshape(C, N, Hp, Wp)[:, :, 1:-1, 1:-1]
    return jnp.transpose(out, (1, 0, 2, 3)).astype(x_nchw.dtype)


def residual_block_reference(x, w1, w2, g1, b1, g2, b2):
    """Pure-JAX reference (NCHW), mirrors the PyTorch module in train mode."""
    def conv(v, w):
        return lax.conv_general_dilated(
            v, w, window_strides=(1, 1), padding=((1, 1), (1, 1)),
            dimension_numbers=('NCHW', 'OIHW', 'NCHW'))

    def bn(v, g, b):
        mean = jnp.mean(v, axis=(0, 2, 3), keepdims=True)
        var = jnp.mean((v - mean) ** 2, axis=(0, 2, 3), keepdims=True)
        return (v - mean) * lax.rsqrt(var + EPS) * g.reshape(1, -1, 1, 1) \
            + b.reshape(1, -1, 1, 1)

    h = jax.nn.relu(bn(conv(x, w1), g1, b1))
    h = bn(conv(h, w2), g2, b2)
    return jax.nn.relu(h + x)


if __name__ == "__main__":
    N, C, H, W = 2, 4, 16, 16
    key = jax.random.PRNGKey(0)
    kx, k1, k2, kg1, kb1, kg2, kb2 = jax.random.split(key, 7)

    x = jax.random.normal(kx, (N, C, H, W), dtype=jnp.float32)
    # conv weights, PyTorch OIHW layout, no bias (deterministic synthetic init)
    w1 = jax.random.normal(k1, (C, C, 3, 3), dtype=jnp.float32) * 0.1
    w2 = jax.random.normal(k2, (C, C, 3, 3), dtype=jnp.float32) * 0.1
    # batchnorm affine params
    g1 = 1.0 + 0.1 * jax.random.normal(kg1, (C,), dtype=jnp.float32)
    b1 = 0.1 * jax.random.normal(kb1, (C,), dtype=jnp.float32)
    g2 = 1.0 + 0.1 * jax.random.normal(kg2, (C,), dtype=jnp.float32)
    b2 = 0.1 * jax.random.normal(kb2, (C,), dtype=jnp.float32)

    out = residual_block_forward(x, w1, w2, g1, b1, g2, b2)
    out = jax.block_until_ready(out)

    ref = residual_block_reference(x, w1, w2, g1, b1, g2, b2)
    assert out.shape == (N, C, H, W)
    assert jnp.allclose(out, ref, atol=1e-4, rtol=1e-4), \
        f"max abs diff {jnp.max(jnp.abs(out - ref))}"

    print("KERNEL_OK")
</pallas_src>

<mosaic_0001>
module attributes {stable_mosaic.version = 11 : i64} {
  func.func @kernel(%arg0: memref<8x768xf32, #tpu.memory_space<vmem>>, %arg1: memref<1x768xf32, #tpu.memory_space<vmem>>, %arg2: memref<8x72xf32, #tpu.memory_space<vmem>>, %arg3: memref<8x72xf32, #tpu.memory_space<vmem>>, %arg4: memref<8x1xf32, #tpu.memory_space<vmem>>, %arg5: memref<8x1xf32, #tpu.memory_space<vmem>>, %arg6: memref<8x1xf32, #tpu.memory_space<vmem>>, %arg7: memref<8x1xf32, #tpu.memory_space<vmem>>, %arg8: memref<8x768xf32, #tpu.memory_space<vmem>>) attributes {dimension_semantics = [], scalar_prefetch = 0 : i64, scratch_operands = 0 : i64, tpu.core_type = #tpu.core_type<tc>} {
    %c0 = arith.constant 0 : index
    %c0_0 = arith.constant 0 : index
    %0 = vector.load %arg1[%c0, %c0_0] : memref<1x768xf32, #tpu.memory_space<vmem>>, vector<1x768xf32>
    %c0_1 = arith.constant 0 : index
    %c0_2 = arith.constant 0 : index
    %1 = vector.load %arg0[%c0_1, %c0_2] : memref<8x768xf32, #tpu.memory_space<vmem>>, vector<8x768xf32>
    %c0_3 = arith.constant 0 : index
    %c0_4 = arith.constant 0 : index
    %2 = vector.load %arg2[%c0_3, %c0_4] : memref<8x72xf32, #tpu.memory_space<vmem>>, vector<8x72xf32>
    %cst = arith.constant 0.000000e+00 : f32
    %3 = vector.broadcast %cst : f32 to vector<8x768xf32>
    %c19_i32 = arith.constant 19 : i32
    %4 = tpu.dynamic_rotate %1 by %c19_i32 dim 1 : vector<8x768xf32>, i32 -> vector<8x768xf32>
    %5 = vector.extract_strided_slice %2 {offsets = [0, 0], sizes = [8, 1], strides = [1, 1]} : vector<8x72xf32> to vector<8x1xf32>
    %6 = vector.extract_strided_slice %4 {offsets = [0, 0], sizes = [1, 768], strides = [1, 1]} : vector<8x768xf32> to vector<1x768xf32>
    %7 = vector.broadcast %5 : vector<8x1xf32> to vector<8x768xf32>
    %8 = vector.broadcast %6 : vector<1x768xf32> to vector<8x768xf32>
    %9 = arith.mulf %7, %8 : vector<8x768xf32>
    %10 = arith.addf %3, %9 : vector<8x768xf32>
    %11 = vector.extract_strided_slice %2 {offsets = [0, 1], sizes = [8, 1], strides = [1, 1]} : vector<8x72xf32> to vector<8x1xf32>
    %12 = vector.extract_strided_slice %4 {offsets = [1, 0], sizes = [1, 768], strides = [1, 1]} : vector<8x768xf32> to vector<1x768xf32>
    %13 = vector.broadcast %11 : vector<8x1xf32> to vector<8x768xf32>
    %14 = vector.broadcast %12 : vector<1x768xf32> to vector<8x768xf32>
    %15 = arith.mulf %13, %14 : vector<8x768xf32>
    %16 = arith.addf %10, %15 : vector<8x768xf32>
    %17 = vector.extract_strided_slice %2 {offsets = [0, 2], sizes = [8, 1], strides = [1, 1]} : vector<8x72xf32> to vector<8x1xf32>
    %18 = vector.extract_strided_slice %4 {offsets = [2, 0], sizes = [1, 768], strides = [1, 1]} : vector<8x768xf32> to vector<1x768xf32>
    %19 = vector.broadcast %17 : vector<8x1xf32> to vector<8x768xf32>
    %20 = vector.broadcast %18 : vector<1x768xf32> to vector<8x768xf32>
    %21 = arith.mulf %19, %20 : vector<8x768xf32>
    %22 = arith.addf %16, %21 : vector<8x768xf32>
    %23 = vector.extract_strided_slice %2 {offsets = [0, 3], sizes = [8, 1], strides = [1, 1]} : vector<8x72xf32> to vector<8x1xf32>
    %24 = vector.extract_strided_slice %4 {offsets = [3, 0], sizes = [1, 768], strides = [1, 1]} : vector<8x768xf32> to vector<1x768xf32>
    %25 = vector.broadcast %23 : vector<8x1xf32> to vector<8x768xf32>
    %26 = vector.broadcast %24 : vector<1x768xf32> to vector<8x768xf32>
    %27 = arith.mulf %25, %26 : vector<8x768xf32>
    %28 = arith.addf %22, %27 : vector<8x768xf32>
    %c18_i32 = arith.constant 18 : i32
    %29 = tpu.dynamic_rotate %1 by %c18_i32 dim 1 : vector<8x768xf32>, i32 -> vector<8x768xf32>
    %30 = vector.extract_strided_slice %2 {offsets = [0, 8], sizes = [8, 1], strides = [1, 1]} : vector<8x72xf32> to vector<8x1xf32>
    %31 = vector.extract_strided_slice %29 {offsets = [0, 0], sizes = [1, 768], strides = [1, 1]} : vector<8x768xf32> to vector<1x768xf32>
    %32 = vector.broadcast %30 : vector<8x1xf32> to vector<8x768xf32>
    %33 = vector.broadcast %31 : vector<1x768xf32> to vector<8x768xf32>
    %34 = arith.mulf %32, %33 : vector<8x768xf32>
    %35 = arith.addf %28, %34 : vector<8x768xf32>
    %36 = vector.extract_strided_slice %2 {offsets = [0, 9], sizes = [8, 1], strides = [1, 1]} : vector<8x72xf32> to vector<8x1xf32>
    %37 = vector.extract_strided_slice %29 {offsets = [1, 0], sizes = [1, 768], strides = [1, 1]} : vector<8x768xf32> to vector<1x768xf32>
    %38 = vector.broadcast %36 : vector<8x1xf32> to vector<8x768xf32>
    %39 = vector.broadcast %37 : vector<1x768xf32> to vector<8x768xf32>
    %40 = arith.mulf %38, %39 : vector<8x768xf32>
    %41 = arith.addf %35, %40 : vector<8x768xf32>
    %42 = vector.extract_strided_slice %2 {offsets = [0, 10], sizes = [8, 1], strides = [1, 1]} : vector<8x72xf32> to vector<8x1xf32>
    %43 = vector.extract_strided_slice %29 {offsets = [2, 0], sizes = [1, 768], strides = [1, 1]} : vector<8x768xf32> to vector<1x768xf32>
    %44 = vector.broadcast %42 : vector<8x1xf32> to vector<8x768xf32>
    %45 = vector.broadcast %43 : vector<1x768xf32> to vector<8x768xf32>
    %46 = arith.mulf %44, %45 : vector<8x768xf32>
    %47 = arith.addf %41, %46 : vector<8x768xf32>
    %48 = vector.extract_strided_slice %2 {offsets = [0, 11], sizes = [8, 1], strides = [1, 1]} : vector<8x72xf32> to vector<8x1xf32>
    %49 = vector.extract_strided_slice %29 {offsets = [3, 0], sizes = [1, 768], strides = [1, 1]} : vector<8x768xf32> to vector<1x768xf32>
    %50 = vector.broadcast %48 : vector<8x1xf32> to vector<8x768xf32>
    %51 = vector.broadcast %49 : vector<1x768xf32> to vector<8x768xf32>
    %52 = arith.mulf %50, %51 : vector<8x768xf32>
    %53 = arith.addf %47, %52 : vector<8x768xf32>
    %c17_i32 = arith.constant 17 : i32
    %54 = tpu.dynamic_rotate %1 by %c17_i32 dim 1 : vector<8x768xf32>, i32 -> vector<8x768xf32>
    %55 = vector.extract_strided_slice %2 {offsets = [0, 16], sizes = [8, 1], strides = [1, 1]} : vector<8x72xf32> to vector<8x1xf32>
    %56 = vector.extract_strided_slice %54 {offsets = [0, 0], sizes = [1, 768], strides = [1, 1]} : vector<8x768xf32> to vector<1x768xf32>
    %57 = vector.broadcast %55 : vector<8x1xf32> to vector<8x768xf32>
    %58 = vector.broadcast %56 : vector<1x768xf32> to vector<8x768xf32>
    %59 = arith.mulf %57, %58 : vector<8x768xf32>
    %60 = arith.addf %53, %59 : vector<8x768xf32>
    %61 = vector.extract_strided_slice %2 {offsets = [0, 17], sizes = [8, 1], strides = [1, 1]} : vector<8x72xf32> to vector<8x1xf32>
    %62 = vector.extract_strided_slice %54 {offsets = [1, 0], sizes = [1, 768], strides = [1, 1]} : vector<8x768xf32> to vector<1x768xf32>
    %63 = vector.broadcast %61 : vector<8x1xf32> to vector<8x768xf32>
    %64 = vector.broadcast %62 : vector<1x768xf32> to vector<8x768xf32>
    %65 = arith.mulf %63, %64 : vector<8x768xf32>
    %66 = arith.addf %60, %65 : vector<8x768xf32>
    %67 = vector.extract_strided_slice %2 {offsets = [0, 18], sizes = [8, 1], strides = [1, 1]} : vector<8x72xf32> to vector<8x1xf32>
    %68 = vector.extract_strided_slice %54 {offsets = [2, 0], sizes = [1, 768], strides = [1, 1]} : vector<8x768xf32> to vector<1x768xf32>
    %69 = vector.broadcast %67 : vector<8x1xf32> to vector<8x768xf32>
    %70 = vector.broadcast %68 : vector<1x768xf32> to vector<8x768xf32>
    %71 = arith.mulf %69, %70 : vector<8x768xf32>
    %72 = arith.addf %66, %71 : vector<8x768xf32>
    %73 = vector.extract_strided_slice %2 {offsets = [0, 19], sizes = [8, 1], strides = [1, 1]} : vector<8x72xf32> to vector<8x1xf32>
    %74 = vector.extract_strided_slice %54 {offsets = [3, 0], sizes = [1, 768], strides = [1, 1]} : vector<8x768xf32> to vector<1x768xf32>
    %75 = vector.broadcast %73 : vector<8x1xf32> to vector<8x768xf32>
    %76 = vector.broadcast %74 : vector<1x768xf32> to vector<8x768xf32>
    %77 = arith.mulf %75, %76 : vector<8x768xf32>
    %78 = arith.addf %72, %77 : vector<8x768xf32>
    %c1_i32 = arith.constant 1 : i32
    %79 = tpu.dynamic_rotate %1 by %c1_i32 dim 1 : vector<8x768xf32>, i32 -> vector<8x768xf32>
    %80 = vector.extract_strided_slice %2 {offsets = [0, 24], sizes = [8, 1], strides = [1, 1]} : vector<8x72xf32> to vector<8x1xf32>
    %81 = vector.extract_strided_slice %79 {offsets = [0, 0], sizes = [1, 768], strides = [1, 1]} : vector<8x768xf32> to vector<1x768xf32>
    %82 = vector.broadcast %80 : vector<8x1xf32> to vector<8x768xf32>
    %83 = vector.broadcast %81 : vector<1x768xf32> to vector<8x768xf32>
    %84 = arith.mulf %82, %83 : vector<8x768xf32>
    %85 = arith.addf %78, %84 : vector<8x768xf32>
    %86 = vector.extract_strided_slice %2 {offsets = [0, 25], sizes = [8, 1], strides = [1, 1]} : vector<8x72xf32> to vector<8x1xf32>
    %87 = vector.extract_strided_slice %79 {offsets = [1, 0], sizes = [1, 768], strides = [1, 1]} : vector<8x768xf32> to vector<1x768xf32>
    %88 = vector.broadcast %86 : vector<8x1xf32> to vector<8x768xf32>
    %89 = vector.broadcast %87 : vector<1x768xf32> to vector<8x768xf32>
    %90 = arith.mulf %88, %89 : vector<8x768xf32>
    %91 = arith.addf %85, %90 : vector<8x768xf32>
    %92 = vector.extract_strided_slice %2 {offsets = [0, 26], sizes = [8, 1], strides = [1, 1]} : vector<8x72xf32> to vector<8x1xf32>
    %93 = vector.extract_strided_slice %79 {offsets = [2, 0], sizes = [1, 768], strides = [1, 1]} : vector<8x768xf32> to vector<1x768xf32>
    %94 = vector.broadcast %92 : vector<8x1xf32> to vector<8x768xf32>
    %95 = vector.broadcast %93 : vector<1x768xf32> to vector<8x768xf32>
    %96 = arith.mulf %94, %95 : vector<8x768xf32>
    %97 = arith.addf %91, %96 : vector<8x768xf32>
    %98 = vector.extract_strided_slice %2 {offsets = [0, 27], sizes = [8, 1], strides = [1, 1]} : vector<8x72xf32> to vector<8x1xf32>
    %99 = vector.extract_strided_slice %79 {offsets = [3, 0], sizes = [1, 768], strides = [1, 1]} : vector<8x768xf32> to vector<1x768xf32>
    %100 = vector.broadcast %98 : vector<8x1xf32> to vector<8x768xf32>
    %101 = vector.broadcast %99 : vector<1x768xf32> to vector<8x768xf32>
    %102 = arith.mulf %100, %101 : vector<8x768xf32>
    %103 = arith.addf %97, %102 : vector<8x768xf32>
    %104 = vector.extract_strided_slice %2 {offsets = [0, 32], sizes = [8, 1], strides = [1, 1]} : vector<8x72xf32> to vector<8x1xf32>
    %105 = vector.extract_strided_slice %1 {offsets = [0, 0], sizes = [1, 768], strides = [1, 1]} : vector<8x768xf32> to vector<1x768xf32>
    %106 = vector.broadcast %104 : vector<8x1xf32> to vector<8x768xf32>
    %107 = vector.broadcast %105 : vector<1x768xf32> to vector<8x768xf32>
    %108 = arith.mulf %106, %107 : vector<8x768xf32>
    %109 = arith.addf %103, %108 : vector<8x768xf32>
    %110 = vector.extract_strided_slice %2 {offsets = [0, 33], sizes = [8, 1], strides = [1, 1]} : vector<8x72xf32> to vector<8x1xf32>
    %111 = vector.extract_strided_slice %1 {offsets = [1, 0], sizes = [1, 768], strides = [1, 1]} : vector<8x768xf32> to vector<1x768xf32>
    %112 = vector.broadcast %110 : vector<8x1xf32> to vector<8x768xf32>
    %113 = vector.broadcast %111 : vector<1x768xf32> to vector<8x768xf32>
    %114 = arith.mulf %112, %113 : vector<8x768xf32>
    %115 = arith.addf %109, %114 : vector<8x768xf32>
    %116 = vector.extract_strided_slice %2 {offsets = [0, 34], sizes = [8, 1], strides = [1, 1]} : vector<8x72xf32> to vector<8x1xf32>
    %117 = vector.extract_strided_slice %1 {offsets = [2, 0], sizes = [1, 768], strides = [1, 1]} : vector<8x768xf32> to vector<1x768xf32>
    %118 = vector.broadcast %116 : vector<8x1xf32> to vector<8x768xf32>
    %119 = vector.broadcast %117 : vector<1x768xf32> to vector<8x768xf32>
    %120 = arith.mulf %118, %119 : vector<8x768xf32>
    %121 = arith.addf %115, %120 : vector<8x768xf32>
    %122 = vector.extract_strided_slice %2 {offsets = [0, 35], sizes = [8, 1], strides = [1, 1]} : vector<8x72xf32> to vector<8x1xf32>
    %123 = vector.extract_strided_slice %1 {offsets = [3, 0], sizes = [1, 768], strides = [1, 1]} : vector<8x768xf32> to vector<1x768xf32>
    %124 = vector.broadcast %122 : vector<8x1xf32> to vector<8x768xf32>
    %125 = vector.broadcast %123 : vector<1x768xf32> to vector<8x768xf32>
    %126 = arith.mulf %124, %125 : vector<8x768xf32>
    %127 = arith.addf %121, %126 : vector<8x768xf32>
    %c767_i32 = arith.constant 767 : i32
    %128 = tpu.dynamic_rotate %1 by %c767_i32 dim 1 : vector<8x768xf32>, i32 -> vector<8x768xf32>
    %129 = vector.extract_strided_slice %2 {offsets = [0, 40], sizes = [8, 1], strides = [1, 1]} : vector<8x72xf32> to vector<8x1xf32>
    %130 = vector.extract_strided_slice %128 {offsets = [0, 0], sizes = [1, 768], strides = [1, 1]} : vector<8x768xf32> to vector<1x768xf32>
    %131 = vector.broadcast %129 : vector<8x1xf32> to vector<8x768xf32>
    %132 = vector.broadcast %130 : vector<1x768xf32> to vector<8x768xf32>
    %133 = arith.mulf %131, %132 : vector<8x768xf32>
    %134 = arith.addf %127, %133 : vector<8x768xf32>
    %135 = vector.extract_strided_slice %2 {offsets = [0, 41], sizes = [8, 1], strides = [1, 1]} : vector<8x72xf32> to vector<8x1xf32>
    %136 = vector.extract_strided_slice %128 {offsets = [1, 0], sizes = [1, 768], strides = [1, 1]} : vector<8x768xf32> to vector<1x768xf32>
    %137 = vector.broadcast %135 : vector<8x1xf32> to vector<8x768xf32>
    %138 = vector.broadcast %136 : vector<1x768xf32> to vector<8x768xf32>
    %139 = arith.mulf %137, %138 : vector<8x768xf32>
    %140 = arith.addf %134, %139 : vector<8x768xf32>
    %141 = vector.extract_strided_slice %2 {offsets = [0, 42], sizes = [8, 1], strides = [1, 1]} : vector<8x72xf32> to vector<8x1xf32>
    %142 = vector.extract_strided_slice %128 {offsets = [2, 0], sizes = [1, 768], strides = [1, 1]} : vector<8x768xf32> to vector<1x768xf32>
    %143 = vector.broadcast %141 : vector<8x1xf32> to vector<8x768xf32>
    %144 = vector.broadcast %142 : vector<1x768xf32> to vector<8x768xf32>
    %145 = arith.mulf %143, %144 : vector<8x768xf32>
    %146 = arith.addf %140, %145 : vector<8x768xf32>
    %147 = vector.extract_strided_slice %2 {offsets = [0, 43], sizes = [8, 1], strides = [1, 1]} : vector<8x72xf32> to vector<8x1xf32>
    %148 = vector.extract_strided_slice %128 {offsets = [3, 0], sizes = [1, 768], strides = [1, 1]} : vector<8x768xf32> to vector<1x768xf32>
    %149 = vector.broadcast %147 : vector<8x1xf32> to vector<8x768xf32>
    %150 = vector.broadcast %148 : vector<1x768xf32> to vector<8x768xf32>
    %151 = arith.mulf %149, %150 : vector<8x768xf32>
    %152 = arith.addf %146, %151 : vector<8x768xf32>
    %c751_i32 = arith.constant 751 : i32
    %153 = tpu.dynamic_rotate %1 by %c751_i32 dim 1 : vector<8x768xf32>, i32 -> vector<8x768xf32>
    %154 = vector.extract_strided_slice %2 {offsets = [0, 48], sizes = [8, 1], strides = [1, 1]} : vector<8x72xf32> to vector<8x1xf32>
    %155 = vector.extract_strided_slice %153 {offsets = [0, 0], sizes = [1, 768], strides = [1, 1]} : vector<8x768xf32> to vector<1x768xf32>
    %156 = vector.broadcast %154 : vector<8x1xf32> to vector<8x768xf32>
    %157 = vector.broadcast %155 : vector<1x768xf32> to vector<8x768xf32>
    %158 = arith.mulf %156, %157 : vector<8x768xf32>
    %159 = arith.addf %152, %158 : vector<8x768xf32>
    %160 = vector.extract_strided_slice %2 {offsets = [0, 49], sizes = [8, 1], strides = [1, 1]} : vector<8x72xf32> to vector<8x1xf32>
    %161 = vector.extract_strided_slice %153 {offsets = [1, 0], sizes = [1, 768], strides = [1, 1]} : vector<8x768xf32> to vector<1x768xf32>
    %162 = vector.broadcast %160 : vector<8x1xf32> to vector<8x768xf32>
    %163 = vector.broadcast %161 : vector<1x768xf32> to vector<8x768xf32>
    %164 = arith.mulf %162, %163 : vector<8x768xf32>
    %165 = arith.addf %159, %164 : vector<8x768xf32>
    %166 = vector.extract_strided_slice %2 {offsets = [0, 50], sizes = [8, 1], strides = [1, 1]} : vector<8x72xf32> to vector<8x1xf32>
    %167 = vector.extract_strided_slice %153 {offsets = [2, 0], sizes = [1, 768], strides = [1, 1]} : vector<8x768xf32> to vector<1x768xf32>
    %168 = vector.broadcast %166 : vector<8x1xf32> to vector<8x768xf32>
    %169 = vector.broadcast %167 : vector<1x768xf32> to vector<8x768xf32>
    %170 = arith.mulf %168, %169 : vector<8x768xf32>
    %171 = arith.addf %165, %170 : vector<8x768xf32>
    %172 = vector.extract_strided_slice %2 {offsets = [0, 51], sizes = [8, 1], strides = [1, 1]} : vector<8x72xf32> to vector<8x1xf32>
    %173 = vector.extract_strided_slice %153 {offsets = [3, 0], sizes = [1, 768], strides = [1, 1]} : vector<8x768xf32> to vector<1x768xf32>
    %174 = vector.broadcast %172 : vector<8x1xf32> to vector<8x768xf32>
    %175 = vector.broadcast %173 : vector<1x768xf32> to vector<8x768xf32>
    %176 = arith.mulf %174, %175 : vector<8x768xf32>
    %177 = arith.addf %171, %176 : vector<8x768xf32>
    %c750_i32 = arith.constant 750 : i32
    %178 = tpu.dynamic_rotate %1 by %c750_i32 dim 1 : vector<8x768xf32>, i32 -> vector<8x768xf32>
    %179 = vector.extract_strided_slice %2 {offsets = [0, 56], sizes = [8, 1], strides = [1, 1]} : vector<8x72xf32> to vector<8x1xf32>
    %180 = vector.extract_strided_slice %178 {offsets = [0, 0], sizes = [1, 768], strides = [1, 1]} : vector<8x768xf32> to vector<1x768xf32>
    %181 = vector.broadcast %179 : vector<8x1xf32> to vector<8x768xf32>
    %182 = vector.broadcast %180 : vector<1x768xf32> to vector<8x768xf32>
    %183 = arith.mulf %181, %182 : vector<8x768xf32>
    %184 = arith.addf %177, %183 : vector<8x768xf32>
    %185 = vector.extract_strided_slice %2 {offsets = [0, 57], sizes = [8, 1], strides = [1, 1]} : vector<8x72xf32> to vector<8x1xf32>
    %186 = vector.extract_strided_slice %178 {offsets = [1, 0], sizes = [1, 768], strides = [1, 1]} : vector<8x768xf32> to vector<1x768xf32>
    %187 = vector.broadcast %185 : vector<8x1xf32> to vector<8x768xf32>
    %188 = vector.broadcast %186 : vector<1x768xf32> to vector<8x768xf32>
    %189 = arith.mulf %187, %188 : vector<8x768xf32>
    %190 = arith.addf %184, %189 : vector<8x768xf32>
    %191 = vector.extract_strided_slice %2 {offsets = [0, 58], sizes = [8, 1], strides = [1, 1]} : vector<8x72xf32> to vector<8x1xf32>
    %192 = vector.extract_strided_slice %178 {offsets = [2, 0], sizes = [1, 768], strides = [1, 1]} : vector<8x768xf32> to vector<1x768xf32>
    %193 = vector.broadcast %191 : vector<8x1xf32> to vector<8x768xf32>
    %194 = vector.broadcast %192 : vector<1x768xf32> to vector<8x768xf32>
    %195 = arith.mulf %193, %194 : vector<8x768xf32>
    %196 = arith.addf %190, %195 : vector<8x768xf32>
    %197 = vector.extract_strided_slice %2 {offsets = [0, 59], sizes = [8, 1], strides = [1, 1]} : vector<8x72xf32> to vector<8x1xf32>
    %198 = vector.extract_strided_slice %178 {offsets = [3, 0], sizes = [1, 768], strides = [1, 1]} : vector<8x768xf32> to vector<1x768xf32>
    %199 = vector.broadcast %197 : vector<8x1xf32> to vector<8x768xf32>
    %200 = vector.broadcast %198 : vector<1x768xf32> to vector<8x768xf32>
    %201 = arith.mulf %199, %200 : vector<8x768xf32>
    %202 = arith.addf %196, %201 : vector<8x768xf32>
    %c749_i32 = arith.constant 749 : i32
    %203 = tpu.dynamic_rotate %1 by %c749_i32 dim 1 : vector<8x768xf32>, i32 -> vector<8x768xf32>
    %204 = vector.extract_strided_slice %2 {offsets = [0, 64], sizes = [8, 1], strides = [1, 1]} : vector<8x72xf32> to vector<8x1xf32>
    %205 = vector.extract_strided_slice %203 {offsets = [0, 0], sizes = [1, 768], strides = [1, 1]} : vector<8x768xf32> to vector<1x768xf32>
    %206 = vector.broadcast %204 : vector<8x1xf32> to vector<8x768xf32>
    %207 = vector.broadcast %205 : vector<1x768xf32> to vector<8x768xf32>
    %208 = arith.mulf %206, %207 : vector<8x768xf32>
    %209 = arith.addf %202, %208 : vector<8x768xf32>
    %210 = vector.extract_strided_slice %2 {offsets = [0, 65], sizes = [8, 1], strides = [1, 1]} : vector<8x72xf32> to vector<8x1xf32>
    %211 = vector.extract_strided_slice %203 {offsets = [1, 0], sizes = [1, 768], strides = [1, 1]} : vector<8x768xf32> to vector<1x768xf32>
    %212 = vector.broadcast %210 : vector<8x1xf32> to vector<8x768xf32>
    %213 = vector.broadcast %211 : vector<1x768xf32> to vector<8x768xf32>
    %214 = arith.mulf %212, %213 : vector<8x768xf32>
    %215 = arith.addf %209, %214 : vector<8x768xf32>
    %216 = vector.extract_strided_slice %2 {offsets = [0, 66], sizes = [8, 1], strides = [1, 1]} : vector<8x72xf32> to vector<8x1xf32>
    %217 = vector.extract_strided_slice %203 {offsets = [2, 0], sizes = [1, 768], strides = [1, 1]} : vector<8x768xf32> to vector<1x768xf32>
    %218 = vector.broadcast %216 : vector<8x1xf32> to vector<8x768xf32>
    %219 = vector.broadcast %217 : vector<1x768xf32> to vector<8x768xf32>
    %220 = arith.mulf %218, %219 : vector<8x768xf32>
    %221 = arith.addf %215, %220 : vector<8x768xf32>
    %222 = vector.extract_strided_slice %2 {offsets = [0, 67], sizes = [8, 1], strides = [1, 1]} : vector<8x72xf32> to vector<8x1xf32>
    %223 = vector.extract_strided_slice %203 {offsets = [3, 0], sizes = [1, 768], strides = [1, 1]} : vector<8x768xf32> to vector<1x768xf32>
    %224 = vector.broadcast %222 : vector<8x1xf32> to vector<8x768xf32>
    %225 = vector.broadcast %223 : vector<1x768xf32> to vector<8x768xf32>
    %226 = arith.mulf %224, %225 : vector<8x768xf32>
    %227 = arith.addf %221, %226 : vector<8x768xf32>
    %c0_5 = arith.constant 0 : index
    %c0_6 = arith.constant 0 : index
    %228 = vector.load %arg4[%c0_5, %c0_6] : memref<8x1xf32, #tpu.memory_space<vmem>>, vector<8x1xf32>
    %c0_7 = arith.constant 0 : index
    %c0_8 = arith.constant 0 : index
    %229 = vector.load %arg5[%c0_7, %c0_8] : memref<8x1xf32, #tpu.memory_space<vmem>>, vector<8x1xf32>
    %230 = vector.broadcast %0 : vector<1x768xf32> to vector<8x768xf32>
    %231 = arith.mulf %227, %230 : vector<8x768xf32>
    %232 = arith.mulf %231, %227 : vector<8x768xf32>
    %233 = tpu.concatenate %231, %232 in 0 : vector<8x768xf32>, vector<8x768xf32> -> vector<16x768xf32>
    %cst_9 = arith.constant dense<0.000000e+00> : vector<16xf32>
    %234 = vector.multi_reduction <add>, %233, %cst_9 [1] : vector<16x768xf32> to vector<16xf32>
    %235 = vector.shape_cast %234 : vector<16xf32> to vector<16x1xf32>
    %236 = vector.extract_strided_slice %235 {offsets = [0, 0], sizes = [8, 1], strides = [1, 1]} : vector<16x1xf32> to vector<8x1xf32>
    %cst_10 = arith.constant 0.001953125 : f32
    %237 = vector.broadcast %cst_10 : f32 to vector<8x1xf32>
    %238 = arith.mulf %236, %237 : vector<8x1xf32>
    %239 = vector.extract_strided_slice %235 {offsets = [8, 0], sizes = [8, 1], strides = [1, 1]} : vector<16x1xf32> to vector<8x1xf32>
    %cst_11 = arith.constant 0.001953125 : f32
    %240 = vector.broadcast %cst_11 : f32 to vector<8x1xf32>
    %241 = arith.mulf %239, %240 : vector<8x1xf32>
    %242 = arith.mulf %238, %238 : vector<8x1xf32>
    %243 = arith.subf %241, %242 : vector<8x1xf32>
    %cst_12 = arith.constant 0.000000e+00 : f32
    %244 = vector.broadcast %cst_12 : f32 to vector<8x1xf32>
    %245 = arith.maximumf %243, %244 : vector<8x1xf32>
    %cst_13 = arith.constant 9.99999974E-6 : f32
    %246 = vector.broadcast %cst_13 : f32 to vector<8x1xf32>
    %247 = arith.addf %245, %246 : vector<8x1xf32>
    %248 = math.rsqrt %247 : vector<8x1xf32>
    %249 = arith.mulf %228, %248 : vector<8x1xf32>
    %250 = arith.mulf %238, %249 : vector<8x1xf32>
    %251 = arith.subf %229, %250 : vector<8x1xf32>
    %252 = vector.broadcast %249 : vector<8x1xf32> to vector<8x768xf32>
    %253 = arith.mulf %227, %252 : vector<8x768xf32>
    %254 = vector.broadcast %251 : vector<8x1xf32> to vector<8x768xf32>
    %255 = arith.addf %253, %254 : vector<8x768xf32>
    %cst_14 = arith.constant 0.000000e+00 : f32
    %256 = vector.broadcast %cst_14 : f32 to vector<8x768xf32>
    %257 = arith.maximumf %255, %256 : vector<8x768xf32>
    %258 = vector.broadcast %0 : vector<1x768xf32> to vector<8x768xf32>
    %259 = arith.mulf %257, %258 : vector<8x768xf32>
    %c0_15 = arith.constant 0 : index
    %c0_16 = arith.constant 0 : index
    %260 = vector.load %arg3[%c0_15, %c0_16] : memref<8x72xf32, #tpu.memory_space<vmem>>, vector<8x72xf32>
    %cst_17 = arith.constant 0.000000e+00 : f32
    %261 = vector.broadcast %cst_17 : f32 to vector<8x768xf32>
    %c19_i32_18 = arith.constant 19 : i32
    %262 = tpu.dynamic_rotate %259 by %c19_i32_18 dim 1 : vector<8x768xf32>, i32 -> vector<8x768xf32>
    %263 = vector.extract_strided_slice %260 {offsets = [0, 0], sizes = [8, 1], strides = [1, 1]} : vector<8x72xf32> to vector<8x1xf32>
    %264 = vector.extract_strided_slice %262 {offsets = [0, 0], sizes = [1, 768], strides = [1, 1]} : vector<8x768xf32> to vector<1x768xf32>
    %265 = vector.broadcast %263 : vector<8x1xf32> to vector<8x768xf32>
    %266 = vector.broadcast %264 : vector<1x768xf32> to vector<8x768xf32>
    %267 = arith.mulf %265, %266 : vector<8x768xf32>
    %268 = arith.addf %261, %267 : vector<8x768xf32>
    %269 = vector.extract_strided_slice %260 {offsets = [0, 1], sizes = [8, 1], strides = [1, 1]} : vector<8x72xf32> to vector<8x1xf32>
    %270 = vector.extract_strided_slice %262 {offsets = [1, 0], sizes = [1, 768], strides = [1, 1]} : vector<8x768xf32> to vector<1x768xf32>
    %271 = vector.broadcast %269 : vector<8x1xf32> to vector<8x768xf32>
    %272 = vector.broadcast %270 : vector<1x768xf32> to vector<8x768xf32>
    %273 = arith.mulf %271, %272 : vector<8x768xf32>
    %274 = arith.addf %268, %273 : vector<8x768xf32>
    %275 = vector.extract_strided_slice %260 {offsets = [0, 2], sizes = [8, 1], strides = [1, 1]} : vector<8x72xf32> to vector<8x1xf32>
    %276 = vector.extract_strided_slice %262 {offsets = [2, 0], sizes = [1, 768], strides = [1, 1]} : vector<8x768xf32> to vector<1x768xf32>
    %277 = vector.broadcast %275 : vector<8x1xf32> to vector<8x768xf32>
    %278 = vector.broadcast %276 : vector<1x768xf32> to vector<8x768xf32>
    %279 = arith.mulf %277, %278 : vector<8x768xf32>
    %280 = arith.addf %274, %279 : vector<8x768xf32>
    %281 = vector.extract_strided_slice %260 {offsets = [0, 3], sizes = [8, 1], strides = [1, 1]} : vector<8x72xf32> to vector<8x1xf32>
    %282 = vector.extract_strided_slice %262 {offsets = [3, 0], sizes = [1, 768], strides = [1, 1]} : vector<8x768xf32> to vector<1x768xf32>
    %283 = vector.broadcast %281 : vector<8x1xf32> to vector<8x768xf32>
    %284 = vector.broadcast %282 : vector<1x768xf32> to vector<8x768xf32>
    %285 = arith.mulf %283, %284 : vector<8x768xf32>
    %286 = arith.addf %280, %285 : vector<8x768xf32>
    %c18_i32_19 = arith.constant 18 : i32
    %287 = tpu.dynamic_rotate %259 by %c18_i32_19 dim 1 : vector<8x768xf32>, i32 -> vector<8x768xf32>
    %288 = vector.extract_strided_slice %260 {offsets = [0, 8], sizes = [8, 1], strides = [1, 1]} : vector<8x72xf32> to vector<8x1xf32>
    %289 = vector.extract_strided_slice %287 {offsets = [0, 0], sizes = [1, 768], strides = [1, 1]} : vector<8x768xf32> to vector<1x768xf32>
    %290 = vector.broadcast %288 : vector<8x1xf32> to vector<8x768xf32>
    %291 = vector.broadcast %289 : vector<1x768xf32> to vector<8x768xf32>
    %292 = arith.mulf %290, %291 : vector<8x768xf32>
    %293 = arith.addf %286, %292 : vector<8x768xf32>
    %294 = vector.extract_strided_slice %260 {offsets = [0, 9], sizes = [8, 1], strides = [1, 1]} : vector<8x72xf32> to vector<8x1xf32>
    %295 = vector.extract_strided_slice %287 {offsets = [1, 0], sizes = [1, 768], strides = [1, 1]} : vector<8x768xf32> to vector<1x768xf32>
    %296 = vector.broadcast %294 : vector<8x1xf32> to vector<8x768xf32>
    %297 = vector.broadcast %295 : vector<1x768xf32> to vector<8x768xf32>
    %298 = arith.mulf %296, %297 : vector<8x768xf32>
    %299 = arith.addf %293, %298 : vector<8x768xf32>
    %300 = vector.extract_strided_slice %260 {offsets = [0, 10], sizes = [8, 1], strides = [1, 1]} : vector<8x72xf32> to vector<8x1xf32>
    %301 = vector.extract_strided_slice %287 {offsets = [2, 0], sizes = [1, 768], strides = [1, 1]} : vector<8x768xf32> to vector<1x768xf32>
    %302 = vector.broadcast %300 : vector<8x1xf32> to vector<8x768xf32>
    %303 = vector.broadcast %301 : vector<1x768xf32> to vector<8x768xf32>
    %304 = arith.mulf %302, %303 : vector<8x768xf32>
    %305 = arith.addf %299, %304 : vector<8x768xf32>
    %306 = vector.extract_strided_slice %260 {offsets = [0, 11], sizes = [8, 1], strides = [1, 1]} : vector<8x72xf32> to vector<8x1xf32>
    %307 = vector.extract_strided_slice %287 {offsets = [3, 0], sizes = [1, 768], strides = [1, 1]} : vector<8x768xf32> to vector<1x768xf32>
    %308 = vector.broadcast %306 : vector<8x1xf32> to vector<8x768xf32>
    %309 = vector.broadcast %307 : vector<1x768xf32> to vector<8x768xf32>
    %310 = arith.mulf %308, %309 : vector<8x768xf32>
    %311 = arith.addf %305, %310 : vector<8x768xf32>
    %c17_i32_20 = arith.constant 17 : i32
    %312 = tpu.dynamic_rotate %259 by %c17_i32_20 dim 1 : vector<8x768xf32>, i32 -> vector<8x768xf32>
    %313 = vector.extract_strided_slice %260 {offsets = [0, 16], sizes = [8, 1], strides = [1, 1]} : vector<8x72xf32> to vector<8x1xf32>
    %314 = vector.extract_strided_slice %312 {offsets = [0, 0], sizes = [1, 768], strides = [1, 1]} : vector<8x768xf32> to vector<1x768xf32>
    %315 = vector.broadcast %313 : vector<8x1xf32> to vector<8x768xf32>
    %316 = vector.broadcast %314 : vector<1x768xf32> to vector<8x768xf32>
    %317 = arith.mulf %315, %316 : vector<8x768xf32>
    %318 = arith.addf %311, %317 : vector<8x768xf32>
    %319 = vector.extract_strided_slice %260 {offsets = [0, 17], sizes = [8, 1], strides = [1, 1]} : vector<8x72xf32> to vector<8x1xf32>
    %320 = vector.extract_strided_slice %312 {offsets = [1, 0], sizes = [1, 768], strides = [1, 1]} : vector<8x768xf32> to vector<1x768xf32>
    %321 = vector.broadcast %319 : vector<8x1xf32> to vector<8x768xf32>
    %322 = vector.broadcast %320 : vector<1x768xf32> to vector<8x768xf32>
    %323 = arith.mulf %321, %322 : vector<8x768xf32>
    %324 = arith.addf %318, %323 : vector<8x768xf32>
    %325 = vector.extract_strided_slice %260 {offsets = [0, 18], sizes = [8, 1], strides = [1, 1]} : vector<8x72xf32> to vector<8x1xf32>
    %326 = vector.extract_strided_slice %312 {offsets = [2, 0], sizes = [1, 768], strides = [1, 1]} : vector<8x768xf32> to vector<1x768xf32>
    %327 = vector.broadcast %325 : vector<8x1xf32> to vector<8x768xf32>
    %328 = vector.broadcast %326 : vector<1x768xf32> to vector<8x768xf32>
    %329 = arith.mulf %327, %328 : vector<8x768xf32>
    %330 = arith.addf %324, %329 : vector<8x768xf32>
    %331 = vector.extract_strided_slice %260 {offsets = [0, 19], sizes = [8, 1], strides = [1, 1]} : vector<8x72xf32> to vector<8x1xf32>
    %332 = vector.extract_strided_slice %312 {offsets = [3, 0], sizes = [1, 768], strides = [1, 1]} : vector<8x768xf32> to vector<1x768xf32>
    %333 = vector.broadcast %331 : vector<8x1xf32> to vector<8x768xf32>
    %334 = vector.broadcast %332 : vector<1x768xf32> to vector<8x768xf32>
    %335 = arith.mulf %333, %334 : vector<8x768xf32>
    %336 = arith.addf %330, %335 : vector<8x768xf32>
    %c1_i32_21 = arith.constant 1 : i32
    %337 = tpu.dynamic_rotate %259 by %c1_i32_21 dim 1 : vector<8x768xf32>, i32 -> vector<8x768xf32>
    %338 = vector.extract_strided_slice %260 {offsets = [0, 24], sizes = [8, 1], strides = [1, 1]} : vector<8x72xf32> to vector<8x1xf32>
    %339 = vector.extract_strided_slice %337 {offsets = [0, 0], sizes = [1, 768], strides = [1, 1]} : vector<8x768xf32> to vector<1x768xf32>
    %340 = vector.broadcast %338 : vector<8x1xf32> to vector<8x768xf32>
    %341 = vector.broadcast %339 : vector<1x768xf32> to vector<8x768xf32>
    %342 = arith.mulf %340, %341 : vector<8x768xf32>
    %343 = arith.addf %336, %342 : vector<8x768xf32>
    %344 = vector.extract_strided_slice %260 {offsets = [0, 25], sizes = [8, 1], strides = [1, 1]} : vector<8x72xf32> to vector<8x1xf32>
    %345 = vector.extract_strided_slice %337 {offsets = [1, 0], sizes = [1, 768], strides = [1, 1]} : vector<8x768xf32> to vector<1x768xf32>
    %346 = vector.broadcast %344 : vector<8x1xf32> to vector<8x768xf32>
    %347 = vector.broadcast %345 : vector<1x768xf32> to vector<8x768xf32>
    %348 = arith.mulf %346, %347 : vector<8x768xf32>
    %349 = arith.addf %343, %348 : vector<8x768xf32>
    %350 = vector.extract_strided_slice %260 {offsets = [0, 26], sizes = [8, 1], strides = [1, 1]} : vector<8x72xf32> to vector<8x1xf32>
    %351 = vector.extract_strided_slice %337 {offsets = [2, 0], sizes = [1, 768], strides = [1, 1]} : vector<8x768xf32> to vector<1x768xf32>
    %352 = vector.broadcast %350 : vector<8x1xf32> to vector<8x768xf32>
    %353 = vector.broadcast %351 : vector<1x768xf32> to vector<8x768xf32>
    %354 = arith.mulf %352, %353 : vector<8x768xf32>
    %355 = arith.addf %349, %354 : vector<8x768xf32>
    %356 = vector.extract_strided_slice %260 {offsets = [0, 27], sizes = [8, 1], strides = [1, 1]} : vector<8x72xf32> to vector<8x1xf32>
    %357 = vector.extract_strided_slice %337 {offsets = [3, 0], sizes = [1, 768], strides = [1, 1]} : vector<8x768xf32> to vector<1x768xf32>
    %358 = vector.broadcast %356 : vector<8x1xf32> to vector<8x768xf32>
    %359 = vector.broadcast %357 : vector<1x768xf32> to vector<8x768xf32>
    %360 = arith.mulf %358, %359 : vector<8x768xf32>
    %361 = arith.addf %355, %360 : vector<8x768xf32>
    %362 = vector.extract_strided_slice %260 {offsets = [0, 32], sizes = [8, 1], strides = [1, 1]} : vector<8x72xf32> to vector<8x1xf32>
    %363 = vector.extract_strided_slice %259 {offsets = [0, 0], sizes = [1, 768], strides = [1, 1]} : vector<8x768xf32> to vector<1x768xf32>
    %364 = vector.broadcast %362 : vector<8x1xf32> to vector<8x768xf32>
    %365 = vector.broadcast %363 : vector<1x768xf32> to vector<8x768xf32>
    %366 = arith.mulf %364, %365 : vector<8x768xf32>
    %367 = arith.addf %361, %366 : vector<8x768xf32>
    %368 = vector.extract_strided_slice %260 {offsets = [0, 33], sizes = [8, 1], strides = [1, 1]} : vector<8x72xf32> to vector<8x1xf32>
    %369 = vector.extract_strided_slice %259 {offsets = [1, 0], sizes = [1, 768], strides = [1, 1]} : vector<8x768xf32> to vector<1x768xf32>
    %370 = vector.broadcast %368 : vector<8x1xf32> to vector<8x768xf32>
    %371 = vector.broadcast %369 : vector<1x768xf32> to vector<8x768xf32>
    %372 = arith.mulf %370, %371 : vector<8x768xf32>
    %373 = arith.addf %367, %372 : vector<8x768xf32>
    %374 = vector.extract_strided_slice %260 {offsets = [0, 34], sizes = [8, 1], strides = [1, 1]} : vector<8x72xf32> to vector<8x1xf32>
    %375 = vector.extract_strided_slice %259 {offsets = [2, 0], sizes = [1, 768], strides = [1, 1]} : vector<8x768xf32> to vector<1x768xf32>
    %376 = vector.broadcast %374 : vector<8x1xf32> to vector<8x768xf32>
    %377 = vector.broadcast %375 : vector<1x768xf32> to vector<8x768xf32>
    %378 = arith.mulf %376, %377 : vector<8x768xf32>
    %379 = arith.addf %373, %378 : vector<8x768xf32>
    %380 = vector.extract_strided_slice %260 {offsets = [0, 35], sizes = [8, 1], strides = [1, 1]} : vector<8x72xf32> to vector<8x1xf32>
    %381 = vector.extract_strided_slice %259 {offsets = [3, 0], sizes = [1, 768], strides = [1, 1]} : vector<8x768xf32> to vector<1x768xf32>
    %382 = vector.broadcast %380 : vector<8x1xf32> to vector<8x768xf32>
    %383 = vector.broadcast %381 : vector<1x768xf32> to vector<8x768xf32>
    %384 = arith.mulf %382, %383 : vector<8x768xf32>
    %385 = arith.addf %379, %384 : vector<8x768xf32>
    %c767_i32_22 = arith.constant 767 : i32
    %386 = tpu.dynamic_rotate %259 by %c767_i32_22 dim 1 : vector<8x768xf32>, i32 -> vector<8x768xf32>
    %387 = vector.extract_strided_slice %260 {offsets = [0, 40], sizes = [8, 1], strides = [1, 1]} : vector<8x72xf32> to vector<8x1xf32>
    %388 = vector.extract_strided_slice %386 {offsets = [0, 0], sizes = [1, 768], strides = [1, 1]} : vector<8x768xf32> to vector<1x768xf32>
    %389 = vector.broadcast %387 : vector<8x1xf32> to vector<8x768xf32>
    %390 = vector.broadcast %388 : vector<1x768xf32> to vector<8x768xf32>
    %391 = arith.mulf %389, %390 : vector<8x768xf32>
    %392 = arith.addf %385, %391 : vector<8x768xf32>
    %393 = vector.extract_strided_slice %260 {offsets = [0, 41], sizes = [8, 1], strides = [1, 1]} : vector<8x72xf32> to vector<8x1xf32>
    %394 = vector.extract_strided_slice %386 {offsets = [1, 0], sizes = [1, 768], strides = [1, 1]} : vector<8x768xf32> to vector<1x768xf32>
    %395 = vector.broadcast %393 : vector<8x1xf32> to vector<8x768xf32>
    %396 = vector.broadcast %394 : vector<1x768xf32> to vector<8x768xf32>
    %397 = arith.mulf %395, %396 : vector<8x768xf32>
    %398 = arith.addf %392, %397 : vector<8x768xf32>
    %399 = vector.extract_strided_slice %260 {offsets = [0, 42], sizes = [8, 1], strides = [1, 1]} : vector<8x72xf32> to vector<8x1xf32>
    %400 = vector.extract_strided_slice %386 {offsets = [2, 0], sizes = [1, 768], strides = [1, 1]} : vector<8x768xf32> to vector<1x768xf32>
    %401 = vector.broadcast %399 : vector<8x1xf32> to vector<8x768xf32>
    %402 = vector.broadcast %400 : vector<1x768xf32> to vector<8x768xf32>
    %403 = arith.mulf %401, %402 : vector<8x768xf32>
    %404 = arith.addf %398, %403 : vector<8x768xf32>
    %405 = vector.extract_strided_slice %260 {offsets = [0, 43], sizes = [8, 1], strides = [1, 1]} : vector<8x72xf32> to vector<8x1xf32>
    %406 = vector.extract_strided_slice %386 {offsets = [3, 0], sizes = [1, 768], strides = [1, 1]} : vector<8x768xf32> to vector<1x768xf32>
    %407 = vector.broadcast %405 : vector<8x1xf32> to vector<8x768xf32>
    %408 = vector.broadcast %406 : vector<1x768xf32> to vector<8x768xf32>
    %409 = arith.mulf %407, %408 : vector<8x768xf32>
    %410 = arith.addf %404, %409 : vector<8x768xf32>
    %c751_i32_23 = arith.constant 751 : i32
    %411 = tpu.dynamic_rotate %259 by %c751_i32_23 dim 1 : vector<8x768xf32>, i32 -> vector<8x768xf32>
    %412 = vector.extract_strided_slice %260 {offsets = [0, 48], sizes = [8, 1], strides = [1, 1]} : vector<8x72xf32> to vector<8x1xf32>
    %413 = vector.extract_strided_slice %411 {offsets = [0, 0], sizes = [1, 768], strides = [1, 1]} : vector<8x768xf32> to vector<1x768xf32>
    %414 = vector.broadcast %412 : vector<8x1xf32> to vector<8x768xf32>
    %415 = vector.broadcast %413 : vector<1x768xf32> to vector<8x768xf32>
    %416 = arith.mulf %414, %415 : vector<8x768xf32>
    %417 = arith.addf %410, %416 : vector<8x768xf32>
    %418 = vector.extract_strided_slice %260 {offsets = [0, 49], sizes = [8, 1], strides = [1, 1]} : vector<8x72xf32> to vector<8x1xf32>
    %419 = vector.extract_strided_slice %411 {offsets = [1, 0], sizes = [1, 768], strides = [1, 1]} : vector<8x768xf32> to vector<1x768xf32>
    %420 = vector.broadcast %418 : vector<8x1xf32> to vector<8x768xf32>
    %421 = vector.broadcast %419 : vector<1x768xf32> to vector<8x768xf32>
    %422 = arith.mulf %420, %421 : vector<8x768xf32>
    %423 = arith.addf %417, %422 : vector<8x768xf32>
    %424 = vector.extract_strided_slice %260 {offsets = [0, 50], sizes = [8, 1], strides = [1, 1]} : vector<8x72xf32> to vector<8x1xf32>
    %425 = vector.extract_strided_slice %411 {offsets = [2, 0], sizes = [1, 768], strides = [1, 1]} : vector<8x768xf32> to vector<1x768xf32>
    %426 = vector.broadcast %424 : vector<8x1xf32> to vector<8x768xf32>
    %427 = vector.broadcast %425 : vector<1x768xf32> to vector<8x768xf32>
    %428 = arith.mulf %426, %427 : vector<8x768xf32>
    %429 = arith.addf %423, %428 : vector<8x768xf32>
    %430 = vector.extract_strided_slice %260 {offsets = [0, 51], sizes = [8, 1], strides = [1, 1]} : vector<8x72xf32> to vector<8x1xf32>
    %431 = vector.extract_strided_slice %411 {offsets = [3, 0], sizes = [1, 768], strides = [1, 1]} : vector<8x768xf32> to vector<1x768xf32>
    %432 = vector.broadcast %430 : vector<8x1xf32> to vector<8x768xf32>
    %433 = vector.broadcast %431 : vector<1x768xf32> to vector<8x768xf32>
    %434 = arith.mulf %432, %433 : vector<8x768xf32>
    %435 = arith.addf %429, %434 : vector<8x768xf32>
    %c750_i32_24 = arith.constant 750 : i32
    %436 = tpu.dynamic_rotate %259 by %c750_i32_24 dim 1 : vector<8x768xf32>, i32 -> vector<8x768xf32>
    %437 = vector.extract_strided_slice %260 {offsets = [0, 56], sizes = [8, 1], strides = [1, 1]} : vector<8x72xf32> to vector<8x1xf32>
    %438 = vector.extract_strided_slice %436 {offsets = [0, 0], sizes = [1, 768], strides = [1, 1]} : vector<8x768xf32> to vector<1x768xf32>
    %439 = vector.broadcast %437 : vector<8x1xf32> to vector<8x768xf32>
    %440 = vector.broadcast %438 : vector<1x768xf32> to vector<8x768xf32>
    %441 = arith.mulf %439, %440 : vector<8x768xf32>
    %442 = arith.addf %435, %441 : vector<8x768xf32>
    %443 = vector.extract_strided_slice %260 {offsets = [0, 57], sizes = [8, 1], strides = [1, 1]} : vector<8x72xf32> to vector<8x1xf32>
    %444 = vector.extract_strided_slice %436 {offsets = [1, 0], sizes = [1, 768], strides = [1, 1]} : vector<8x768xf32> to vector<1x768xf32>
    %445 = vector.broadcast %443 : vector<8x1xf32> to vector<8x768xf32>
    %446 = vector.broadcast %444 : vector<1x768xf32> to vector<8x768xf32>
    %447 = arith.mulf %445, %446 : vector<8x768xf32>
    %448 = arith.addf %442, %447 : vector<8x768xf32>
    %449 = vector.extract_strided_slice %260 {offsets = [0, 58], sizes = [8, 1], strides = [1, 1]} : vector<8x72xf32> to vector<8x1xf32>
    %450 = vector.extract_strided_slice %436 {offsets = [2, 0], sizes = [1, 768], strides = [1, 1]} : vector<8x768xf32> to vector<1x768xf32>
    %451 = vector.broadcast %449 : vector<8x1xf32> to vector<8x768xf32>
    %452 = vector.broadcast %450 : vector<1x768xf32> to vector<8x768xf32>
    %453 = arith.mulf %451, %452 : vector<8x768xf32>
    %454 = arith.addf %448, %453 : vector<8x768xf32>
    %455 = vector.extract_strided_slice %260 {offsets = [0, 59], sizes = [8, 1], strides = [1, 1]} : vector<8x72xf32> to vector<8x1xf32>
    %456 = vector.extract_strided_slice %436 {offsets = [3, 0], sizes = [1, 768], strides = [1, 1]} : vector<8x768xf32> to vector<1x768xf32>
    %457 = vector.broadcast %455 : vector<8x1xf32> to vector<8x768xf32>
    %458 = vector.broadcast %456 : vector<1x768xf32> to vector<8x768xf32>
    %459 = arith.mulf %457, %458 : vector<8x768xf32>
    %460 = arith.addf %454, %459 : vector<8x768xf32>
    %c749_i32_25 = arith.constant 749 : i32
    %461 = tpu.dynamic_rotate %259 by %c749_i32_25 dim 1 : vector<8x768xf32>, i32 -> vector<8x768xf32>
    %462 = vector.extract_strided_slice %260 {offsets = [0, 64], sizes = [8, 1], strides = [1, 1]} : vector<8x72xf32> to vector<8x1xf32>
    %463 = vector.extract_strided_slice %461 {offsets = [0, 0], sizes = [1, 768], strides = [1, 1]} : vector<8x768xf32> to vector<1x768xf32>
    %464 = vector.broadcast %462 : vector<8x1xf32> to vector<8x768xf32>
    %465 = vector.broadcast %463 : vector<1x768xf32> to vector<8x768xf32>
    %466 = arith.mulf %464, %465 : vector<8x768xf32>
    %467 = arith.addf %460, %466 : vector<8x768xf32>
    %468 = vector.extract_strided_slice %260 {offsets = [0, 65], sizes = [8, 1], strides = [1, 1]} : vector<8x72xf32> to vector<8x1xf32>
    %469 = vector.extract_strided_slice %461 {offsets = [1, 0], sizes = [1, 768], strides = [1, 1]} : vector<8x768xf32> to vector<1x768xf32>
    %470 = vector.broadcast %468 : vector<8x1xf32> to vector<8x768xf32>
    %471 = vector.broadcast %469 : vector<1x768xf32> to vector<8x768xf32>
    %472 = arith.mulf %470, %471 : vector<8x768xf32>
    %473 = arith.addf %467, %472 : vector<8x768xf32>
    %474 = vector.extract_strided_slice %260 {offsets = [0, 66], sizes = [8, 1], strides = [1, 1]} : vector<8x72xf32> to vector<8x1xf32>
    %475 = vector.extract_strided_slice %461 {offsets = [2, 0], sizes = [1, 768], strides = [1, 1]} : vector<8x768xf32> to vector<1x768xf32>
    %476 = vector.broadcast %474 : vector<8x1xf32> to vector<8x768xf32>
    %477 = vector.broadcast %475 : vector<1x768xf32> to vector<8x768xf32>
    %478 = arith.mulf %476, %477 : vector<8x768xf32>
    %479 = arith.addf %473, %478 : vector<8x768xf32>
    %480 = vector.extract_strided_slice %260 {offsets = [0, 67], sizes = [8, 1], strides = [1, 1]} : vector<8x72xf32> to vector<8x1xf32>
    %481 = vector.extract_strided_slice %461 {offsets = [3, 0], sizes = [1, 768], strides = [1, 1]} : vector<8x768xf32> to vector<1x768xf32>
    %482 = vector.broadcast %480 : vector<8x1xf32> to vector<8x768xf32>
    %483 = vector.broadcast %481 : vector<1x768xf32> to vector<8x768xf32>
    %484 = arith.mulf %482, %483 : vector<8x768xf32>
    %485 = arith.addf %479, %484 : vector<8x768xf32>
    %c0_26 = arith.constant 0 : index
    %c0_27 = arith.constant 0 : index
    %486 = vector.load %arg6[%c0_26, %c0_27] : memref<8x1xf32, #tpu.memory_space<vmem>>, vector<8x1xf32>
    %c0_28 = arith.constant 0 : index
    %c0_29 = arith.constant 0 : index
    %487 = vector.load %arg7[%c0_28, %c0_29] : memref<8x1xf32, #tpu.memory_space<vmem>>, vector<8x1xf32>
    %488 = vector.broadcast %0 : vector<1x768xf32> to vector<8x768xf32>
    %489 = arith.mulf %485, %488 : vector<8x768xf32>
    %490 = arith.mulf %489, %485 : vector<8x768xf32>
    %491 = tpu.concatenate %489, %490 in 0 : vector<8x768xf32>, vector<8x768xf32> -> vector<16x768xf32>
    %cst_30 = arith.constant dense<0.000000e+00> : vector<16xf32>
    %492 = vector.multi_reduction <add>, %491, %cst_30 [1] : vector<16x768xf32> to vector<16xf32>
    %493 = vector.shape_cast %492 : vector<16xf32> to vector<16x1xf32>
    %494 = vector.extract_strided_slice %493 {offsets = [0, 0], sizes = [8, 1], strides = [1, 1]} : vector<16x1xf32> to vector<8x1xf32>
    %cst_31 = arith.constant 0.001953125 : f32
    %495 = vector.broadcast %cst_31 : f32 to vector<8x1xf32>
    %496 = arith.mulf %494, %495 : vector<8x1xf32>
    %497 = vector.extract_strided_slice %493 {offsets = [8, 0], sizes = [8, 1], strides = [1, 1]} : vector<16x1xf32> to vector<8x1xf32>
    %cst_32 = arith.constant 0.001953125 : f32
    %498 = vector.broadcast %cst_32 : f32 to vector<8x1xf32>
    %499 = arith.mulf %497, %498 : vector<8x1xf32>
    %500 = arith.mulf %496, %496 : vector<8x1xf32>
    %501 = arith.subf %499, %500 : vector<8x1xf32>
    %cst_33 = arith.constant 0.000000e+00 : f32
    %502 = vector.broadcast %cst_33 : f32 to vector<8x1xf32>
    %503 = arith.maximumf %501, %502 : vector<8x1xf32>
    %cst_34 = arith.constant 9.99999974E-6 : f32
    %504 = vector.broadcast %cst_34 : f32 to vector<8x1xf32>
    %505 = arith.addf %503, %504 : vector<8x1xf32>
    %506 = math.rsqrt %505 : vector<8x1xf32>
    %507 = arith.mulf %486, %506 : vector<8x1xf32>
    %508 = arith.mulf %496, %507 : vector<8x1xf32>
    %509 = arith.subf %487, %508 : vector<8x1xf32>
    %510 = vector.broadcast %507 : vector<8x1xf32> to vector<8x768xf32>
    %511 = arith.mulf %485, %510 : vector<8x768xf32>
    %512 = vector.broadcast %509 : vector<8x1xf32> to vector<8x768xf32>
    %513 = arith.addf %511, %512 : vector<8x768xf32>
    %514 = arith.addf %513, %1 : vector<8x768xf32>
    %cst_35 = arith.constant 0.000000e+00 : f32
    %515 = vector.broadcast %cst_35 : f32 to vector<8x768xf32>
    %516 = arith.maximumf %514, %515 : vector<8x768xf32>
    %c0_36 = arith.constant 0 : index
    %c0_37 = arith.constant 0 : index
    %517 = vector.load %arg8[%c0_36, %c0_37] : memref<8x768xf32, #tpu.memory_space<vmem>>, vector<8x768xf32>
    tpu.vector_store %arg8[%c0_36, %c0_37], %516 {strides = array<i32>} : memref<8x768xf32, #tpu.memory_space<vmem>>, vector<8x768xf32>,
    return
  }
}

</mosaic_0001>

<llo_original>
// kernel: tpu_custom_call.1
$region0: #{tpu_custom_call.1}
  #allocation0 [shape = 'u32[]', space=smem, size = 0x4, offset = 0x4, fixed_abs, tag = 'smem constant byte address 0x4 - core index']
  #allocation1 [shape = 'u32[144,128]{1,0:T(1,128)}', space=vmem, size = 0x12000, scoped, tag = 'internal scratch']
  %s0 = inlined_call_operand.hbm [shape: f32[8,768], index: 0, kind: input, shape index: {}]
  %s1 = inlined_call_operand.vmem [shape: f32[1,768], index: 1, kind: input, shape index: {}]
  %s2 = inlined_call_operand.vmem [shape: f32[8,72], index: 2, kind: input, shape index: {}]
  %s3 = inlined_call_operand.vmem [shape: f32[8,72], index: 3, kind: input, shape index: {}]
  %s4 = inlined_call_operand.vmem [shape: f32[8,1], index: 4, kind: input, shape index: {}]
  %s5 = inlined_call_operand.vmem [shape: f32[8,1], index: 5, kind: input, shape index: {}]
  %s6 = inlined_call_operand.vmem [shape: f32[8,1], index: 6, kind: input, shape index: {}]
  %s7 = inlined_call_operand.vmem [shape: f32[8,1], index: 7, kind: input, shape index: {}]
  %s8 = inlined_call_operand.hbm [shape: f32[8,768], index: 8, kind: output, shape index: {}]
  %s9 = sld [smem:[#allocation0]]
  $region46: #{tpu_custom_call.1} parent=0
    _
  %s11 = ssub.s32 1, %s9
  %s12 = scalar_select 0, %s11, %s9
  $region1: #{tpu_custom_call.1} parent=0
    #allocation2 [shape = 'u8[24576]{0}', space=vmem, size = 0x6000, scoped, tag = 'input window, operand 0, single buffered']
    #allocation3 [shape = 's32[1]{0}', space=sflag, size = 0x4, scoped, tag = 'scoped memory for tpu_custom_call.1']
    #allocation4 [shape = 's32[1]{0}', space=sflag, size = 0x4, scoped, tag = 'scoped memory for tpu_custom_call.1']
    #allocation5 [shape = 'u8[24576]{0}', space=vmem, size = 0x6000, scoped, tag = 'output window, operand 0, single buffered']
    %13 = vsyncpa [#allocation3], 0
    %14 = vsyncpa [#allocation4], 0
    // Predicated region
    $region2: #{tpu_custom_call.1} parent=1 // pred_check
      _
    $region3: #{tpu_custom_call.1} parent=1 // pred_check_branch
      %16 = sbr.rel (0) target = $region5
    $region4: #{tpu_custom_call.1} parent=1 // pred_region
      %s18 = ssub.s32 768, 768
      %19 = vsyncadd [#allocation3], %s18
      %s21 = sshll.u32 [#allocation2], 4
      %s22 = int_to_ptr.vmem [resolvable:$true] %s21
      %24 = dma.hbm_to_vmem [thread:$0]  %s0, 768, %s22, [#allocation3]
    $region5: #{tpu_custom_call.1} parent=1 // pred_fallthru
      _
    // Predicated region
    $region6: #{tpu_custom_call.1} parent=1 // pred_check
      _
    $region7: #{tpu_custom_call.1} parent=1 // pred_check_branch
      %26 = sbr.rel (0) target = $region9
    $region8: #{tpu_custom_call.1} parent=1 // pred_region
      _
    $region9: #{tpu_custom_call.1} parent=1 // pred_fallthru
      _
    // Predicated region
    $region10: #{tpu_custom_call.1} parent=1 // pred_check
      _
    $region11: #{tpu_custom_call.1} parent=1 // pred_check_branch
      %28 = sbr.rel (0) target = $region13
    $region12: #{tpu_custom_call.1} parent=1 // pred_region
      _
    $region13: #{tpu_custom_call.1} parent=1 // pred_fallthru
      _
    // Predicated region
    $region14: #{tpu_custom_call.1} parent=1 // pred_check
      _
    $region15: #{tpu_custom_call.1} parent=1 // pred_check_branch
      %30 = sbr.rel (0) target = $region17
    $region16: #{tpu_custom_call.1} parent=1 // pred_region
      _
    $region17: #{tpu_custom_call.1} parent=1 // pred_fallthru
      _
    // Predicated region
    $region18: #{tpu_custom_call.1} parent=1 // pred_check
      _
    $region19: #{tpu_custom_call.1} parent=1 // pred_check_branch
      %32 = sbr.rel (0) target = $region21
    $region20: #{tpu_custom_call.1} parent=1 // pred_region
      _
    $region21: #{tpu_custom_call.1} parent=1 // pred_fallthru
      _
    // Predicated region
    $region22: #{tpu_custom_call.1} parent=1 // pred_check
      _
    $region23: #{tpu_custom_call.1} parent=1 // pred_check_branch
      %34 = sbr.rel (0) target = $region25
    $region24: #{tpu_custom_call.1} parent=1 // pred_region
      _
    $region25: #{tpu_custom_call.1} parent=1 // pred_fallthru
      _
    // Predicated region
    $region26: #{tpu_custom_call.1} parent=1 // pred_check
      _
    $region27: #{tpu_custom_call.1} parent=1 // pred_check_branch
      %36 = sbr.rel (0) target = $region29
    $region28: #{tpu_custom_call.1} parent=1 // pred_region
      _
    $region29: #{tpu_custom_call.1} parent=1 // pred_fallthru
      _
    // Predicated region
    $region30: #{tpu_custom_call.1} parent=1 // pred_check
      _
    $region31: #{tpu_custom_call.1} parent=1 // pred_check_branch
      %38 = sbr.rel (0) target = $region33
    $region32: #{tpu_custom_call.1} parent=1 // pred_region
      _
    $region33: #{tpu_custom_call.1} parent=1 // pred_fallthru
      _
    // Predicated region
    $region34: #{tpu_custom_call.1} parent=1 // pred_check
      _
    $region35: #{tpu_custom_call.1} parent=1 // pred_check_branch
      %40 = sbr.rel (0) target = $region37
    $region36: #{tpu_custom_call.1} parent=1 // pred_region
      %41 = dma.done [#allocation3], 768
    $region37: #{tpu_custom_call.1} parent=1 // pred_fallthru
      _
    %v42 = vld [vmem:[%s1] sm:$0x3f]
    %v43 = vld [vmem:[#allocation2] sm:$0xff]
    %v44 = vld [vmem:[#allocation2 + $0x8] sm:$0xff]
    %v45 = vld [vmem:[#allocation2 + $0x10] sm:$0xff]
    %v46 = vld [vmem:[#allocation2 + $0x18] sm:$0xff]
    %v47 = vld [vmem:[#allocation2 + $0x20] sm:$0xff]
    %v48 = vld [vmem:[#allocation2 + $0x28] sm:$0xff]
    %v49 = vld [vmem:[%s2] sm:$0xff]
    %50 = vrot.lane.b32.xlu0 %v43, 19
    %v51 = vpop.permute.xlu0 %50
    %52 = vrot.lane.b32.xlu0 %v44, 19
    %v53 = vpop.permute.xlu0 %52
    %54 = vrot.lane.b32.xlu0 %v45, 19
    %v55 = vpop.permute.xlu0 %54
    %56 = vrot.lane.b32.xlu0 %v46, 19
    %v57 = vpop.permute.xlu0 %56
    %58 = vrot.lane.b32.xlu0 %v47, 19
    %v59 = vpop.permute.xlu0 %58
    %60 = vrot.lane.b32.xlu0 %v48, 19
    %v61 = vpop.permute.xlu0 %60
    %v62 = vlaneseq
    %v63 = vand.u32 %v62, 127
    %vm64 = vcmp.lt.s32.totalorder %v63, 19
    %v65 = vsel %vm64, %v59, %v61
    %v66 = vsel %vm64, %v57, %v59
    %v67 = vsel %vm64, %v55, %v57
    %v68 = vsel %vm64, %v53, %v55
    %v69 = vsel %vm64, %v51, %v53
    %v70 = vsel %vm64, %v61, %v51
    %72 = vset.pattern.permute.xlu0 0
    %73 = vperm.xlu0 %72, %v49
    %v74 = vpop.permute.xlu0 %73
    %v76 = vlaneseq
    %v77 = vshrl.u32 %v76, 7
    %v78 = vsub.s32 0, %v77
    %v79 = vrot.slane %v70, %v78
    %v80 = vlaneseq
    %v81 = vshrl.u32 %v80, 7
    %v82 = vsub.s32 0, %v81
    %v83 = vrot.slane %v69, %v82
    %v84 = vlaneseq
    %v85 = vshrl.u32 %v84, 7
    %v86 = vsub.s32 0, %v85
    %v87 = vrot.slane %v68, %v86
    %v88 = vlaneseq
    %v89 = vshrl.u32 %v88, 7
    %v90 = vsub.s32 0, %v89
    %v91 = vrot.slane %v67, %v90
    %v92 = vlaneseq
    %v93 = vshrl.u32 %v92, 7
    %v94 = vsub.s32 0, %v93
    %v95 = vrot.slane %v66, %v94
    %v96 = vlaneseq
    %v97 = vshrl.u32 %v96, 7
    %v98 = vsub.s32 0, %v97
    %v99 = vrot.slane %v65, %v98
    %v100 = vmul.f32 %v74, %v79
    %v101 = vmul.f32 %v74, %v83
    %v102 = vmul.f32 %v74, %v87
    %v103 = vmul.f32 %v74, %v91
    %v104 = vmul.f32 %v74, %v95
    %v105 = vmul.f32 %v74, %v99
    %v106 = vadd.f32 %v100, 0.0
    %v107 = vadd.f32 %v101, 0.0
    %v108 = vadd.f32 %v102, 0.0
    %v109 = vadd.f32 %v103, 0.0
    %v110 = vadd.f32 %v104, 0.0
    %v111 = vadd.f32 %v105, 0.0
    %112 = vset.pattern.permute.xlu0 1
    %113 = vperm.xlu0 %112, %v49
    %v114 = vpop.permute.xlu0 %113
    %v116 = vlaneseq
    %v117 = vshrl.u32 %v116, 7
    %v118 = vsub.s32 1, %v117
    %v119 = vrot.slane %v70, %v118
    %v120 = vlaneseq
    %v121 = vshrl.u32 %v120, 7
    %v122 = vsub.s32 1, %v121
    %v123 = vrot.slane %v69, %v122
    %v124 = vlaneseq
    %v125 = vshrl.u32 %v124, 7
    %v126 = vsub.s32 1, %v125
    %v127 = vrot.slane %v68, %v126
    %v128 = vlaneseq
    %v129 = vshrl.u32 %v128, 7
    %v130 = vsub.s32 1, %v129
    %v131 = vrot.slane %v67, %v130
    %v132 = vlaneseq
    %v133 = vshrl.u32 %v132, 7
    %v134 = vsub.s32 1, %v133
    %v135 = vrot.slane %v66, %v134
    %v136 = vlaneseq
    %v137 = vshrl.u32 %v136, 7
    %v138 = vsub.s32 1, %v137
    %v139 = vrot.slane %v65, %v138
    %v140 = vmul.f32 %v114, %v119
    %v141 = vmul.f32 %v114, %v123
    %v142 = vmul.f32 %v114, %v127
    %v143 = vmul.f32 %v114, %v131
    %v144 = vmul.f32 %v114, %v135
    %v145 = vmul.f32 %v114, %v139
    %v146 = vadd.f32 %v106, %v140
    %v147 = vadd.f32 %v107, %v141
    %v148 = vadd.f32 %v108, %v142
    %v149 = vadd.f32 %v109, %v143
    %v150 = vadd.f32 %v110, %v144
    %v151 = vadd.f32 %v111, %v145
    %152 = vset.pattern.permute.xlu0 2
    %153 = vperm.xlu0 %152, %v49
    %v154 = vpop.permute.xlu0 %153
    %v156 = vlaneseq
    %v157 = vshrl.u32 %v156, 7
    %v158 = vsub.s32 2, %v157
    %v159 = vrot.slane %v70, %v158
    %v160 = vlaneseq
    %v161 = vshrl.u32 %v160, 7
    %v162 = vsub.s32 2, %v161
    %v163 = vrot.slane %v69, %v162
    %v164 = vlaneseq
    %v165 = vshrl.u32 %v164, 7
    %v166 = vsub.s32 2, %v165
    %v167 = vrot.slane %v68, %v166
    %v168 = vlaneseq
    %v169 = vshrl.u32 %v168, 7
    %v170 = vsub.s32 2, %v169
    %v171 = vrot.slane %v67, %v170
    %v172 = vlaneseq
    %v173 = vshrl.u32 %v172, 7
    %v174 = vsub.s32 2, %v173
    %v175 = vrot.slane %v66, %v174
    %v176 = vlaneseq
    %v177 = vshrl.u32 %v176, 7
    %v178 = vsub.s32 2, %v177
    %v179 = vrot.slane %v65, %v178
    %v180 = vmul.f32 %v154, %v159
    %v181 = vmul.f32 %v154, %v163
    %v182 = vmul.f32 %v154, %v167
    %v183 = vmul.f32 %v154, %v171
    %v184 = vmul.f32 %v154, %v175
    %v185 = vmul.f32 %v154, %v179
    %v186 = vadd.f32 %v146, %v180
    %v187 = vadd.f32 %v147, %v181
    %v188 = vadd.f32 %v148, %v182
    %v189 = vadd.f32 %v149, %v183
    %v190 = vadd.f32 %v150, %v184
    %v191 = vadd.f32 %v151, %v185
    %192 = vset.pattern.permute.xlu0 3
    %193 = vperm.xlu0 %192, %v49
    %v194 = vpop.permute.xlu0 %193
    %v196 = vlaneseq
    %v197 = vshrl.u32 %v196, 7
    %v198 = vsub.s32 3, %v197
    %v199 = vrot.slane %v70, %v198
    %v200 = vlaneseq
    %v201 = vshrl.u32 %v200, 7
    %v202 = vsub.s32 3, %v201
    %v203 = vrot.slane %v69, %v202
    %v204 = vlaneseq
    %v205 = vshrl.u32 %v204, 7
    %v206 = vsub.s32 3, %v205
    %v207 = vrot.slane %v68, %v206
    %v208 = vlaneseq
    %v209 = vshrl.u32 %v208, 7
    %v210 = vsub.s32 3, %v209
    %v211 = vrot.slane %v67, %v210
    %v212 = vlaneseq
    %v213 = vshrl.u32 %v212, 7
    %v214 = vsub.s32 3, %v213
    %v215 = vrot.slane %v66, %v214
    %v216 = vlaneseq
    %v217 = vshrl.u32 %v216, 7
    %v218 = vsub.s32 3, %v217
    %v219 = vrot.slane %v65, %v218
    %v220 = vmul.f32 %v194, %v199
    %v221 = vmul.f32 %v194, %v203
    %v222 = vmul.f32 %v194, %v207
    %v223 = vmul.f32 %v194, %v211
    %v224 = vmul.f32 %v194, %v215
    %v225 = vmul.f32 %v194, %v219
    %v226 = vadd.f32 %v186, %v220
    %v227 = vadd.f32 %v187, %v221
    %v228 = vadd.f32 %v188, %v222
    %v229 = vadd.f32 %v189, %v223
    %v230 = vadd.f32 %v190, %v224
    %v231 = vadd.f32 %v191, %v225
    %232 = vrot.lane.b32.xlu0 %v43, 18
    %v233 = vpop.permute.xlu0 %232
    %234 = vrot.lane.b32.xlu0 %v44, 18
    %v235 = vpop.permute.xlu0 %234
    %236 = vrot.lane.b32.xlu0 %v45, 18
    %v237 = vpop.permute.xlu0 %236
    %238 = vrot.lane.b32.xlu0 %v46, 18
    %v239 = vpop.permute.xlu0 %238
    %240 = vrot.lane.b32.xlu0 %v47, 18
    %v241 = vpop.permute.xlu0 %240
    %242 = vrot.lane.b32.xlu0 %v48, 18
    %v243 = vpop.permute.xlu0 %242
    %vm244 = vcmp.lt.s32.totalorder %v63, 18
    %v245 = vsel %vm244, %v241, %v243
    %v246 = vsel %vm244, %v239, %v241
    %v247 = vsel %vm244, %v237, %v239
    %v248 = vsel %vm244, %v235, %v237
    %v249 = vsel %vm244, %v233, %v235
    %v250 = vsel %vm244, %v243, %v233
    %251 = vset.pattern.permute.xlu0 8
    %252 = vperm.xlu0 %251, %v49
    %v253 = vpop.permute.xlu0 %252
    %v255 = vlaneseq
    %v256 = vshrl.u32 %v255, 7
    %v257 = vsub.s32 0, %v256
    %v258 = vrot.slane %v250, %v257
    %v259 = vlaneseq
    %v260 = vshrl.u32 %v259, 7
    %v261 = vsub.s32 0, %v260
    %v262 = vrot.slane %v249, %v261
    %v263 = vlaneseq
    %v264 = vshrl.u32 %v263, 7
    %v265 = vsub.s32 0, %v264
    %v266 = vrot.slane %v248, %v265
    %v267 = vlaneseq
    %v268 = vshrl.u32 %v267, 7
    %v269 = vsub.s32 0, %v268
    %v270 = vrot.slane %v247, %v269
    %v271 = vlaneseq
    %v272 = vshrl.u32 %v271, 7
    %v273 = vsub.s32 0, %v272
    %v274 = vrot.slane %v246, %v273
    %v275 = vlaneseq
    %v276 = vshrl.u32 %v275, 7
    %v277 = vsub.s32 0, %v276
    %v278 = vrot.slane %v245, %v277
    %v279 = vmul.f32 %v253, %v258
    %v280 = vmul.f32 %v253, %v262
    %v281 = vmul.f32 %v253, %v266
    %v282 = vmul.f32 %v253, %v270
    %v283 = vmul.f32 %v253, %v274
    %v284 = vmul.f32 %v253, %v278
    %v285 = vadd.f32 %v226, %v279
    %v286 = vadd.f32 %v227, %v280
    %v287 = vadd.f32 %v228, %v281
    %v288 = vadd.f32 %v229, %v282
    %v289 = vadd.f32 %v230, %v283
    %v290 = vadd.f32 %v231, %v284
    %291 = vset.pattern.permute.xlu0 9
    %292 = vperm.xlu0 %291, %v49
    %v293 = vpop.permute.xlu0 %292
    %v295 = vlaneseq
    %v296 = vshrl.u32 %v295, 7
    %v297 = vsub.s32 1, %v296
    %v298 = vrot.slane %v250, %v297
    %v299 = vlaneseq
    %v300 = vshrl.u32 %v299, 7
    %v301 = vsub.s32 1, %v300
    %v302 = vrot.slane %v249, %v301
    %v303 = vlaneseq
    %v304 = vshrl.u32 %v303, 7
    %v305 = vsub.s32 1, %v304
    %v306 = vrot.slane %v248, %v305
    %v307 = vlaneseq
    %v308 = vshrl.u32 %v307, 7
    %v309 = vsub.s32 1, %v308
    %v310 = vrot.slane %v247, %v309
    %v311 = vlaneseq
    %v312 = vshrl.u32 %v311, 7
    %v313 = vsub.s32 1, %v312
    %v314 = vrot.slane %v246, %v313
    %v315 = vlaneseq
    %v316 = vshrl.u32 %v315, 7
    %v317 = vsub.s32 1, %v316
    %v318 = vrot.slane %v245, %v317
    %v319 = vmul.f32 %v293, %v298
    %v320 = vmul.f32 %v293, %v302
    %v321 = vmul.f32 %v293, %v306
    %v322 = vmul.f32 %v293, %v310
    %v323 = vmul.f32 %v293, %v314
    %v324 = vmul.f32 %v293, %v318
    %v325 = vadd.f32 %v285, %v319
    %v326 = vadd.f32 %v286, %v320
    %v327 = vadd.f32 %v287, %v321
    %v328 = vadd.f32 %v288, %v322
    %v329 = vadd.f32 %v289, %v323
    %v330 = vadd.f32 %v290, %v324
    %331 = vset.pattern.permute.xlu0 10
    %332 = vperm.xlu0 %331, %v49
    %v333 = vpop.permute.xlu0 %332
    %v335 = vlaneseq
    %v336 = vshrl.u32 %v335, 7
    %v337 = vsub.s32 2, %v336
    %v338 = vrot.slane %v250, %v337
    %v339 = vlaneseq
    %v340 = vshrl.u32 %v339, 7
    %v341 = vsub.s32 2, %v340
    %v342 = vrot.slane %v249, %v341
    %v343 = vlaneseq
    %v344 = vshrl.u32 %v343, 7
    %v345 = vsub.s32 2, %v344
    %v346 = vrot.slane %v248, %v345
    %v347 = vlaneseq
    %v348 = vshrl.u32 %v347, 7
    %v349 = vsub.s32 2, %v348
    %v350 = vrot.slane %v247, %v349
    %v351 = vlaneseq
    %v352 = vshrl.u32 %v351, 7
    %v353 = vsub.s32 2, %v352
    %v354 = vrot.slane %v246, %v353
    %v355 = vlaneseq
    %v356 = vshrl.u32 %v355, 7
    %v357 = vsub.s32 2, %v356
    %v358 = vrot.slane %v245, %v357
    %v359 = vmul.f32 %v333, %v338
    %v360 = vmul.f32 %v333, %v342
    %v361 = vmul.f32 %v333, %v346
    %v362 = vmul.f32 %v333, %v350
    %v363 = vmul.f32 %v333, %v354
    %v364 = vmul.f32 %v333, %v358
    %v365 = vadd.f32 %v325, %v359
    %v366 = vadd.f32 %v326, %v360
    %v367 = vadd.f32 %v327, %v361
    %v368 = vadd.f32 %v328, %v362
    %v369 = vadd.f32 %v329, %v363
    %v370 = vadd.f32 %v330, %v364
    %371 = vset.pattern.permute.xlu0 11
    %372 = vperm.xlu0 %371, %v49
    %v373 = vpop.permute.xlu0 %372
    %v375 = vlaneseq
    %v376 = vshrl.u32 %v375, 7
    %v377 = vsub.s32 3, %v376
    %v378 = vrot.slane %v250, %v377
    %v379 = vlaneseq
    %v380 = vshrl.u32 %v379, 7
    %v381 = vsub.s32 3, %v380
    %v382 = vrot.slane %v249, %v381
    %v383 = vlaneseq
    %v384 = vshrl.u32 %v383, 7
    %v385 = vsub.s32 3, %v384
    %v386 = vrot.slane %v248, %v385
    %v387 = vlaneseq
    %v388 = vshrl.u32 %v387, 7
    %v389 = vsub.s32 3, %v388
    %v390 = vrot.slane %v247, %v389
    %v391 = vlaneseq
    %v392 = vshrl.u32 %v391, 7
    %v393 = vsub.s32 3, %v392
    %v394 = vrot.slane %v246, %v393
    %v395 = vlaneseq
    %v396 = vshrl.u32 %v395, 7
    %v397 = vsub.s32 3, %v396
    %v398 = vrot.slane %v245, %v397
    %v399 = vmul.f32 %v373, %v378
    %v400 = vmul.f32 %v373, %v382
    %v401 = vmul.f32 %v373, %v386
    %v402 = vmul.f32 %v373, %v390
    %v403 = vmul.f32 %v373, %v394
    %v404 = vmul.f32 %v373, %v398
    %v405 = vadd.f32 %v365, %v399
    %v406 = vadd.f32 %v366, %v400
    %v407 = vadd.f32 %v367, %v401
    %v408 = vadd.f32 %v368, %v402
    %v409 = vadd.f32 %v369, %v403
    %v410 = vadd.f32 %v370, %v404
    %411 = vrot.lane.b32.xlu0 %v43, 17
    %v412 = vpop.permute.xlu0 %411
    %413 = vrot.lane.b32.xlu0 %v44, 17
    %v414 = vpop.permute.xlu0 %413
    %415 = vrot.lane.b32.xlu0 %v45, 17
    %v416 = vpop.permute.xlu0 %415
    %417 = vrot.lane.b32.xlu0 %v46, 17
    %v418 = vpop.permute.xlu0 %417
    %419 = vrot.lane.b32.xlu0 %v47, 17
    %v420 = vpop.permute.xlu0 %419
    %421 = vrot.lane.b32.xlu0 %v48, 17
    %v422 = vpop.permute.xlu0 %421
    %vm423 = vcmp.lt.s32.totalorder %v63, 17
    %v424 = vsel %vm423, %v420, %v422
    %v425 = vsel %vm423, %v418, %v420
    %v426 = vsel %vm423, %v416, %v418
    %v427 = vsel %vm423, %v414, %v416
    %v428 = vsel %vm423, %v412, %v414
    %v429 = vsel %vm423, %v422, %v412
    %430 = vset.pattern.permute.xlu0 16
    %431 = vperm.xlu0 %430, %v49
    %v432 = vpop.permute.xlu0 %431
    %v434 = vlaneseq
    %v435 = vshrl.u32 %v434, 7
    %v436 = vsub.s32 0, %v435
    %v437 = vrot.slane %v429, %v436
    %v438 = vlaneseq
    %v439 = vshrl.u32 %v438, 7
    %v440 = vsub.s32 0, %v439
    %v441 = vrot.slane %v428, %v440
    %v442 = vlaneseq
    %v443 = vshrl.u32 %v442, 7
    %v444 = vsub.s32 0, %v443
    %v445 = vrot.slane %v427, %v444
    %v446 = vlaneseq
    %v447 = vshrl.u32 %v446, 7
    %v448 = vsub.s32 0, %v447
    %v449 = vrot.slane %v426, %v448
    %v450 = vlaneseq
    %v451 = vshrl.u32 %v450, 7
    %v452 = vsub.s32 0, %v451
    %v453 = vrot.slane %v425, %v452
    %v454 = vlaneseq
    %v455 = vshrl.u32 %v454, 7
    %v456 = vsub.s32 0, %v455
    %v457 = vrot.slane %v424, %v456
    %v458 = vmul.f32 %v432, %v437
    %v459 = vmul.f32 %v432, %v441
    %v460 = vmul.f32 %v432, %v445
    %v461 = vmul.f32 %v432, %v449
    %v462 = vmul.f32 %v432, %v453
    %v463 = vmul.f32 %v432, %v457
    %v464 = vadd.f32 %v405, %v458
    %v465 = vadd.f32 %v406, %v459
    %v466 = vadd.f32 %v407, %v460
    %v467 = vadd.f32 %v408, %v461
    %v468 = vadd.f32 %v409, %v462
    %v469 = vadd.f32 %v410, %v463
    %470 = vset.pattern.permute.xlu0 17
    %471 = vperm.xlu0 %470, %v49
    %v472 = vpop.permute.xlu0 %471
    %v474 = vlaneseq
    %v475 = vshrl.u32 %v474, 7
    %v476 = vsub.s32 1, %v475
    %v477 = vrot.slane %v429, %v476
    %v478 = vlaneseq
    %v479 = vshrl.u32 %v478, 7
    %v480 = vsub.s32 1, %v479
    %v481 = vrot.slane %v428, %v480
    %v482 = vlaneseq
    %v483 = vshrl.u32 %v482, 7
    %v484 = vsub.s32 1, %v483
    %v485 = vrot.slane %v427, %v484
    %v486 = vlaneseq
    %v487 = vshrl.u32 %v486, 7
    %v488 = vsub.s32 1, %v487
    %v489 = vrot.slane %v426, %v488
    %v490 = vlaneseq
    %v491 = vshrl.u32 %v490, 7
    %v492 = vsub.s32 1, %v491
    %v493 = vrot.slane %v425, %v492
    %v494 = vlaneseq
    %v495 = vshrl.u32 %v494, 7
    %v496 = vsub.s32 1, %v495
    %v497 = vrot.slane %v424, %v496
    %v498 = vmul.f32 %v472, %v477
    %v499 = vmul.f32 %v472, %v481
    %v500 = vmul.f32 %v472, %v485
    %v501 = vmul.f32 %v472, %v489
    %v502 = vmul.f32 %v472, %v493
    %v503 = vmul.f32 %v472, %v497
    %v504 = vadd.f32 %v464, %v498
    %v505 = vadd.f32 %v465, %v499
    %v506 = vadd.f32 %v466, %v500
    %v507 = vadd.f32 %v467, %v501
    %v508 = vadd.f32 %v468, %v502
    %v509 = vadd.f32 %v469, %v503
    %510 = vset.pattern.permute.xlu0 18
    %511 = vperm.xlu0 %510, %v49
    %v512 = vpop.permute.xlu0 %511
    %v514 = vlaneseq
    %v515 = vshrl.u32 %v514, 7
    %v516 = vsub.s32 2, %v515
    %v517 = vrot.slane %v429, %v516
    %v518 = vlaneseq
    %v519 = vshrl.u32 %v518, 7
    %v520 = vsub.s32 2, %v519
    %v521 = vrot.slane %v428, %v520
    %v522 = vlaneseq
    %v523 = vshrl.u32 %v522, 7
    %v524 = vsub.s32 2, %v523
    %v525 = vrot.slane %v427, %v524
    %v526 = vlaneseq
    %v527 = vshrl.u32 %v526, 7
    %v528 = vsub.s32 2, %v527
    %v529 = vrot.slane %v426, %v528
    %v530 = vlaneseq
    %v531 = vshrl.u32 %v530, 7
    %v532 = vsub.s32 2, %v531
    %v533 = vrot.slane %v425, %v532
    %v534 = vlaneseq
    %v535 = vshrl.u32 %v534, 7
    %v536 = vsub.s32 2, %v535
    %v537 = vrot.slane %v424, %v536
    %v538 = vmul.f32 %v512, %v517
    %v539 = vmul.f32 %v512, %v521
    %v540 = vmul.f32 %v512, %v525
    %v541 = vmul.f32 %v512, %v529
    %v542 = vmul.f32 %v512, %v533
    %v543 = vmul.f32 %v512, %v537
    %v544 = vadd.f32 %v504, %v538
    %v545 = vadd.f32 %v505, %v539
    %v546 = vadd.f32 %v506, %v540
    %v547 = vadd.f32 %v507, %v541
    %v548 = vadd.f32 %v508, %v542
    %v549 = vadd.f32 %v509, %v543
    %550 = vset.pattern.permute.xlu0 19
    %551 = vperm.xlu0 %550, %v49
    %v552 = vpop.permute.xlu0 %551
    %v554 = vlaneseq
    %v555 = vshrl.u32 %v554, 7
    %v556 = vsub.s32 3, %v555
    %v557 = vrot.slane %v429, %v556
    %v558 = vlaneseq
    %v559 = vshrl.u32 %v558, 7
    %v560 = vsub.s32 3, %v559
    %v561 = vrot.slane %v428, %v560
    %v562 = vlaneseq
    %v563 = vshrl.u32 %v562, 7
    %v564 = vsub.s32 3, %v563
    %v565 = vrot.slane %v427, %v564
    %v566 = vlaneseq
    %v567 = vshrl.u32 %v566, 7
    %v568 = vsub.s32 3, %v567
    %v569 = vrot.slane %v426, %v568
    %v570 = vlaneseq
    %v571 = vshrl.u32 %v570, 7
    %v572 = vsub.s32 3, %v571
    %v573 = vrot.slane %v425, %v572
    %v574 = vlaneseq
    %v575 = vshrl.u32 %v574, 7
    %v576 = vsub.s32 3, %v575
    %v577 = vrot.slane %v424, %v576
    %v578 = vmul.f32 %v552, %v557
    %v579 = vmul.f32 %v552, %v561
    %v580 = vmul.f32 %v552, %v565
    %v581 = vmul.f32 %v552, %v569
    %v582 = vmul.f32 %v552, %v573
    %v583 = vmul.f32 %v552, %v577
    %v584 = vadd.f32 %v544, %v578
    %v585 = vadd.f32 %v545, %v579
    %v586 = vadd.f32 %v546, %v580
    %v587 = vadd.f32 %v547, %v581
    %v588 = vadd.f32 %v548, %v582
    %v589 = vadd.f32 %v549, %v583
    %590 = vrot.lane.b32.xlu0 %v43, 1
    %v591 = vpop.permute.xlu0 %590
    %592 = vrot.lane.b32.xlu0 %v44, 1
    %v593 = vpop.permute.xlu0 %592
    %594 = vrot.lane.b32.xlu0 %v45, 1
    %v595 = vpop.permute.xlu0 %594
    %596 = vrot.lane.b32.xlu0 %v46, 1
    %v597 = vpop.permute.xlu0 %596
    %598 = vrot.lane.b32.xlu0 %v47, 1
    %v599 = vpop.permute.xlu0 %598
    %600 = vrot.lane.b32.xlu0 %v48, 1
    %v601 = vpop.permute.xlu0 %600
    %vm602 = vcmp.lt.s32.totalorder %v63, 1
    %v603 = vsel %vm602, %v599, %v601
    %v604 = vsel %vm602, %v597, %v599
    %v605 = vsel %vm602, %v595, %v597
    %v606 = vsel %vm602, %v593, %v595
    %v607 = vsel %vm602, %v591, %v593
    %v608 = vsel %vm602, %v601, %v591
    %609 = vset.pattern.permute.xlu0 24
    %610 = vperm.xlu0 %609, %v49
    %v611 = vpop.permute.xlu0 %610
    %v613 = vlaneseq
    %v614 = vshrl.u32 %v613, 7
    %v615 = vsub.s32 0, %v614
    %v616 = vrot.slane %v608, %v615
    %v617 = vlaneseq
    %v618 = vshrl.u32 %v617, 7
    %v619 = vsub.s32 0, %v618
    %v620 = vrot.slane %v607, %v619
    %v621 = vlaneseq
    %v622 = vshrl.u32 %v621, 7
    %v623 = vsub.s32 0, %v622
    %v624 = vrot.slane %v606, %v623
    %v625 = vlaneseq
    %v626 = vshrl.u32 %v625, 7
    %v627 = vsub.s32 0, %v626
    %v628 = vrot.slane %v605, %v627
    %v629 = vlaneseq
    %v630 = vshrl.u32 %v629, 7
    %v631 = vsub.s32 0, %v630
    %v632 = vrot.slane %v604, %v631
    %v633 = vlaneseq
    %v634 = vshrl.u32 %v633, 7
    %v635 = vsub.s32 0, %v634
    %v636 = vrot.slane %v603, %v635
    %v637 = vmul.f32 %v611, %v616
    %v638 = vmul.f32 %v611, %v620
    %v639 = vmul.f32 %v611, %v624
    %v640 = vmul.f32 %v611, %v628
    %v641 = vmul.f32 %v611, %v632
    %v642 = vmul.f32 %v611, %v636
    %v643 = vadd.f32 %v584, %v637
    %v644 = vadd.f32 %v585, %v638
    %v645 = vadd.f32 %v586, %v639
    %v646 = vadd.f32 %v587, %v640
    %v647 = vadd.f32 %v588, %v641
    %v648 = vadd.f32 %v589, %v642
    %649 = vset.pattern.permute.xlu0 25
    %650 = vperm.xlu0 %649, %v49
    %v651 = vpop.permute.xlu0 %650
    %v653 = vlaneseq
    %v654 = vshrl.u32 %v653, 7
    %v655 = vsub.s32 1, %v654
    %v656 = vrot.slane %v608, %v655
    %v657 = vlaneseq
    %v658 = vshrl.u32 %v657, 7
    %v659 = vsub.s32 1, %v658
    %v660 = vrot.slane %v607, %v659
    %v661 = vlaneseq
    %v662 = vshrl.u32 %v661, 7
    %v663 = vsub.s32 1, %v662
    %v664 = vrot.slane %v606, %v663
    %v665 = vlaneseq
    %v666 = vshrl.u32 %v665, 7
    %v667 = vsub.s32 1, %v666
    %v668 = vrot.slane %v605, %v667
    %v669 = vlaneseq
    %v670 = vshrl.u32 %v669, 7
    %v671 = vsub.s32 1, %v670
    %v672 = vrot.slane %v604, %v671
    %v673 = vlaneseq
    %v674 = vshrl.u32 %v673, 7
    %v675 = vsub.s32 1, %v674
    %v676 = vrot.slane %v603, %v675
    %v677 = vmul.f32 %v651, %v656
    %v678 = vmul.f32 %v651, %v660
    %v679 = vmul.f32 %v651, %v664
    %v680 = vmul.f32 %v651, %v668
    %v681 = vmul.f32 %v651, %v672
    %v682 = vmul.f32 %v651, %v676
    %v683 = vadd.f32 %v643, %v677
    %v684 = vadd.f32 %v644, %v678
    %v685 = vadd.f32 %v645, %v679
    %v686 = vadd.f32 %v646, %v680
    %v687 = vadd.f32 %v647, %v681
    %v688 = vadd.f32 %v648, %v682
    %689 = vset.pattern.permute.xlu0 26
    %690 = vperm.xlu0 %689, %v49
    %v691 = vpop.permute.xlu0 %690
    %v693 = vlaneseq
    %v694 = vshrl.u32 %v693, 7
    %v695 = vsub.s32 2, %v694
    %v696 = vrot.slane %v608, %v695
    %v697 = vlaneseq
    %v698 = vshrl.u32 %v697, 7
    %v699 = vsub.s32 2, %v698
    %v700 = vrot.slane %v607, %v699
    %v701 = vlaneseq
    %v702 = vshrl.u32 %v701, 7
    %v703 = vsub.s32 2, %v702
    %v704 = vrot.slane %v606, %v703
    %v705 = vlaneseq
    %v706 = vshrl.u32 %v705, 7
    %v707 = vsub.s32 2, %v706
    %v708 = vrot.slane %v605, %v707
    %v709 = vlaneseq
    %v710 = vshrl.u32 %v709, 7
    %v711 = vsub.s32 2, %v710
    %v712 = vrot.slane %v604, %v711
    %v713 = vlaneseq
    %v714 = vshrl.u32 %v713, 7
    %v715 = vsub.s32 2, %v714
    %v716 = vrot.slane %v603, %v715
    %v717 = vmul.f32 %v691, %v696
    %v718 = vmul.f32 %v691, %v700
    %v719 = vmul.f32 %v691, %v704
    %v720 = vmul.f32 %v691, %v708
    %v721 = vmul.f32 %v691, %v712
    %v722 = vmul.f32 %v691, %v716
    %v723 = vadd.f32 %v683, %v717
    %v724 = vadd.f32 %v684, %v718
    %v725 = vadd.f32 %v685, %v719
    %v726 = vadd.f32 %v686, %v720
    %v727 = vadd.f32 %v687, %v721
    %v728 = vadd.f32 %v688, %v722
    %729 = vset.pattern.permute.xlu0 27
    %730 = vperm.xlu0 %729, %v49
    %v731 = vpop.permute.xlu0 %730
    %v733 = vlaneseq
    %v734 = vshrl.u32 %v733, 7
    %v735 = vsub.s32 3, %v734
    %v736 = vrot.slane %v608, %v735
    %v737 = vlaneseq
    %v738 = vshrl.u32 %v737, 7
    %v739 = vsub.s32 3, %v738
    %v740 = vrot.slane %v607, %v739
    %v741 = vlaneseq
    %v742 = vshrl.u32 %v741, 7
    %v743 = vsub.s32 3, %v742
    %v744 = vrot.slane %v606, %v743
    %v745 = vlaneseq
    %v746 = vshrl.u32 %v745, 7
    %v747 = vsub.s32 3, %v746
    %v748 = vrot.slane %v605, %v747
    %v749 = vlaneseq
    %v750 = vshrl.u32 %v749, 7
    %v751 = vsub.s32 3, %v750
    %v752 = vrot.slane %v604, %v751
    %v753 = vlaneseq
    %v754 = vshrl.u32 %v753, 7
    %v755 = vsub.s32 3, %v754
    %v756 = vrot.slane %v603, %v755
    %v757 = vmul.f32 %v731, %v736
    %v758 = vmul.f32 %v731, %v740
    %v759 = vmul.f32 %v731, %v744
    %v760 = vmul.f32 %v731, %v748
    %v761 = vmul.f32 %v731, %v752
    %v762 = vmul.f32 %v731, %v756
    %v763 = vadd.f32 %v723, %v757
    %v764 = vadd.f32 %v724, %v758
    %v765 = vadd.f32 %v725, %v759
    %v766 = vadd.f32 %v726, %v760
    %v767 = vadd.f32 %v727, %v761
    %v768 = vadd.f32 %v728, %v762
    %769 = vset.pattern.permute.xlu0 32
    %770 = vperm.xlu0 %769, %v49
    %v771 = vpop.permute.xlu0 %770
    %v773 = vlaneseq
    %v774 = vshrl.u32 %v773, 7
    %v775 = vsub.s32 0, %v774
    %v776 = vrot.slane %v43, %v775
    %v777 = vlaneseq
    %v778 = vshrl.u32 %v777, 7
    %v779 = vsub.s32 0, %v778
    %v780 = vrot.slane %v44, %v779
    %v781 = vlaneseq
    %v782 = vshrl.u32 %v781, 7
    %v783 = vsub.s32 0, %v782
    %v784 = vrot.slane %v45, %v783
    %v785 = vlaneseq
    %v786 = vshrl.u32 %v785, 7
    %v787 = vsub.s32 0, %v786
    %v788 = vrot.slane %v46, %v787
    %v789 = vlaneseq
    %v790 = vshrl.u32 %v789, 7
    %v791 = vsub.s32 0, %v790
    %v792 = vrot.slane %v47, %v791
    %v793 = vlaneseq
    %v794 = vshrl.u32 %v793, 7
    %v795 = vsub.s32 0, %v794
    %v796 = vrot.slane %v48, %v795
    %v797 = vmul.f32 %v771, %v776
    %v798 = vmul.f32 %v771, %v780
    %v799 = vmul.f32 %v771, %v784
    %v800 = vmul.f32 %v771, %v788
    %v801 = vmul.f32 %v771, %v792
    %v802 = vmul.f32 %v771, %v796
    %v803 = vadd.f32 %v763, %v797
    %v804 = vadd.f32 %v764, %v798
    %v805 = vadd.f32 %v765, %v799
    %v806 = vadd.f32 %v766, %v800
    %v807 = vadd.f32 %v767, %v801
    %v808 = vadd.f32 %v768, %v802
    %809 = vset.pattern.permute.xlu0 33
    %810 = vperm.xlu0 %809, %v49
    %v811 = vpop.permute.xlu0 %810
    %v813 = vlaneseq
    %v814 = vshrl.u32 %v813, 7
    %v815 = vsub.s32 1, %v814
    %v816 = vrot.slane %v43, %v815
    %v817 = vlaneseq
    %v818 = vshrl.u32 %v817, 7
    %v819 = vsub.s32 1, %v818
    %v820 = vrot.slane %v44, %v819
    %v821 = vlaneseq
    %v822 = vshrl.u32 %v821, 7
    %v823 = vsub.s32 1, %v822
    %v824 = vrot.slane %v45, %v823
    %v825 = vlaneseq
    %v826 = vshrl.u32 %v825, 7
    %v827 = vsub.s32 1, %v826
    %v828 = vrot.slane %v46, %v827
    %v829 = vlaneseq
    %v830 = vshrl.u32 %v829, 7
    %v831 = vsub.s32 1, %v830
    %v832 = vrot.slane %v47, %v831
    %v833 = vlaneseq
    %v834 = vshrl.u32 %v833, 7
    %v835 = vsub.s32 1, %v834
    %v836 = vrot.slane %v48, %v835
    %v837 = vmul.f32 %v811, %v816
    %v838 = vmul.f32 %v811, %v820
    %v839 = vmul.f32 %v811, %v824
    %v840 = vmul.f32 %v811, %v828
    %v841 = vmul.f32 %v811, %v832
    %v842 = vmul.f32 %v811, %v836
    %v843 = vadd.f32 %v803, %v837
    %v844 = vadd.f32 %v804, %v838
    %v845 = vadd.f32 %v805, %v839
    %v846 = vadd.f32 %v806, %v840
    %v847 = vadd.f32 %v807, %v841
    %v848 = vadd.f32 %v808, %v842
    %849 = vset.pattern.permute.xlu0 34
    %850 = vperm.xlu0 %849, %v49
    %v851 = vpop.permute.xlu0 %850
    %v853 = vlaneseq
    %v854 = vshrl.u32 %v853, 7
    %v855 = vsub.s32 2, %v854
    %v856 = vrot.slane %v43, %v855
    %v857 = vlaneseq
    %v858 = vshrl.u32 %v857, 7
    %v859 = vsub.s32 2, %v858
    %v860 = vrot.slane %v44, %v859
    %v861 = vlaneseq
    %v862 = vshrl.u32 %v861, 7
    %v863 = vsub.s32 2, %v862
    %v864 = vrot.slane %v45, %v863
    %v865 = vlaneseq
    %v866 = vshrl.u32 %v865, 7
    %v867 = vsub.s32 2, %v866
    %v868 = vrot.slane %v46, %v867
    %v869 = vlaneseq
    %v870 = vshrl.u32 %v869, 7
    %v871 = vsub.s32 2, %v870
    %v872 = vrot.slane %v47, %v871
    %v873 = vlaneseq
    %v874 = vshrl.u32 %v873, 7
    %v875 = vsub.s32 2, %v874
    %v876 = vrot.slane %v48, %v875
    %v877 = vmul.f32 %v851, %v856
    %v878 = vmul.f32 %v851, %v860
    %v879 = vmul.f32 %v851, %v864
    %v880 = vmul.f32 %v851, %v868
    %v881 = vmul.f32 %v851, %v872
    %v882 = vmul.f32 %v851, %v876
    %v883 = vadd.f32 %v843, %v877
    %v884 = vadd.f32 %v844, %v878
    %v885 = vadd.f32 %v845, %v879
    %v886 = vadd.f32 %v846, %v880
    %v887 = vadd.f32 %v847, %v881
    %v888 = vadd.f32 %v848, %v882
    %889 = vset.pattern.permute.xlu0 35
    %890 = vperm.xlu0 %889, %v49
    %v891 = vpop.permute.xlu0 %890
    %v893 = vlaneseq
    %v894 = vshrl.u32 %v893, 7
    %v895 = vsub.s32 3, %v894
    %v896 = vrot.slane %v43, %v895
    %v897 = vlaneseq
    %v898 = vshrl.u32 %v897, 7
    %v899 = vsub.s32 3, %v898
    %v900 = vrot.slane %v44, %v899
    %v901 = vlaneseq
    %v902 = vshrl.u32 %v901, 7
    %v903 = vsub.s32 3, %v902
    %v904 = vrot.slane %v45, %v903
    %v905 = vlaneseq
    %v906 = vshrl.u32 %v905, 7
    %v907 = vsub.s32 3, %v906
    %v908 = vrot.slane %v46, %v907
    %v909 = vlaneseq
    %v910 = vshrl.u32 %v909, 7
    %v911 = vsub.s32 3, %v910
    %v912 = vrot.slane %v47, %v911
    %v913 = vlaneseq
    %v914 = vshrl.u32 %v913, 7
    %v915 = vsub.s32 3, %v914
    %v916 = vrot.slane %v48, %v915
    %v917 = vmul.f32 %v891, %v896
    %v918 = vmul.f32 %v891, %v900
    %v919 = vmul.f32 %v891, %v904
    %v920 = vmul.f32 %v891, %v908
    %v921 = vmul.f32 %v891, %v912
    %v922 = vmul.f32 %v891, %v916
    %v923 = vadd.f32 %v883, %v917
    %v924 = vadd.f32 %v884, %v918
    %v925 = vadd.f32 %v885, %v919
    %v926 = vadd.f32 %v886, %v920
    %v927 = vadd.f32 %v887, %v921
    %v928 = vadd.f32 %v888, %v922
    %929 = vrot.lane.b32.xlu0 %v43, 127
    %v930 = vpop.permute.xlu0 %929
    %931 = vrot.lane.b32.xlu0 %v44, 127
    %v932 = vpop.permute.xlu0 %931
    %933 = vrot.lane.b32.xlu0 %v45, 127
    %v934 = vpop.permute.xlu0 %933
    %935 = vrot.lane.b32.xlu0 %v46, 127
    %v936 = vpop.permute.xlu0 %935
    %937 = vrot.lane.b32.xlu0 %v47, 127
    %v938 = vpop.permute.xlu0 %937
    %939 = vrot.lane.b32.xlu0 %v48, 127
    %v940 = vpop.permute.xlu0 %939
    %vm941 = vcmp.lt.s32.totalorder %v63, 127
    %v942 = vsel %vm941, %v938, %v940
    %v943 = vsel %vm941, %v936, %v938
    %v944 = vsel %vm941, %v934, %v936
    %v945 = vsel %vm941, %v932, %v934
    %v946 = vsel %vm941, %v930, %v932
    %v947 = vsel %vm941, %v940, %v930
    %948 = vset.pattern.permute.xlu0 40
    %949 = vperm.xlu0 %948, %v49
    %v950 = vpop.permute.xlu0 %949
    %v952 = vlaneseq
    %v953 = vshrl.u32 %v952, 7
    %v954 = vsub.s32 0, %v953
    %v955 = vrot.slane %v946, %v954
    %v956 = vlaneseq
    %v957 = vshrl.u32 %v956, 7
    %v958 = vsub.s32 0, %v957
    %v959 = vrot.slane %v945, %v958
    %v960 = vlaneseq
    %v961 = vshrl.u32 %v960, 7
    %v962 = vsub.s32 0, %v961
    %v963 = vrot.slane %v944, %v962
    %v964 = vlaneseq
    %v965 = vshrl.u32 %v964, 7
    %v966 = vsub.s32 0, %v965
    %v967 = vrot.slane %v943, %v966
    %v968 = vlaneseq
    %v969 = vshrl.u32 %v968, 7
    %v970 = vsub.s32 0, %v969
    %v971 = vrot.slane %v942, %v970
    %v972 = vlaneseq
    %v973 = vshrl.u32 %v972, 7
    %v974 = vsub.s32 0, %v973
    %v975 = vrot.slane %v947, %v974
    %v976 = vmul.f32 %v950, %v955
    %v977 = vmul.f32 %v950, %v959
    %v978 = vmul.f32 %v950, %v963
    %v979 = vmul.f32 %v950, %v967
    %v980 = vmul.f32 %v950, %v971
    %v981 = vmul.f32 %v950, %v975
    %v982 = vadd.f32 %v923, %v976
    %v983 = vadd.f32 %v924, %v977
    %v984 = vadd.f32 %v925, %v978
    %v985 = vadd.f32 %v926, %v979
    %v986 = vadd.f32 %v927, %v980
    %v987 = vadd.f32 %v928, %v981
    %988 = vset.pattern.permute.xlu0 41
    %989 = vperm.xlu0 %988, %v49
    %v990 = vpop.permute.xlu0 %989
    %v992 = vlaneseq
    %v993 = vshrl.u32 %v992, 7
    %v994 = vsub.s32 1, %v993
    %v995 = vrot.slane %v946, %v994
    %v996 = vlaneseq
    %v997 = vshrl.u32 %v996, 7
    %v998 = vsub.s32 1, %v997
    %v999 = vrot.slane %v945, %v998
    %v1000 = vlaneseq
    %v1001 = vshrl.u32 %v1000, 7
    %v1002 = vsub.s32 1, %v1001
    %v1003 = vrot.slane %v944, %v1002
    %v1004 = vlaneseq
    %v1005 = vshrl.u32 %v1004, 7
    %v1006 = vsub.s32 1, %v1005
    %v1007 = vrot.slane %v943, %v1006
    %v1008 = vlaneseq
    %v1009 = vshrl.u32 %v1008, 7
    %v1010 = vsub.s32 1, %v1009
    %v1011 = vrot.slane %v942, %v1010
    %v1012 = vlaneseq
    %v1013 = vshrl.u32 %v1012, 7
    %v1014 = vsub.s32 1, %v1013
    %v1015 = vrot.slane %v947, %v1014
    %v1016 = vmul.f32 %v990, %v995
    %v1017 = vmul.f32 %v990, %v999
    %v1018 = vmul.f32 %v990, %v1003
    %v1019 = vmul.f32 %v990, %v1007
    %v1020 = vmul.f32 %v990, %v1011
    %v1021 = vmul.f32 %v990, %v1015
    %v1022 = vadd.f32 %v982, %v1016
    %v1023 = vadd.f32 %v983, %v1017
    %v1024 = vadd.f32 %v984, %v1018
    %v1025 = vadd.f32 %v985, %v1019
    %v1026 = vadd.f32 %v986, %v1020
    %v1027 = vadd.f32 %v987, %v1021
    %1028 = vset.pattern.permute.xlu0 42
    %1029 = vperm.xlu0 %1028, %v49
    %v1030 = vpop.permute.xlu0 %1029
    %v1032 = vlaneseq
    %v1033 = vshrl.u32 %v1032, 7
    %v1034 = vsub.s32 2, %v1033
    %v1035 = vrot.slane %v946, %v1034
    %v1036 = vlaneseq
    %v1037 = vshrl.u32 %v1036, 7
    %v1038 = vsub.s32 2, %v1037
    %v1039 = vrot.slane %v945, %v1038
    %v1040 = vlaneseq
    %v1041 = vshrl.u32 %v1040, 7
    %v1042 = vsub.s32 2, %v1041
    %v1043 = vrot.slane %v944, %v1042
    %v1044 = vlaneseq
    %v1045 = vshrl.u32 %v1044, 7
    %v1046 = vsub.s32 2, %v1045
    %v1047 = vrot.slane %v943, %v1046
    %v1048 = vlaneseq
    %v1049 = vshrl.u32 %v1048, 7
    %v1050 = vsub.s32 2, %v1049
    %v1051 = vrot.slane %v942, %v1050
    %v1052 = vlaneseq
    %v1053 = vshrl.u32 %v1052, 7
    %v1054 = vsub.s32 2, %v1053
    %v1055 = vrot.slane %v947, %v1054
    %v1056 = vmul.f32 %v1030, %v1035
    %v1057 = vmul.f32 %v1030, %v1039
    %v1058 = vmul.f32 %v1030, %v1043
    %v1059 = vmul.f32 %v1030, %v1047
    %v1060 = vmul.f32 %v1030, %v1051
    %v1061 = vmul.f32 %v1030, %v1055
    %v1062 = vadd.f32 %v1022, %v1056
    %v1063 = vadd.f32 %v1023, %v1057
    %v1064 = vadd.f32 %v1024, %v1058
    %v1065 = vadd.f32 %v1025, %v1059
    %v1066 = vadd.f32 %v1026, %v1060
    %v1067 = vadd.f32 %v1027, %v1061
    %1068 = vset.pattern.permute.xlu0 43
    %1069 = vperm.xlu0 %1068, %v49
    %v1070 = vpop.permute.xlu0 %1069
    %v1072 = vlaneseq
    %v1073 = vshrl.u32 %v1072, 7
    %v1074 = vsub.s32 3, %v1073
    %v1075 = vrot.slane %v946, %v1074
    %v1076 = vlaneseq
    %v1077 = vshrl.u32 %v1076, 7
    %v1078 = vsub.s32 3, %v1077
    %v1079 = vrot.slane %v945, %v1078
    %v1080 = vlaneseq
    %v1081 = vshrl.u32 %v1080, 7
    %v1082 = vsub.s32 3, %v1081
    %v1083 = vrot.slane %v944, %v1082
    %v1084 = vlaneseq
    %v1085 = vshrl.u32 %v1084, 7
    %v1086 = vsub.s32 3, %v1085
    %v1087 = vrot.slane %v943, %v1086
    %v1088 = vlaneseq
    %v1089 = vshrl.u32 %v1088, 7
    %v1090 = vsub.s32 3, %v1089
    %v1091 = vrot.slane %v942, %v1090
    %v1092 = vlaneseq
    %v1093 = vshrl.u32 %v1092, 7
    %v1094 = vsub.s32 3, %v1093
    %v1095 = vrot.slane %v947, %v1094
    %v1096 = vmul.f32 %v1070, %v1075
    %v1097 = vmul.f32 %v1070, %v1079
    %v1098 = vmul.f32 %v1070, %v1083
    %v1099 = vmul.f32 %v1070, %v1087
    %v1100 = vmul.f32 %v1070, %v1091
    %v1101 = vmul.f32 %v1070, %v1095
    %v1102 = vadd.f32 %v1062, %v1096
    %v1103 = vadd.f32 %v1063, %v1097
    %v1104 = vadd.f32 %v1064, %v1098
    %v1105 = vadd.f32 %v1065, %v1099
    %v1106 = vadd.f32 %v1066, %v1100
    %v1107 = vadd.f32 %v1067, %v1101
    %1108 = vrot.lane.b32.xlu0 %v43, 111
    %v1109 = vpop.permute.xlu0 %1108
    %1110 = vrot.lane.b32.xlu0 %v44, 111
    %v1111 = vpop.permute.xlu0 %1110
    %1112 = vrot.lane.b32.xlu0 %v45, 111
    %v1113 = vpop.permute.xlu0 %1112
    %1114 = vrot.lane.b32.xlu0 %v46, 111
    %v1115 = vpop.permute.xlu0 %1114
    %1116 = vrot.lane.b32.xlu0 %v47, 111
    %v1117 = vpop.permute.xlu0 %1116
    %1118 = vrot.lane.b32.xlu0 %v48, 111
    %v1119 = vpop.permute.xlu0 %1118
    %vm1120 = vcmp.lt.s32.totalorder %v63, 111
    %v1121 = vsel %vm1120, %v1117, %v1119
    %v1122 = vsel %vm1120, %v1115, %v1117
    %v1123 = vsel %vm1120, %v1113, %v1115
    %v1124 = vsel %vm1120, %v1111, %v1113
    %v1125 = vsel %vm1120, %v1109, %v1111
    %v1126 = vsel %vm1120, %v1119, %v1109
    %1127 = vset.pattern.permute.xlu0 48
    %1128 = vperm.xlu0 %1127, %v49
    %v1129 = vpop.permute.xlu0 %1128
    %v1131 = vlaneseq
    %v1132 = vshrl.u32 %v1131, 7
    %v1133 = vsub.s32 0, %v1132
    %v1134 = vrot.slane %v1125, %v1133
    %v1135 = vlaneseq
    %v1136 = vshrl.u32 %v1135, 7
    %v1137 = vsub.s32 0, %v1136
    %v1138 = vrot.slane %v1124, %v1137
    %v1139 = vlaneseq
    %v1140 = vshrl.u32 %v1139, 7
    %v1141 = vsub.s32 0, %v1140
    %v1142 = vrot.slane %v1123, %v1141
    %v1143 = vlaneseq
    %v1144 = vshrl.u32 %v1143, 7
    %v1145 = vsub.s32 0, %v1144
    %v1146 = vrot.slane %v1122, %v1145
    %v1147 = vlaneseq
    %v1148 = vshrl.u32 %v1147, 7
    %v1149 = vsub.s32 0, %v1148
    %v1150 = vrot.slane %v1121, %v1149
    %v1151 = vlaneseq
    %v1152 = vshrl.u32 %v1151, 7
    %v1153 = vsub.s32 0, %v1152
    %v1154 = vrot.slane %v1126, %v1153
    %v1155 = vmul.f32 %v1129, %v1134
    %v1156 = vmul.f32 %v1129, %v1138
    %v1157 = vmul.f32 %v1129, %v1142
    %v1158 = vmul.f32 %v1129, %v1146
    %v1159 = vmul.f32 %v1129, %v1150
    %v1160 = vmul.f32 %v1129, %v1154
    %v1161 = vadd.f32 %v1102, %v1155
    %v1162 = vadd.f32 %v1103, %v1156
    %v1163 = vadd.f32 %v1104, %v1157
    %v1164 = vadd.f32 %v1105, %v1158
    %v1165 = vadd.f32 %v1106, %v1159
    %v1166 = vadd.f32 %v1107, %v1160
    %1167 = vset.pattern.permute.xlu0 49
    %1168 = vperm.xlu0 %1167, %v49
    %v1169 = vpop.permute.xlu0 %1168
    %v1171 = vlaneseq
    %v1172 = vshrl.u32 %v1171, 7
    %v1173 = vsub.s32 1, %v1172
    %v1174 = vrot.slane %v1125, %v1173
    %v1175 = vlaneseq
    %v1176 = vshrl.u32 %v1175, 7
    %v1177 = vsub.s32 1, %v1176
    %v1178 = vrot.slane %v1124, %v1177
    %v1179 = vlaneseq
    %v1180 = vshrl.u32 %v1179, 7
    %v1181 = vsub.s32 1, %v1180
    %v1182 = vrot.slane %v1123, %v1181
    %v1183 = vlaneseq
    %v1184 = vshrl.u32 %v1183, 7
    %v1185 = vsub.s32 1, %v1184
    %v1186 = vrot.slane %v1122, %v1185
    %v1187 = vlaneseq
    %v1188 = vshrl.u32 %v1187, 7
    %v1189 = vsub.s32 1, %v1188
    %v1190 = vrot.slane %v1121, %v1189
    %v1191 = vlaneseq
    %v1192 = vshrl.u32 %v1191, 7
    %v1193 = vsub.s32 1, %v1192
    %v1194 = vrot.slane %v1126, %v1193
    %v1195 = vmul.f32 %v1169, %v1174
    %v1196 = vmul.f32 %v1169, %v1178
    %v1197 = vmul.f32 %v1169, %v1182
    %v1198 = vmul.f32 %v1169, %v1186
    %v1199 = vmul.f32 %v1169, %v1190
    %v1200 = vmul.f32 %v1169, %v1194
    %v1201 = vadd.f32 %v1161, %v1195
    %v1202 = vadd.f32 %v1162, %v1196
    %v1203 = vadd.f32 %v1163, %v1197
    %v1204 = vadd.f32 %v1164, %v1198
    %v1205 = vadd.f32 %v1165, %v1199
    %v1206 = vadd.f32 %v1166, %v1200
    %1207 = vset.pattern.permute.xlu0 50
    %1208 = vperm.xlu0 %1207, %v49
    %v1209 = vpop.permute.xlu0 %1208
    %v1211 = vlaneseq
    %v1212 = vshrl.u32 %v1211, 7
    %v1213 = vsub.s32 2, %v1212
    %v1214 = vrot.slane %v1125, %v1213
    %v1215 = vlaneseq
    %v1216 = vshrl.u32 %v1215, 7
    %v1217 = vsub.s32 2, %v1216
    %v1218 = vrot.slane %v1124, %v1217
    %v1219 = vlaneseq
    %v1220 = vshrl.u32 %v1219, 7
    %v1221 = vsub.s32 2, %v1220
    %v1222 = vrot.slane %v1123, %v1221
    %v1223 = vlaneseq
    %v1224 = vshrl.u32 %v1223, 7
    %v1225 = vsub.s32 2, %v1224
    %v1226 = vrot.slane %v1122, %v1225
    %v1227 = vlaneseq
    %v1228 = vshrl.u32 %v1227, 7
    %v1229 = vsub.s32 2, %v1228
    %v1230 = vrot.slane %v1121, %v1229
    %v1231 = vlaneseq
    %v1232 = vshrl.u32 %v1231, 7
    %v1233 = vsub.s32 2, %v1232
    %v1234 = vrot.slane %v1126, %v1233
    %v1235 = vmul.f32 %v1209, %v1214
    %v1236 = vmul.f32 %v1209, %v1218
    %v1237 = vmul.f32 %v1209, %v1222
    %v1238 = vmul.f32 %v1209, %v1226
    %v1239 = vmul.f32 %v1209, %v1230
    %v1240 = vmul.f32 %v1209, %v1234
    %v1241 = vadd.f32 %v1201, %v1235
    %v1242 = vadd.f32 %v1202, %v1236
    %v1243 = vadd.f32 %v1203, %v1237
    %v1244 = vadd.f32 %v1204, %v1238
    %v1245 = vadd.f32 %v1205, %v1239
    %v1246 = vadd.f32 %v1206, %v1240
    %1247 = vset.pattern.permute.xlu0 51
    %1248 = vperm.xlu0 %1247, %v49
    %v1249 = vpop.permute.xlu0 %1248
    %v1251 = vlaneseq
    %v1252 = vshrl.u32 %v1251, 7
    %v1253 = vsub.s32 3, %v1252
    %v1254 = vrot.slane %v1125, %v1253
    %v1255 = vlaneseq
    %v1256 = vshrl.u32 %v1255, 7
    %v1257 = vsub.s32 3, %v1256
    %v1258 = vrot.slane %v1124, %v1257
    %v1259 = vlaneseq
    %v1260 = vshrl.u32 %v1259, 7
    %v1261 = vsub.s32 3, %v1260
    %v1262 = vrot.slane %v1123, %v1261
    %v1263 = vlaneseq
    %v1264 = vshrl.u32 %v1263, 7
    %v1265 = vsub.s32 3, %v1264
    %v1266 = vrot.slane %v1122, %v1265
    %v1267 = vlaneseq
    %v1268 = vshrl.u32 %v1267, 7
    %v1269 = vsub.s32 3, %v1268
    %v1270 = vrot.slane %v1121, %v1269
    %v1271 = vlaneseq
    %v1272 = vshrl.u32 %v1271, 7
    %v1273 = vsub.s32 3, %v1272
    %v1274 = vrot.slane %v1126, %v1273
    %v1275 = vmul.f32 %v1249, %v1254
    %v1276 = vmul.f32 %v1249, %v1258
    %v1277 = vmul.f32 %v1249, %v1262
    %v1278 = vmul.f32 %v1249, %v1266
    %v1279 = vmul.f32 %v1249, %v1270
    %v1280 = vmul.f32 %v1249, %v1274
    %v1281 = vadd.f32 %v1241, %v1275
    %v1282 = vadd.f32 %v1242, %v1276
    %v1283 = vadd.f32 %v1243, %v1277
    %v1284 = vadd.f32 %v1244, %v1278
    %v1285 = vadd.f32 %v1245, %v1279
    %v1286 = vadd.f32 %v1246, %v1280
    %1287 = vrot.lane.b32.xlu0 %v43, 110
    %v1288 = vpop.permute.xlu0 %1287
    %1289 = vrot.lane.b32.xlu0 %v44, 110
    %v1290 = vpop.permute.xlu0 %1289
    %1291 = vrot.lane.b32.xlu0 %v45, 110
    %v1292 = vpop.permute.xlu0 %1291
    %1293 = vrot.lane.b32.xlu0 %v46, 110
    %v1294 = vpop.permute.xlu0 %1293
    %1295 = vrot.lane.b32.xlu0 %v47, 110
    %v1296 = vpop.permute.xlu0 %1295
    %1297 = vrot.lane.b32.xlu0 %v48, 110
    %v1298 = vpop.permute.xlu0 %1297
    %vm1299 = vcmp.lt.s32.totalorder %v63, 110
    %v1300 = vsel %vm1299, %v1296, %v1298
    %v1301 = vsel %vm1299, %v1294, %v1296
    %v1302 = vsel %vm1299, %v1292, %v1294
    %v1303 = vsel %vm1299, %v1290, %v1292
    %v1304 = vsel %vm1299, %v1288, %v1290
    %v1305 = vsel %vm1299, %v1298, %v1288
    %1306 = vset.pattern.permute.xlu0 56
    %1307 = vperm.xlu0 %1306, %v49
    %v1308 = vpop.permute.xlu0 %1307
    %v1310 = vlaneseq
    %v1311 = vshrl.u32 %v1310, 7
    %v1312 = vsub.s32 0, %v1311
    %v1313 = vrot.slane %v1304, %v1312
    %v1314 = vlaneseq
    %v1315 = vshrl.u32 %v1314, 7
    %v1316 = vsub.s32 0, %v1315
    %v1317 = vrot.slane %v1303, %v1316
    %v1318 = vlaneseq
    %v1319 = vshrl.u32 %v1318, 7
    %v1320 = vsub.s32 0, %v1319
    %v1321 = vrot.slane %v1302, %v1320
    %v1322 = vlaneseq
    %v1323 = vshrl.u32 %v1322, 7
    %v1324 = vsub.s32 0, %v1323
    %v1325 = vrot.slane %v1301, %v1324
    %v1326 = vlaneseq
    %v1327 = vshrl.u32 %v1326, 7
    %v1328 = vsub.s32 0, %v1327
    %v1329 = vrot.slane %v1300, %v1328
    %v1330 = vlaneseq
    %v1331 = vshrl.u32 %v1330, 7
    %v1332 = vsub.s32 0, %v1331
    %v1333 = vrot.slane %v1305, %v1332
    %v1334 = vmul.f32 %v1308, %v1313
    %v1335 = vmul.f32 %v1308, %v1317
    %v1336 = vmul.f32 %v1308, %v1321
    %v1337 = vmul.f32 %v1308, %v1325
    %v1338 = vmul.f32 %v1308, %v1329
    %v1339 = vmul.f32 %v1308, %v1333
    %v1340 = vadd.f32 %v1281, %v1334
    %v1341 = vadd.f32 %v1282, %v1335
    %v1342 = vadd.f32 %v1283, %v1336
    %v1343 = vadd.f32 %v1284, %v1337
    %v1344 = vadd.f32 %v1285, %v1338
    %v1345 = vadd.f32 %v1286, %v1339
    %1346 = vset.pattern.permute.xlu0 57
    %1347 = vperm.xlu0 %1346, %v49
    %v1348 = vpop.permute.xlu0 %1347
    %v1350 = vlaneseq
    %v1351 = vshrl.u32 %v1350, 7
    %v1352 = vsub.s32 1, %v1351
    %v1353 = vrot.slane %v1304, %v1352
    %v1354 = vlaneseq
    %v1355 = vshrl.u32 %v1354, 7
    %v1356 = vsub.s32 1, %v1355
    %v1357 = vrot.slane %v1303, %v1356
    %v1358 = vlaneseq
    %v1359 = vshrl.u32 %v1358, 7
    %v1360 = vsub.s32 1, %v1359
    %v1361 = vrot.slane %v1302, %v1360
    %v1362 = vlaneseq
    %v1363 = vshrl.u32 %v1362, 7
    %v1364 = vsub.s32 1, %v1363
    %v1365 = vrot.slane %v1301, %v1364
    %v1366 = vlaneseq
    %v1367 = vshrl.u32 %v1366, 7
    %v1368 = vsub.s32 1, %v1367
    %v1369 = vrot.slane %v1300, %v1368
    %v1370 = vlaneseq
    %v1371 = vshrl.u32 %v1370, 7
    %v1372 = vsub.s32 1, %v1371
    %v1373 = vrot.slane %v1305, %v1372
    %v1374 = vmul.f32 %v1348, %v1353
    %v1375 = vmul.f32 %v1348, %v1357
    %v1376 = vmul.f32 %v1348, %v1361
    %v1377 = vmul.f32 %v1348, %v1365
    %v1378 = vmul.f32 %v1348, %v1369
    %v1379 = vmul.f32 %v1348, %v1373
    %v1380 = vadd.f32 %v1340, %v1374
    %v1381 = vadd.f32 %v1341, %v1375
    %v1382 = vadd.f32 %v1342, %v1376
    %v1383 = vadd.f32 %v1343, %v1377
    %v1384 = vadd.f32 %v1344, %v1378
    %v1385 = vadd.f32 %v1345, %v1379
    %1386 = vset.pattern.permute.xlu0 58
    %1387 = vperm.xlu0 %1386, %v49
    %v1388 = vpop.permute.xlu0 %1387
    %v1390 = vlaneseq
    %v1391 = vshrl.u32 %v1390, 7
    %v1392 = vsub.s32 2, %v1391
    %v1393 = vrot.slane %v1304, %v1392
    %v1394 = vlaneseq
    %v1395 = vshrl.u32 %v1394, 7
    %v1396 = vsub.s32 2, %v1395
    %v1397 = vrot.slane %v1303, %v1396
    %v1398 = vlaneseq
    %v1399 = vshrl.u32 %v1398, 7
    %v1400 = vsub.s32 2, %v1399
    %v1401 = vrot.slane %v1302, %v1400
    %v1402 = vlaneseq
    %v1403 = vshrl.u32 %v1402, 7
    %v1404 = vsub.s32 2, %v1403
    %v1405 = vrot.slane %v1301, %v1404
    %v1406 = vlaneseq
    %v1407 = vshrl.u32 %v1406, 7
    %v1408 = vsub.s32 2, %v1407
    %v1409 = vrot.slane %v1300, %v1408
    %v1410 = vlaneseq
    %v1411 = vshrl.u32 %v1410, 7
    %v1412 = vsub.s32 2, %v1411
    %v1413 = vrot.slane %v1305, %v1412
    %v1414 = vmul.f32 %v1388, %v1393
    %v1415 = vmul.f32 %v1388, %v1397
    %v1416 = vmul.f32 %v1388, %v1401
    %v1417 = vmul.f32 %v1388, %v1405
    %v1418 = vmul.f32 %v1388, %v1409
    %v1419 = vmul.f32 %v1388, %v1413
    %v1420 = vadd.f32 %v1380, %v1414
    %v1421 = vadd.f32 %v1381, %v1415
    %v1422 = vadd.f32 %v1382, %v1416
    %v1423 = vadd.f32 %v1383, %v1417
    %v1424 = vadd.f32 %v1384, %v1418
    %v1425 = vadd.f32 %v1385, %v1419
    %1426 = vset.pattern.permute.xlu0 59
    %1427 = vperm.xlu0 %1426, %v49
    %v1428 = vpop.permute.xlu0 %1427
    %v1430 = vlaneseq
    %v1431 = vshrl.u32 %v1430, 7
    %v1432 = vsub.s32 3, %v1431
    %v1433 = vrot.slane %v1304, %v1432
    %v1434 = vlaneseq
    %v1435 = vshrl.u32 %v1434, 7
    %v1436 = vsub.s32 3, %v1435
    %v1437 = vrot.slane %v1303, %v1436
    %v1438 = vlaneseq
    %v1439 = vshrl.u32 %v1438, 7
    %v1440 = vsub.s32 3, %v1439
    %v1441 = vrot.slane %v1302, %v1440
    %v1442 = vlaneseq
    %v1443 = vshrl.u32 %v1442, 7
    %v1444 = vsub.s32 3, %v1443
    %v1445 = vrot.slane %v1301, %v1444
    %v1446 = vlaneseq
    %v1447 = vshrl.u32 %v1446, 7
    %v1448 = vsub.s32 3, %v1447
    %v1449 = vrot.slane %v1300, %v1448
    %v1450 = vlaneseq
    %v1451 = vshrl.u32 %v1450, 7
    %v1452 = vsub.s32 3, %v1451
    %v1453 = vrot.slane %v1305, %v1452
    %v1454 = vmul.f32 %v1428, %v1433
    %v1455 = vmul.f32 %v1428, %v1437
    %v1456 = vmul.f32 %v1428, %v1441
    %v1457 = vmul.f32 %v1428, %v1445
    %v1458 = vmul.f32 %v1428, %v1449
    %v1459 = vmul.f32 %v1428, %v1453
    %v1460 = vadd.f32 %v1420, %v1454
    %v1461 = vadd.f32 %v1421, %v1455
    %v1462 = vadd.f32 %v1422, %v1456
    %v1463 = vadd.f32 %v1423, %v1457
    %v1464 = vadd.f32 %v1424, %v1458
    %v1465 = vadd.f32 %v1425, %v1459
    %1466 = vrot.lane.b32.xlu0 %v43, 109
    %v1467 = vpop.permute.xlu0 %1466
    %1468 = vrot.lane.b32.xlu0 %v44, 109
    %v1469 = vpop.permute.xlu0 %1468
    %1470 = vrot.lane.b32.xlu0 %v45, 109
    %v1471 = vpop.permute.xlu0 %1470
    %1472 = vrot.lane.b32.xlu0 %v46, 109
    %v1473 = vpop.permute.xlu0 %1472
    %1474 = vrot.lane.b32.xlu0 %v47, 109
    %v1475 = vpop.permute.xlu0 %1474
    %1476 = vrot.lane.b32.xlu0 %v48, 109
    %v1477 = vpop.permute.xlu0 %1476
    %vm1478 = vcmp.lt.s32.totalorder %v63, 109
    %v1479 = vsel %vm1478, %v1475, %v1477
    %v1480 = vsel %vm1478, %v1473, %v1475
    %v1481 = vsel %vm1478, %v1471, %v1473
    %v1482 = vsel %vm1478, %v1469, %v1471
    %v1483 = vsel %vm1478, %v1467, %v1469
    %v1484 = vsel %vm1478, %v1477, %v1467
    %1485 = vset.pattern.permute.xlu0 64
    %1486 = vperm.xlu0 %1485, %v49
    %v1487 = vpop.permute.xlu0 %1486
    %v1489 = vlaneseq
    %v1490 = vshrl.u32 %v1489, 7
    %v1491 = vsub.s32 0, %v1490
    %v1492 = vrot.slane %v1483, %v1491
    %v1493 = vlaneseq
    %v1494 = vshrl.u32 %v1493, 7
    %v1495 = vsub.s32 0, %v1494
    %v1496 = vrot.slane %v1482, %v1495
    %v1497 = vlaneseq
    %v1498 = vshrl.u32 %v1497, 7
    %v1499 = vsub.s32 0, %v1498
    %v1500 = vrot.slane %v1481, %v1499
    %v1501 = vlaneseq
    %v1502 = vshrl.u32 %v1501, 7
    %v1503 = vsub.s32 0, %v1502
    %v1504 = vrot.slane %v1480, %v1503
    %v1505 = vlaneseq
    %v1506 = vshrl.u32 %v1505, 7
    %v1507 = vsub.s32 0, %v1506
    %v1508 = vrot.slane %v1479, %v1507
    %v1509 = vlaneseq
    %v1510 = vshrl.u32 %v1509, 7
    %v1511 = vsub.s32 0, %v1510
    %v1512 = vrot.slane %v1484, %v1511
    %v1513 = vmul.f32 %v1487, %v1492
    %v1514 = vmul.f32 %v1487, %v1496
    %v1515 = vmul.f32 %v1487, %v1500
    %v1516 = vmul.f32 %v1487, %v1504
    %v1517 = vmul.f32 %v1487, %v1508
    %v1518 = vmul.f32 %v1487, %v1512
    %v1519 = vadd.f32 %v1460, %v1513
    %v1520 = vadd.f32 %v1461, %v1514
    %v1521 = vadd.f32 %v1462, %v1515
    %v1522 = vadd.f32 %v1463, %v1516
    %v1523 = vadd.f32 %v1464, %v1517
    %v1524 = vadd.f32 %v1465, %v1518
    %1525 = vset.pattern.permute.xlu0 65
    %1526 = vperm.xlu0 %1525, %v49
    %v1527 = vpop.permute.xlu0 %1526
    %v1529 = vlaneseq
    %v1530 = vshrl.u32 %v1529, 7
    %v1531 = vsub.s32 1, %v1530
    %v1532 = vrot.slane %v1483, %v1531
    %v1533 = vlaneseq
    %v1534 = vshrl.u32 %v1533, 7
    %v1535 = vsub.s32 1, %v1534
    %v1536 = vrot.slane %v1482, %v1535
    %v1537 = vlaneseq
    %v1538 = vshrl.u32 %v1537, 7
    %v1539 = vsub.s32 1, %v1538
    %v1540 = vrot.slane %v1481, %v1539
    %v1541 = vlaneseq
    %v1542 = vshrl.u32 %v1541, 7
    %v1543 = vsub.s32 1, %v1542
    %v1544 = vrot.slane %v1480, %v1543
    %v1545 = vlaneseq
    %v1546 = vshrl.u32 %v1545, 7
    %v1547 = vsub.s32 1, %v1546
    %v1548 = vrot.slane %v1479, %v1547
    %v1549 = vlaneseq
    %v1550 = vshrl.u32 %v1549, 7
    %v1551 = vsub.s32 1, %v1550
    %v1552 = vrot.slane %v1484, %v1551
    %v1553 = vmul.f32 %v1527, %v1532
    %v1554 = vmul.f32 %v1527, %v1536
    %v1555 = vmul.f32 %v1527, %v1540
    %v1556 = vmul.f32 %v1527, %v1544
    %v1557 = vmul.f32 %v1527, %v1548
    %v1558 = vmul.f32 %v1527, %v1552
    %v1559 = vadd.f32 %v1519, %v1553
    %v1560 = vadd.f32 %v1520, %v1554
    %v1561 = vadd.f32 %v1521, %v1555
    %v1562 = vadd.f32 %v1522, %v1556
    %v1563 = vadd.f32 %v1523, %v1557
    %v1564 = vadd.f32 %v1524, %v1558
    %1565 = vset.pattern.permute.xlu0 66
    %1566 = vperm.xlu0 %1565, %v49
    %v1567 = vpop.permute.xlu0 %1566
    %v1569 = vlaneseq
    %v1570 = vshrl.u32 %v1569, 7
    %v1571 = vsub.s32 2, %v1570
    %v1572 = vrot.slane %v1483, %v1571
    %v1573 = vlaneseq
    %v1574 = vshrl.u32 %v1573, 7
    %v1575 = vsub.s32 2, %v1574
    %v1576 = vrot.slane %v1482, %v1575
    %v1577 = vlaneseq
    %v1578 = vshrl.u32 %v1577, 7
    %v1579 = vsub.s32 2, %v1578
    %v1580 = vrot.slane %v1481, %v1579
    %v1581 = vlaneseq
    %v1582 = vshrl.u32 %v1581, 7
    %v1583 = vsub.s32 2, %v1582
    %v1584 = vrot.slane %v1480, %v1583
    %v1585 = vlaneseq
    %v1586 = vshrl.u32 %v1585, 7
    %v1587 = vsub.s32 2, %v1586
    %v1588 = vrot.slane %v1479, %v1587
    %v1589 = vlaneseq
    %v1590 = vshrl.u32 %v1589, 7
    %v1591 = vsub.s32 2, %v1590
    %v1592 = vrot.slane %v1484, %v1591
    %v1593 = vmul.f32 %v1567, %v1572
    %v1594 = vmul.f32 %v1567, %v1576
    %v1595 = vmul.f32 %v1567, %v1580
    %v1596 = vmul.f32 %v1567, %v1584
    %v1597 = vmul.f32 %v1567, %v1588
    %v1598 = vmul.f32 %v1567, %v1592
    %v1599 = vadd.f32 %v1559, %v1593
    %v1600 = vadd.f32 %v1560, %v1594
    %v1601 = vadd.f32 %v1561, %v1595
    %v1602 = vadd.f32 %v1562, %v1596
    %v1603 = vadd.f32 %v1563, %v1597
    %v1604 = vadd.f32 %v1564, %v1598
    %1605 = vset.pattern.permute.xlu0 67
    %1606 = vperm.xlu0 %1605, %v49
    %v1607 = vpop.permute.xlu0 %1606
    %v1609 = vlaneseq
    %v1610 = vshrl.u32 %v1609, 7
    %v1611 = vsub.s32 3, %v1610
    %v1612 = vrot.slane %v1483, %v1611
    %v1613 = vlaneseq
    %v1614 = vshrl.u32 %v1613, 7
    %v1615 = vsub.s32 3, %v1614
    %v1616 = vrot.slane %v1482, %v1615
    %v1617 = vlaneseq
    %v1618 = vshrl.u32 %v1617, 7
    %v1619 = vsub.s32 3, %v1618
    %v1620 = vrot.slane %v1481, %v1619
    %v1621 = vlaneseq
    %v1622 = vshrl.u32 %v1621, 7
    %v1623 = vsub.s32 3, %v1622
    %v1624 = vrot.slane %v1480, %v1623
    %v1625 = vlaneseq
    %v1626 = vshrl.u32 %v1625, 7
    %v1627 = vsub.s32 3, %v1626
    %v1628 = vrot.slane %v1479, %v1627
    %v1629 = vlaneseq
    %v1630 = vshrl.u32 %v1629, 7
    %v1631 = vsub.s32 3, %v1630
    %v1632 = vrot.slane %v1484, %v1631
    %v1633 = vmul.f32 %v1607, %v1612
    %v1634 = vmul.f32 %v1607, %v1616
    %v1635 = vmul.f32 %v1607, %v1620
    %v1636 = vmul.f32 %v1607, %v1624
    %v1637 = vmul.f32 %v1607, %v1628
    %v1638 = vmul.f32 %v1607, %v1632
    %v1639 = vadd.f32 %v1599, %v1633
    %v1640 = vadd.f32 %v1600, %v1634
    %v1641 = vadd.f32 %v1601, %v1635
    %v1642 = vadd.f32 %v1602, %v1636
    %v1643 = vadd.f32 %v1603, %v1637
    %v1644 = vadd.f32 %v1604, %v1638
    %v1645 = vld [vmem:[%s4] sm:$0xff]
    %v1646 = vld [vmem:[%s5] sm:$0xff]
    %v1648 = vlaneseq
    %v1649 = vshrl.u32 %v1648, 7
    %v1650 = vsub.s32 0, %v1649
    %v1651 = vrot.slane %v42, %v1650
    %v1652 = vlaneseq
    %v1653 = vshrl.u32 %v1652, 7
    %v1654 = vsub.s32 1, %v1653
    %v1655 = vrot.slane %v42, %v1654
    %v1656 = vlaneseq
    %v1657 = vshrl.u32 %v1656, 7
    %v1658 = vsub.s32 2, %v1657
    %v1659 = vrot.slane %v42, %v1658
    %v1660 = vlaneseq
    %v1661 = vshrl.u32 %v1660, 7
    %v1662 = vsub.s32 3, %v1661
    %v1663 = vrot.slane %v42, %v1662
    %v1664 = vlaneseq
    %v1665 = vshrl.u32 %v1664, 7
    %v1666 = vsub.s32 4, %v1665
    %v1667 = vrot.slane %v42, %v1666
    %v1668 = vlaneseq
    %v1669 = vshrl.u32 %v1668, 7
    %v1670 = vsub.s32 5, %v1669
    %v1671 = vrot.slane %v42, %v1670
    %v1678 = vmul.f32 %v1639, %v1651
    %v1679 = vmul.f32 %v1640, %v1655
    %v1680 = vmul.f32 %v1641, %v1659
    %v1681 = vmul.f32 %v1642, %v1663
    %v1682 = vmul.f32 %v1643, %v1667
    %v1683 = vmul.f32 %v1644, %v1671
    %v1684 = vmul.f32 %v1678, %v1639
    %v1685 = vmul.f32 %v1679, %v1640
    %v1686 = vmul.f32 %v1680, %v1641
    %v1687 = vmul.f32 %v1681, %v1642
    %v1688 = vmul.f32 %v1682, %v1643
    %v1689 = vmul.f32 %v1683, %v1644
    %v1690 = vadd.f32 %v1678, %v1679
    %v1691 = vadd.f32 %v1690, %v1680
    %v1692 = vadd.f32 %v1691, %v1681
    %v1693 = vadd.f32 %v1692, %v1682
    %v1694 = vadd.f32 %v1693, %v1683
    %1695 = vadd.xlane.f32.xlu0 %v1694
    %v1696 = vpop.xlane.xlu0 %1695
    %v1697 = vadd.f32 %v1684, %v1685
    %v1698 = vadd.f32 %v1697, %v1686
    %v1699 = vadd.f32 %v1698, %v1687
    %v1700 = vadd.f32 %v1699, %v1688
    %v1701 = vadd.f32 %v1700, %v1689
    %1702 = vadd.xlane.f32.xlu0 %v1701
    %v1703 = vpop.xlane.xlu0 %1702
    %v1704 = vmul.f32 %v1696, 0.001953125
    %v1705 = vmul.f32 %v1703, 0.001953125
    %v1706 = vmul.f32 %v1704, %v1704
    %v1707 = vsub.f32 %v1705, %v1706
    %v1708 = vmax.f32 %v1707, 0.0
    %v1709 = vadd.f32 %v1708, 1e-05
    %v1710 = vrsqrt.pop %v1709
    %v1711 = vmul.f32 %v1645, %v1710
    %v1712 = vmul.f32 %v1704, %v1711
    %v1713 = vsub.f32 %v1646, %v1712
    %1715 = vset.pattern.permute.xlu0 0
    %1716 = vperm.xlu0 %1715, %v1711
    %v1717 = vpop.permute.xlu0 %1716
    %v1719 = vmul.f32 %v1639, %v1717
    %v1720 = vmul.f32 %v1640, %v1717
    %v1721 = vmul.f32 %v1641, %v1717
    %v1722 = vmul.f32 %v1642, %v1717
    %v1723 = vmul.f32 %v1643, %v1717
    %v1724 = vmul.f32 %v1644, %v1717
    %1726 = vset.pattern.permute.xlu0 0
    %1727 = vperm.xlu0 %1726, %v1713
    %v1728 = vpop.permute.xlu0 %1727
    %v1730 = vadd.f32 %v1719, %v1728
    %v1731 = vadd.f32 %v1720, %v1728
    %v1732 = vadd.f32 %v1721, %v1728
    %v1733 = vadd.f32 %v1722, %v1728
    %v1734 = vadd.f32 %v1723, %v1728
    %v1735 = vadd.f32 %v1724, %v1728
    %v1736 = vmax.f32 %v1730, 0.0
    %v1737 = vmax.f32 %v1731, 0.0
    %v1738 = vmax.f32 %v1732, 0.0
    %v1739 = vmax.f32 %v1733, 0.0
    %v1740 = vmax.f32 %v1734, 0.0
    %v1741 = vmax.f32 %v1735, 0.0
    %v1742 = vmul.f32 %v1736, %v1651
    %v1743 = vmul.f32 %v1737, %v1655
    %v1744 = vmul.f32 %v1738, %v1659
    %v1745 = vmul.f32 %v1739, %v1663
    %v1746 = vmul.f32 %v1740, %v1667
    %v1747 = vmul.f32 %v1741, %v1671
    %v1748 = vld [vmem:[%s3] sm:$0xff]
    %1749 = vrot.lane.b32.xlu0 %v1742, 19
    %v1750 = vpop.permute.xlu0 %1749
    %1751 = vrot.lane.b32.xlu0 %v1743, 19
    %v1752 = vpop.permute.xlu0 %1751
    %1753 = vrot.lane.b32.xlu0 %v1744, 19
    %v1754 = vpop.permute.xlu0 %1753
    %1755 = vrot.lane.b32.xlu0 %v1745, 19
    %v1756 = vpop.permute.xlu0 %1755
    %1757 = vrot.lane.b32.xlu0 %v1746, 19
    %v1758 = vpop.permute.xlu0 %1757
    %1759 = vrot.lane.b32.xlu0 %v1747, 19
    %v1760 = vpop.permute.xlu0 %1759
    %v1761 = vsel %vm64, %v1758, %v1760
    %v1762 = vsel %vm64, %v1756, %v1758
    %v1763 = vsel %vm64, %v1754, %v1756
    %v1764 = vsel %vm64, %v1752, %v1754
    %v1765 = vsel %vm64, %v1750, %v1752
    %v1766 = vsel %vm64, %v1760, %v1750
    %1768 = vset.pattern.permute.xlu0 0
    %1769 = vperm.xlu0 %1768, %v1748
    %v1770 = vpop.permute.xlu0 %1769
    %v1772 = vlaneseq
    %v1773 = vshrl.u32 %v1772, 7
    %v1774 = vsub.s32 0, %v1773
    %v1775 = vrot.slane %v1766, %v1774
    %v1776 = vlaneseq
    %v1777 = vshrl.u32 %v1776, 7
    %v1778 = vsub.s32 0, %v1777
    %v1779 = vrot.slane %v1765, %v1778
    %v1780 = vlaneseq
    %v1781 = vshrl.u32 %v1780, 7
    %v1782 = vsub.s32 0, %v1781
    %v1783 = vrot.slane %v1764, %v1782
    %v1784 = vlaneseq
    %v1785 = vshrl.u32 %v1784, 7
    %v1786 = vsub.s32 0, %v1785
    %v1787 = vrot.slane %v1763, %v1786
    %v1788 = vlaneseq
    %v1789 = vshrl.u32 %v1788, 7
    %v1790 = vsub.s32 0, %v1789
    %v1791 = vrot.slane %v1762, %v1790
    %v1792 = vlaneseq
    %v1793 = vshrl.u32 %v1792, 7
    %v1794 = vsub.s32 0, %v1793
    %v1795 = vrot.slane %v1761, %v1794
    %v1796 = vmul.f32 %v1770, %v1775
    %v1797 = vmul.f32 %v1770, %v1779
    %v1798 = vmul.f32 %v1770, %v1783
    %v1799 = vmul.f32 %v1770, %v1787
    %v1800 = vmul.f32 %v1770, %v1791
    %v1801 = vmul.f32 %v1770, %v1795
    %v1802 = vadd.f32 %v1796, 0.0
    %v1803 = vadd.f32 %v1797, 0.0
    %v1804 = vadd.f32 %v1798, 0.0
    %v1805 = vadd.f32 %v1799, 0.0
    %v1806 = vadd.f32 %v1800, 0.0
    %v1807 = vadd.f32 %v1801, 0.0
    %1808 = vset.pattern.permute.xlu0 1
    %1809 = vperm.xlu0 %1808, %v1748
    %v1810 = vpop.permute.xlu0 %1809
    %v1812 = vlaneseq
    %v1813 = vshrl.u32 %v1812, 7
    %v1814 = vsub.s32 1, %v1813
    %v1815 = vrot.slane %v1766, %v1814
    %v1816 = vlaneseq
    %v1817 = vshrl.u32 %v1816, 7
    %v1818 = vsub.s32 1, %v1817
    %v1819 = vrot.slane %v1765, %v1818
    %v1820 = vlaneseq
    %v1821 = vshrl.u32 %v1820, 7
    %v1822 = vsub.s32 1, %v1821
    %v1823 = vrot.slane %v1764, %v1822
    %v1824 = vlaneseq
    %v1825 = vshrl.u32 %v1824, 7
    %v1826 = vsub.s32 1, %v1825
    %v1827 = vrot.slane %v1763, %v1826
    %v1828 = vlaneseq
    %v1829 = vshrl.u32 %v1828, 7
    %v1830 = vsub.s32 1, %v1829
    %v1831 = vrot.slane %v1762, %v1830
    %v1832 = vlaneseq
    %v1833 = vshrl.u32 %v1832, 7
    %v1834 = vsub.s32 1, %v1833
    %v1835 = vrot.slane %v1761, %v1834
    %v1836 = vmul.f32 %v1810, %v1815
    %v1837 = vmul.f32 %v1810, %v1819
    %v1838 = vmul.f32 %v1810, %v1823
    %v1839 = vmul.f32 %v1810, %v1827
    %v1840 = vmul.f32 %v1810, %v1831
    %v1841 = vmul.f32 %v1810, %v1835
    %v1842 = vadd.f32 %v1802, %v1836
    %v1843 = vadd.f32 %v1803, %v1837
    %v1844 = vadd.f32 %v1804, %v1838
    %v1845 = vadd.f32 %v1805, %v1839
    %v1846 = vadd.f32 %v1806, %v1840
    %v1847 = vadd.f32 %v1807, %v1841
    %1848 = vset.pattern.permute.xlu0 2
    %1849 = vperm.xlu0 %1848, %v1748
    %v1850 = vpop.permute.xlu0 %1849
    %v1852 = vlaneseq
    %v1853 = vshrl.u32 %v1852, 7
    %v1854 = vsub.s32 2, %v1853
    %v1855 = vrot.slane %v1766, %v1854
    %v1856 = vlaneseq
    %v1857 = vshrl.u32 %v1856, 7
    %v1858 = vsub.s32 2, %v1857
    %v1859 = vrot.slane %v1765, %v1858
    %v1860 = vlaneseq
    %v1861 = vshrl.u32 %v1860, 7
    %v1862 = vsub.s32 2, %v1861
    %v1863 = vrot.slane %v1764, %v1862
    %v1864 = vlaneseq
    %v1865 = vshrl.u32 %v1864, 7
    %v1866 = vsub.s32 2, %v1865
    %v1867 = vrot.slane %v1763, %v1866
    %v1868 = vlaneseq
    %v1869 = vshrl.u32 %v1868, 7
    %v1870 = vsub.s32 2, %v1869
    %v1871 = vrot.slane %v1762, %v1870
    %v1872 = vlaneseq
    %v1873 = vshrl.u32 %v1872, 7
    %v1874 = vsub.s32 2, %v1873
    %v1875 = vrot.slane %v1761, %v1874
    %v1876 = vmul.f32 %v1850, %v1855
    %v1877 = vmul.f32 %v1850, %v1859
    %v1878 = vmul.f32 %v1850, %v1863
    %v1879 = vmul.f32 %v1850, %v1867
    %v1880 = vmul.f32 %v1850, %v1871
    %v1881 = vmul.f32 %v1850, %v1875
    %v1882 = vadd.f32 %v1842, %v1876
    %v1883 = vadd.f32 %v1843, %v1877
    %v1884 = vadd.f32 %v1844, %v1878
    %v1885 = vadd.f32 %v1845, %v1879
    %v1886 = vadd.f32 %v1846, %v1880
    %v1887 = vadd.f32 %v1847, %v1881
    %1888 = vset.pattern.permute.xlu0 3
    %1889 = vperm.xlu0 %1888, %v1748
    %v1890 = vpop.permute.xlu0 %1889
    %v1892 = vlaneseq
    %v1893 = vshrl.u32 %v1892, 7
    %v1894 = vsub.s32 3, %v1893
    %v1895 = vrot.slane %v1766, %v1894
    %v1896 = vlaneseq
    %v1897 = vshrl.u32 %v1896, 7
    %v1898 = vsub.s32 3, %v1897
    %v1899 = vrot.slane %v1765, %v1898
    %v1900 = vlaneseq
    %v1901 = vshrl.u32 %v1900, 7
    %v1902 = vsub.s32 3, %v1901
    %v1903 = vrot.slane %v1764, %v1902
    %v1904 = vlaneseq
    %v1905 = vshrl.u32 %v1904, 7
    %v1906 = vsub.s32 3, %v1905
    %v1907 = vrot.slane %v1763, %v1906
    %v1908 = vlaneseq
    %v1909 = vshrl.u32 %v1908, 7
    %v1910 = vsub.s32 3, %v1909
    %v1911 = vrot.slane %v1762, %v1910
    %v1912 = vlaneseq
    %v1913 = vshrl.u32 %v1912, 7
    %v1914 = vsub.s32 3, %v1913
    %v1915 = vrot.slane %v1761, %v1914
    %v1916 = vmul.f32 %v1890, %v1895
    %v1917 = vmul.f32 %v1890, %v1899
    %v1918 = vmul.f32 %v1890, %v1903
    %v1919 = vmul.f32 %v1890, %v1907
    %v1920 = vmul.f32 %v1890, %v1911
    %v1921 = vmul.f32 %v1890, %v1915
    %v1922 = vadd.f32 %v1882, %v1916
    %v1923 = vadd.f32 %v1883, %v1917
    %v1924 = vadd.f32 %v1884, %v1918
    %v1925 = vadd.f32 %v1885, %v1919
    %v1926 = vadd.f32 %v1886, %v1920
    %v1927 = vadd.f32 %v1887, %v1921
    %1928 = vrot.lane.b32.xlu0 %v1742, 18
    %v1929 = vpop.permute.xlu0 %1928
    %1930 = vrot.lane.b32.xlu0 %v1743, 18
    %v1931 = vpop.permute.xlu0 %1930
    %1932 = vrot.lane.b32.xlu0 %v1744, 18
    %v1933 = vpop.permute.xlu0 %1932
    %1934 = vrot.lane.b32.xlu0 %v1745, 18
    %v1935 = vpop.permute.xlu0 %1934
    %1936 = vrot.lane.b32.xlu0 %v1746, 18
    %v1937 = vpop.permute.xlu0 %1936
    %1938 = vrot.lane.b32.xlu0 %v1747, 18
    %v1939 = vpop.permute.xlu0 %1938
    %v1940 = vsel %vm244, %v1937, %v1939
    %v1941 = vsel %vm244, %v1935, %v1937
    %v1942 = vsel %vm244, %v1933, %v1935
    %v1943 = vsel %vm244, %v1931, %v1933
    %v1944 = vsel %vm244, %v1929, %v1931
    %v1945 = vsel %vm244, %v1939, %v1929
    %1946 = vset.pattern.permute.xlu0 8
    %1947 = vperm.xlu0 %1946, %v1748
    %v1948 = vpop.permute.xlu0 %1947
    %v1950 = vlaneseq
    %v1951 = vshrl.u32 %v1950, 7
    %v1952 = vsub.s32 0, %v1951
    %v1953 = vrot.slane %v1945, %v1952
    %v1954 = vlaneseq
    %v1955 = vshrl.u32 %v1954, 7
    %v1956 = vsub.s32 0, %v1955
    %v1957 = vrot.slane %v1944, %v1956
    %v1958 = vlaneseq
    %v1959 = vshrl.u32 %v1958, 7
    %v1960 = vsub.s32 0, %v1959
    %v1961 = vrot.slane %v1943, %v1960
    %v1962 = vlaneseq
    %v1963 = vshrl.u32 %v1962, 7
    %v1964 = vsub.s32 0, %v1963
    %v1965 = vrot.slane %v1942, %v1964
    %v1966 = vlaneseq
    %v1967 = vshrl.u32 %v1966, 7
    %v1968 = vsub.s32 0, %v1967
    %v1969 = vrot.slane %v1941, %v1968
    %v1970 = vlaneseq
    %v1971 = vshrl.u32 %v1970, 7
    %v1972 = vsub.s32 0, %v1971
    %v1973 = vrot.slane %v1940, %v1972
    %v1974 = vmul.f32 %v1948, %v1953
    %v1975 = vmul.f32 %v1948, %v1957
    %v1976 = vmul.f32 %v1948, %v1961
    %v1977 = vmul.f32 %v1948, %v1965
    %v1978 = vmul.f32 %v1948, %v1969
    %v1979 = vmul.f32 %v1948, %v1973
    %v1980 = vadd.f32 %v1922, %v1974
    %v1981 = vadd.f32 %v1923, %v1975
    %v1982 = vadd.f32 %v1924, %v1976
    %v1983 = vadd.f32 %v1925, %v1977
    %v1984 = vadd.f32 %v1926, %v1978
    %v1985 = vadd.f32 %v1927, %v1979
    %1986 = vset.pattern.permute.xlu0 9
    %1987 = vperm.xlu0 %1986, %v1748
    %v1988 = vpop.permute.xlu0 %1987
    %v1990 = vlaneseq
    %v1991 = vshrl.u32 %v1990, 7
    %v1992 = vsub.s32 1, %v1991
    %v1993 = vrot.slane %v1945, %v1992
    %v1994 = vlaneseq
    %v1995 = vshrl.u32 %v1994, 7
    %v1996 = vsub.s32 1, %v1995
    %v1997 = vrot.slane %v1944, %v1996
    %v1998 = vlaneseq
    %v1999 = vshrl.u32 %v1998, 7
    %v2000 = vsub.s32 1, %v1999
    %v2001 = vrot.slane %v1943, %v2000
    %v2002 = vlaneseq
    %v2003 = vshrl.u32 %v2002, 7
    %v2004 = vsub.s32 1, %v2003
    %v2005 = vrot.slane %v1942, %v2004
    %v2006 = vlaneseq
    %v2007 = vshrl.u32 %v2006, 7
    %v2008 = vsub.s32 1, %v2007
    %v2009 = vrot.slane %v1941, %v2008
    %v2010 = vlaneseq
    %v2011 = vshrl.u32 %v2010, 7
    %v2012 = vsub.s32 1, %v2011
    %v2013 = vrot.slane %v1940, %v2012
    %v2014 = vmul.f32 %v1988, %v1993
    %v2015 = vmul.f32 %v1988, %v1997
    %v2016 = vmul.f32 %v1988, %v2001
    %v2017 = vmul.f32 %v1988, %v2005
    %v2018 = vmul.f32 %v1988, %v2009
    %v2019 = vmul.f32 %v1988, %v2013
    %v2020 = vadd.f32 %v1980, %v2014
    %v2021 = vadd.f32 %v1981, %v2015
    %v2022 = vadd.f32 %v1982, %v2016
    %v2023 = vadd.f32 %v1983, %v2017
    %v2024 = vadd.f32 %v1984, %v2018
    %v2025 = vadd.f32 %v1985, %v2019
    %2026 = vset.pattern.permute.xlu0 10
    %2027 = vperm.xlu0 %2026, %v1748
    %v2028 = vpop.permute.xlu0 %2027
    %v2030 = vlaneseq
    %v2031 = vshrl.u32 %v2030, 7
    %v2032 = vsub.s32 2, %v2031
    %v2033 = vrot.slane %v1945, %v2032
    %v2034 = vlaneseq
    %v2035 = vshrl.u32 %v2034, 7
    %v2036 = vsub.s32 2, %v2035
    %v2037 = vrot.slane %v1944, %v2036
    %v2038 = vlaneseq
    %v2039 = vshrl.u32 %v2038, 7
    %v2040 = vsub.s32 2, %v2039
    %v2041 = vrot.slane %v1943, %v2040
    %v2042 = vlaneseq
    %v2043 = vshrl.u32 %v2042, 7
    %v2044 = vsub.s32 2, %v2043
    %v2045 = vrot.slane %v1942, %v2044
    %v2046 = vlaneseq
    %v2047 = vshrl.u32 %v2046, 7
    %v2048 = vsub.s32 2, %v2047
    %v2049 = vrot.slane %v1941, %v2048
    %v2050 = vlaneseq
    %v2051 = vshrl.u32 %v2050, 7
    %v2052 = vsub.s32 2, %v2051
    %v2053 = vrot.slane %v1940, %v2052
    %v2054 = vmul.f32 %v2028, %v2033
    %v2055 = vmul.f32 %v2028, %v2037
    %v2056 = vmul.f32 %v2028, %v2041
    %v2057 = vmul.f32 %v2028, %v2045
    %v2058 = vmul.f32 %v2028, %v2049
    %v2059 = vmul.f32 %v2028, %v2053
    %v2060 = vadd.f32 %v2020, %v2054
    %v2061 = vadd.f32 %v2021, %v2055
    %v2062 = vadd.f32 %v2022, %v2056
    %v2063 = vadd.f32 %v2023, %v2057
    %v2064 = vadd.f32 %v2024, %v2058
    %v2065 = vadd.f32 %v2025, %v2059
    %2066 = vset.pattern.permute.xlu0 11
    %2067 = vperm.xlu0 %2066, %v1748
    %v2068 = vpop.permute.xlu0 %2067
    %v2070 = vlaneseq
    %v2071 = vshrl.u32 %v2070, 7
    %v2072 = vsub.s32 3, %v2071
    %v2073 = vrot.slane %v1945, %v2072
    %v2074 = vlaneseq
    %v2075 = vshrl.u32 %v2074, 7
    %v2076 = vsub.s32 3, %v2075
    %v2077 = vrot.slane %v1944, %v2076
    %v2078 = vlaneseq
    %v2079 = vshrl.u32 %v2078, 7
    %v2080 = vsub.s32 3, %v2079
    %v2081 = vrot.slane %v1943, %v2080
    %v2082 = vlaneseq
    %v2083 = vshrl.u32 %v2082, 7
    %v2084 = vsub.s32 3, %v2083
    %v2085 = vrot.slane %v1942, %v2084
    %v2086 = vlaneseq
    %v2087 = vshrl.u32 %v2086, 7
    %v2088 = vsub.s32 3, %v2087
    %v2089 = vrot.slane %v1941, %v2088
    %v2090 = vlaneseq
    %v2091 = vshrl.u32 %v2090, 7
    %v2092 = vsub.s32 3, %v2091
    %v2093 = vrot.slane %v1940, %v2092
    %v2094 = vmul.f32 %v2068, %v2073
    %v2095 = vmul.f32 %v2068, %v2077
    %v2096 = vmul.f32 %v2068, %v2081
    %v2097 = vmul.f32 %v2068, %v2085
    %v2098 = vmul.f32 %v2068, %v2089
    %v2099 = vmul.f32 %v2068, %v2093
    %v2100 = vadd.f32 %v2060, %v2094
    %v2101 = vadd.f32 %v2061, %v2095
    %v2102 = vadd.f32 %v2062, %v2096
    %v2103 = vadd.f32 %v2063, %v2097
    %v2104 = vadd.f32 %v2064, %v2098
    %v2105 = vadd.f32 %v2065, %v2099
    %2106 = vrot.lane.b32.xlu0 %v1742, 17
    %v2107 = vpop.permute.xlu0 %2106
    %2108 = vrot.lane.b32.xlu0 %v1743, 17
    %v2109 = vpop.permute.xlu0 %2108
    %2110 = vrot.lane.b32.xlu0 %v1744, 17
    %v2111 = vpop.permute.xlu0 %2110
    %2112 = vrot.lane.b32.xlu0 %v1745, 17
    %v2113 = vpop.permute.xlu0 %2112
    %2114 = vrot.lane.b32.xlu0 %v1746, 17
    %v2115 = vpop.permute.xlu0 %2114
    %2116 = vrot.lane.b32.xlu0 %v1747, 17
    %v2117 = vpop.permute.xlu0 %2116
    %v2118 = vsel %vm423, %v2115, %v2117
    %v2119 = vsel %vm423, %v2113, %v2115
    %v2120 = vsel %vm423, %v2111, %v2113
    %v2121 = vsel %vm423, %v2109, %v2111
    %v2122 = vsel %vm423, %v2107, %v2109
    %v2123 = vsel %vm423, %v2117, %v2107
    %2124 = vset.pattern.permute.xlu0 16
    %2125 = vperm.xlu0 %2124, %v1748
    %v2126 = vpop.permute.xlu0 %2125
    %v2128 = vlaneseq
    %v2129 = vshrl.u32 %v2128, 7
    %v2130 = vsub.s32 0, %v2129
    %v2131 = vrot.slane %v2123, %v2130
    %v2132 = vlaneseq
    %v2133 = vshrl.u32 %v2132, 7
    %v2134 = vsub.s32 0, %v2133
    %v2135 = vrot.slane %v2122, %v2134
    %v2136 = vlaneseq
    %v2137 = vshrl.u32 %v2136, 7
    %v2138 = vsub.s32 0, %v2137
    %v2139 = vrot.slane %v2121, %v2138
    %v2140 = vlaneseq
    %v2141 = vshrl.u32 %v2140, 7
    %v2142 = vsub.s32 0, %v2141
    %v2143 = vrot.slane %v2120, %v2142
    %v2144 = vlaneseq
    %v2145 = vshrl.u32 %v2144, 7
    %v2146 = vsub.s32 0, %v2145
    %v2147 = vrot.slane %v2119, %v2146
    %v2148 = vlaneseq
    %v2149 = vshrl.u32 %v2148, 7
    %v2150 = vsub.s32 0, %v2149
    %v2151 = vrot.slane %v2118, %v2150
    %v2152 = vmul.f32 %v2126, %v2131
    %v2153 = vmul.f32 %v2126, %v2135
    %v2154 = vmul.f32 %v2126, %v2139
    %v2155 = vmul.f32 %v2126, %v2143
    %v2156 = vmul.f32 %v2126, %v2147
    %v2157 = vmul.f32 %v2126, %v2151
    %v2158 = vadd.f32 %v2100, %v2152
    %v2159 = vadd.f32 %v2101, %v2153
    %v2160 = vadd.f32 %v2102, %v2154
    %v2161 = vadd.f32 %v2103, %v2155
    %v2162 = vadd.f32 %v2104, %v2156
    %v2163 = vadd.f32 %v2105, %v2157
    %2164 = vset.pattern.permute.xlu0 17
    %2165 = vperm.xlu0 %2164, %v1748
    %v2166 = vpop.permute.xlu0 %2165
    %v2168 = vlaneseq
    %v2169 = vshrl.u32 %v2168, 7
    %v2170 = vsub.s32 1, %v2169
    %v2171 = vrot.slane %v2123, %v2170
    %v2172 = vlaneseq
    %v2173 = vshrl.u32 %v2172, 7
    %v2174 = vsub.s32 1, %v2173
    %v2175 = vrot.slane %v2122, %v2174
    %v2176 = vlaneseq
    %v2177 = vshrl.u32 %v2176, 7
    %v2178 = vsub.s32 1, %v2177
    %v2179 = vrot.slane %v2121, %v2178
    %v2180 = vlaneseq
    %v2181 = vshrl.u32 %v2180, 7
    %v2182 = vsub.s32 1, %v2181
    %v2183 = vrot.slane %v2120, %v2182
    %v2184 = vlaneseq
    %v2185 = vshrl.u32 %v2184, 7
    %v2186 = vsub.s32 1, %v2185
    %v2187 = vrot.slane %v2119, %v2186
    %v2188 = vlaneseq
    %v2189 = vshrl.u32 %v2188, 7
    %v2190 = vsub.s32 1, %v2189
    %v2191 = vrot.slane %v2118, %v2190
    %v2192 = vmul.f32 %v2166, %v2171
    %v2193 = vmul.f32 %v2166, %v2175
    %v2194 = vmul.f32 %v2166, %v2179
    %v2195 = vmul.f32 %v2166, %v2183
    %v2196 = vmul.f32 %v2166, %v2187
    %v2197 = vmul.f32 %v2166, %v2191
    %v2198 = vadd.f32 %v2158, %v2192
    %v2199 = vadd.f32 %v2159, %v2193
    %v2200 = vadd.f32 %v2160, %v2194
    %v2201 = vadd.f32 %v2161, %v2195
    %v2202 = vadd.f32 %v2162, %v2196
    %v2203 = vadd.f32 %v2163, %v2197
    %2204 = vset.pattern.permute.xlu0 18
    %2205 = vperm.xlu0 %2204, %v1748
    %v2206 = vpop.permute.xlu0 %2205
    %v2208 = vlaneseq
    %v2209 = vshrl.u32 %v2208, 7
    %v2210 = vsub.s32 2, %v2209
    %v2211 = vrot.slane %v2123, %v2210
    %v2212 = vlaneseq
    %v2213 = vshrl.u32 %v2212, 7
    %v2214 = vsub.s32 2, %v2213
    %v2215 = vrot.slane %v2122, %v2214
    %v2216 = vlaneseq
    %v2217 = vshrl.u32 %v2216, 7
    %v2218 = vsub.s32 2, %v2217
    %v2219 = vrot.slane %v2121, %v2218
    %v2220 = vlaneseq
    %v2221 = vshrl.u32 %v2220, 7
    %v2222 = vsub.s32 2, %v2221
    %v2223 = vrot.slane %v2120, %v2222
    %v2224 = vlaneseq
    %v2225 = vshrl.u32 %v2224, 7
    %v2226 = vsub.s32 2, %v2225
    %v2227 = vrot.slane %v2119, %v2226
    %v2228 = vlaneseq
    %v2229 = vshrl.u32 %v2228, 7
    %v2230 = vsub.s32 2, %v2229
    %v2231 = vrot.slane %v2118, %v2230
    %v2232 = vmul.f32 %v2206, %v2211
    %v2233 = vmul.f32 %v2206, %v2215
    %v2234 = vmul.f32 %v2206, %v2219
    %v2235 = vmul.f32 %v2206, %v2223
    %v2236 = vmul.f32 %v2206, %v2227
    %v2237 = vmul.f32 %v2206, %v2231
    %v2238 = vadd.f32 %v2198, %v2232
    %v2239 = vadd.f32 %v2199, %v2233
    %v2240 = vadd.f32 %v2200, %v2234
    %v2241 = vadd.f32 %v2201, %v2235
    %v2242 = vadd.f32 %v2202, %v2236
    %v2243 = vadd.f32 %v2203, %v2237
    %2244 = vset.pattern.permute.xlu0 19
    %2245 = vperm.xlu0 %2244, %v1748
    %v2246 = vpop.permute.xlu0 %2245
    %v2248 = vlaneseq
    %v2249 = vshrl.u32 %v2248, 7
    %v2250 = vsub.s32 3, %v2249
    %v2251 = vrot.slane %v2123, %v2250
    %v2252 = vlaneseq
    %v2253 = vshrl.u32 %v2252, 7
    %v2254 = vsub.s32 3, %v2253
    %v2255 = vrot.slane %v2122, %v2254
    %v2256 = vlaneseq
    %v2257 = vshrl.u32 %v2256, 7
    %v2258 = vsub.s32 3, %v2257
    %v2259 = vrot.slane %v2121, %v2258
    %v2260 = vlaneseq
    %v2261 = vshrl.u32 %v2260, 7
    %v2262 = vsub.s32 3, %v2261
    %v2263 = vrot.slane %v2120, %v2262
    %v2264 = vlaneseq
    %v2265 = vshrl.u32 %v2264, 7
    %v2266 = vsub.s32 3, %v2265
    %v2267 = vrot.slane %v2119, %v2266
    %v2268 = vlaneseq
    %v2269 = vshrl.u32 %v2268, 7
    %v2270 = vsub.s32 3, %v2269
    %v2271 = vrot.slane %v2118, %v2270
    %v2272 = vmul.f32 %v2246, %v2251
    %v2273 = vmul.f32 %v2246, %v2255
    %v2274 = vmul.f32 %v2246, %v2259
    %v2275 = vmul.f32 %v2246, %v2263
    %v2276 = vmul.f32 %v2246, %v2267
    %v2277 = vmul.f32 %v2246, %v2271
    %v2278 = vadd.f32 %v2238, %v2272
    %v2279 = vadd.f32 %v2239, %v2273
    %v2280 = vadd.f32 %v2240, %v2274
    %v2281 = vadd.f32 %v2241, %v2275
    %v2282 = vadd.f32 %v2242, %v2276
    %v2283 = vadd.f32 %v2243, %v2277
    %2284 = vrot.lane.b32.xlu0 %v1742, 1
    %v2285 = vpop.permute.xlu0 %2284
    %2286 = vrot.lane.b32.xlu0 %v1743, 1
    %v2287 = vpop.permute.xlu0 %2286
    %2288 = vrot.lane.b32.xlu0 %v1744, 1
    %v2289 = vpop.permute.xlu0 %2288
    %2290 = vrot.lane.b32.xlu0 %v1745, 1
    %v2291 = vpop.permute.xlu0 %2290
    %2292 = vrot.lane.b32.xlu0 %v1746, 1
    %v2293 = vpop.permute.xlu0 %2292
    %2294 = vrot.lane.b32.xlu0 %v1747, 1
    %v2295 = vpop.permute.xlu0 %2294
    %v2296 = vsel %vm602, %v2293, %v2295
    %v2297 = vsel %vm602, %v2291, %v2293
    %v2298 = vsel %vm602, %v2289, %v2291
    %v2299 = vsel %vm602, %v2287, %v2289
    %v2300 = vsel %vm602, %v2285, %v2287
    %v2301 = vsel %vm602, %v2295, %v2285
    %2302 = vset.pattern.permute.xlu0 24
    %2303 = vperm.xlu0 %2302, %v1748
    %v2304 = vpop.permute.xlu0 %2303
    %v2306 = vlaneseq
    %v2307 = vshrl.u32 %v2306, 7
    %v2308 = vsub.s32 0, %v2307
    %v2309 = vrot.slane %v2301, %v2308
    %v2310 = vlaneseq
    %v2311 = vshrl.u32 %v2310, 7
    %v2312 = vsub.s32 0, %v2311
    %v2313 = vrot.slane %v2300, %v2312
    %v2314 = vlaneseq
    %v2315 = vshrl.u32 %v2314, 7
    %v2316 = vsub.s32 0, %v2315
    %v2317 = vrot.slane %v2299, %v2316
    %v2318 = vlaneseq
    %v2319 = vshrl.u32 %v2318, 7
    %v2320 = vsub.s32 0, %v2319
    %v2321 = vrot.slane %v2298, %v2320
    %v2322 = vlaneseq
    %v2323 = vshrl.u32 %v2322, 7
    %v2324 = vsub.s32 0, %v2323
    %v2325 = vrot.slane %v2297, %v2324
    %v2326 = vlaneseq
    %v2327 = vshrl.u32 %v2326, 7
    %v2328 = vsub.s32 0, %v2327
    %v2329 = vrot.slane %v2296, %v2328
    %v2330 = vmul.f32 %v2304, %v2309
    %v2331 = vmul.f32 %v2304, %v2313
    %v2332 = vmul.f32 %v2304, %v2317
    %v2333 = vmul.f32 %v2304, %v2321
    %v2334 = vmul.f32 %v2304, %v2325
    %v2335 = vmul.f32 %v2304, %v2329
    %v2336 = vadd.f32 %v2278, %v2330
    %v2337 = vadd.f32 %v2279, %v2331
    %v2338 = vadd.f32 %v2280, %v2332
    %v2339 = vadd.f32 %v2281, %v2333
    %v2340 = vadd.f32 %v2282, %v2334
    %v2341 = vadd.f32 %v2283, %v2335
    %2342 = vset.pattern.permute.xlu0 25
    %2343 = vperm.xlu0 %2342, %v1748
    %v2344 = vpop.permute.xlu0 %2343
    %v2346 = vlaneseq
    %v2347 = vshrl.u32 %v2346, 7
    %v2348 = vsub.s32 1, %v2347
    %v2349 = vrot.slane %v2301, %v2348
    %v2350 = vlaneseq
    %v2351 = vshrl.u32 %v2350, 7
    %v2352 = vsub.s32 1, %v2351
    %v2353 = vrot.slane %v2300, %v2352
    %v2354 = vlaneseq
    %v2355 = vshrl.u32 %v2354, 7
    %v2356 = vsub.s32 1, %v2355
    %v2357 = vrot.slane %v2299, %v2356
    %v2358 = vlaneseq
    %v2359 = vshrl.u32 %v2358, 7
    %v2360 = vsub.s32 1, %v2359
    %v2361 = vrot.slane %v2298, %v2360
    %v2362 = vlaneseq
    %v2363 = vshrl.u32 %v2362, 7
    %v2364 = vsub.s32 1, %v2363
    %v2365 = vrot.slane %v2297, %v2364
    %v2366 = vlaneseq
    %v2367 = vshrl.u32 %v2366, 7
    %v2368 = vsub.s32 1, %v2367
    %v2369 = vrot.slane %v2296, %v2368
    %v2370 = vmul.f32 %v2344, %v2349
    %v2371 = vmul.f32 %v2344, %v2353
    %v2372 = vmul.f32 %v2344, %v2357
    %v2373 = vmul.f32 %v2344, %v2361
    %v2374 = vmul.f32 %v2344, %v2365
    %v2375 = vmul.f32 %v2344, %v2369
    %v2376 = vadd.f32 %v2336, %v2370
    %v2377 = vadd.f32 %v2337, %v2371
    %v2378 = vadd.f32 %v2338, %v2372
    %v2379 = vadd.f32 %v2339, %v2373
    %v2380 = vadd.f32 %v2340, %v2374
    %v2381 = vadd.f32 %v2341, %v2375
    %2382 = vset.pattern.permute.xlu0 26
    %2383 = vperm.xlu0 %2382, %v1748
    %v2384 = vpop.permute.xlu0 %2383
    %v2386 = vlaneseq
    %v2387 = vshrl.u32 %v2386, 7
    %v2388 = vsub.s32 2, %v2387
    %v2389 = vrot.slane %v2301, %v2388
    %v2390 = vlaneseq
    %v2391 = vshrl.u32 %v2390, 7
    %v2392 = vsub.s32 2, %v2391
    %v2393 = vrot.slane %v2300, %v2392
    %v2394 = vlaneseq
    %v2395 = vshrl.u32 %v2394, 7
    %v2396 = vsub.s32 2, %v2395
    %v2397 = vrot.slane %v2299, %v2396
    %v2398 = vlaneseq
    %v2399 = vshrl.u32 %v2398, 7
    %v2400 = vsub.s32 2, %v2399
    %v2401 = vrot.slane %v2298, %v2400
    %v2402 = vlaneseq
    %v2403 = vshrl.u32 %v2402, 7
    %v2404 = vsub.s32 2, %v2403
    %v2405 = vrot.slane %v2297, %v2404
    %v2406 = vlaneseq
    %v2407 = vshrl.u32 %v2406, 7
    %v2408 = vsub.s32 2, %v2407
    %v2409 = vrot.slane %v2296, %v2408
    %v2410 = vmul.f32 %v2384, %v2389
    %v2411 = vmul.f32 %v2384, %v2393
    %v2412 = vmul.f32 %v2384, %v2397
    %v2413 = vmul.f32 %v2384, %v2401
    %v2414 = vmul.f32 %v2384, %v2405
    %v2415 = vmul.f32 %v2384, %v2409
    %v2416 = vadd.f32 %v2376, %v2410
    %v2417 = vadd.f32 %v2377, %v2411
    %v2418 = vadd.f32 %v2378, %v2412
    %v2419 = vadd.f32 %v2379, %v2413
    %v2420 = vadd.f32 %v2380, %v2414
    %v2421 = vadd.f32 %v2381, %v2415
    %2422 = vset.pattern.permute.xlu0 27
    %2423 = vperm.xlu0 %2422, %v1748
    %v2424 = vpop.permute.xlu0 %2423
    %v2426 = vlaneseq
    %v2427 = vshrl.u32 %v2426, 7
    %v2428 = vsub.s32 3, %v2427
    %v2429 = vrot.slane %v2301, %v2428
    %v2430 = vlaneseq
    %v2431 = vshrl.u32 %v2430, 7
    %v2432 = vsub.s32 3, %v2431
    %v2433 = vrot.slane %v2300, %v2432
    %v2434 = vlaneseq
    %v2435 = vshrl.u32 %v2434, 7
    %v2436 = vsub.s32 3, %v2435
    %v2437 = vrot.slane %v2299, %v2436
    %v2438 = vlaneseq
    %v2439 = vshrl.u32 %v2438, 7
    %v2440 = vsub.s32 3, %v2439
    %v2441 = vrot.slane %v2298, %v2440
    %v2442 = vlaneseq
    %v2443 = vshrl.u32 %v2442, 7
    %v2444 = vsub.s32 3, %v2443
    %v2445 = vrot.slane %v2297, %v2444
    %v2446 = vlaneseq
    %v2447 = vshrl.u32 %v2446, 7
    %v2448 = vsub.s32 3, %v2447
    %v2449 = vrot.slane %v2296, %v2448
    %v2450 = vmul.f32 %v2424, %v2429
    %v2451 = vmul.f32 %v2424, %v2433
    %v2452 = vmul.f32 %v2424, %v2437
    %v2453 = vmul.f32 %v2424, %v2441
    %v2454 = vmul.f32 %v2424, %v2445
    %v2455 = vmul.f32 %v2424, %v2449
    %v2456 = vadd.f32 %v2416, %v2450
    %v2457 = vadd.f32 %v2417, %v2451
    %v2458 = vadd.f32 %v2418, %v2452
    %v2459 = vadd.f32 %v2419, %v2453
    %v2460 = vadd.f32 %v2420, %v2454
    %v2461 = vadd.f32 %v2421, %v2455
    %2462 = vset.pattern.permute.xlu0 32
    %2463 = vperm.xlu0 %2462, %v1748
    %v2464 = vpop.permute.xlu0 %2463
    %v2466 = vlaneseq
    %v2467 = vshrl.u32 %v2466, 7
    %v2468 = vsub.s32 0, %v2467
    %v2469 = vrot.slane %v1742, %v2468
    %v2470 = vlaneseq
    %v2471 = vshrl.u32 %v2470, 7
    %v2472 = vsub.s32 0, %v2471
    %v2473 = vrot.slane %v1743, %v2472
    %v2474 = vlaneseq
    %v2475 = vshrl.u32 %v2474, 7
    %v2476 = vsub.s32 0, %v2475
    %v2477 = vrot.slane %v1744, %v2476
    %v2478 = vlaneseq
    %v2479 = vshrl.u32 %v2478, 7
    %v2480 = vsub.s32 0, %v2479
    %v2481 = vrot.slane %v1745, %v2480
    %v2482 = vlaneseq
    %v2483 = vshrl.u32 %v2482, 7
    %v2484 = vsub.s32 0, %v2483
    %v2485 = vrot.slane %v1746, %v2484
    %v2486 = vlaneseq
    %v2487 = vshrl.u32 %v2486, 7
    %v2488 = vsub.s32 0, %v2487
    %v2489 = vrot.slane %v1747, %v2488
    %v2490 = vmul.f32 %v2464, %v2469
    %v2491 = vmul.f32 %v2464, %v2473
    %v2492 = vmul.f32 %v2464, %v2477
    %v2493 = vmul.f32 %v2464, %v2481
    %v2494 = vmul.f32 %v2464, %v2485
    %v2495 = vmul.f32 %v2464, %v2489
    %v2496 = vadd.f32 %v2456, %v2490
    %v2497 = vadd.f32 %v2457, %v2491
    %v2498 = vadd.f32 %v2458, %v2492
    %v2499 = vadd.f32 %v2459, %v2493
    %v2500 = vadd.f32 %v2460, %v2494
    %v2501 = vadd.f32 %v2461, %v2495
    %2502 = vset.pattern.permute.xlu0 33
    %2503 = vperm.xlu0 %2502, %v1748
    %v2504 = vpop.permute.xlu0 %2503
    %v2506 = vlaneseq
    %v2507 = vshrl.u32 %v2506, 7
    %v2508 = vsub.s32 1, %v2507
    %v2509 = vrot.slane %v1742, %v2508
    %v2510 = vlaneseq
    %v2511 = vshrl.u32 %v2510, 7
    %v2512 = vsub.s32 1, %v2511
    %v2513 = vrot.slane %v1743, %v2512
    %v2514 = vlaneseq
    %v2515 = vshrl.u32 %v2514, 7
    %v2516 = vsub.s32 1, %v2515
    %v2517 = vrot.slane %v1744, %v2516
    %v2518 = vlaneseq
    %v2519 = vshrl.u32 %v2518, 7
    %v2520 = vsub.s32 1, %v2519
    %v2521 = vrot.slane %v1745, %v2520
    %v2522 = vlaneseq
    %v2523 = vshrl.u32 %v2522, 7
    %v2524 = vsub.s32 1, %v2523
    %v2525 = vrot.slane %v1746, %v2524
    %v2526 = vlaneseq
    %v2527 = vshrl.u32 %v2526, 7
    %v2528 = vsub.s32 1, %v2527
    %v2529 = vrot.slane %v1747, %v2528
    %v2530 = vmul.f32 %v2504, %v2509
    %v2531 = vmul.f32 %v2504, %v2513
    %v2532 = vmul.f32 %v2504, %v2517
    %v2533 = vmul.f32 %v2504, %v2521
    %v2534 = vmul.f32 %v2504, %v2525
    %v2535 = vmul.f32 %v2504, %v2529
    %v2536 = vadd.f32 %v2496, %v2530
    %v2537 = vadd.f32 %v2497, %v2531
    %v2538 = vadd.f32 %v2498, %v2532
    %v2539 = vadd.f32 %v2499, %v2533
    %v2540 = vadd.f32 %v2500, %v2534
    %v2541 = vadd.f32 %v2501, %v2535
    %2542 = vset.pattern.permute.xlu0 34
    %2543 = vperm.xlu0 %2542, %v1748
    %v2544 = vpop.permute.xlu0 %2543
    %v2546 = vlaneseq
    %v2547 = vshrl.u32 %v2546, 7
    %v2548 = vsub.s32 2, %v2547
    %v2549 = vrot.slane %v1742, %v2548
    %v2550 = vlaneseq
    %v2551 = vshrl.u32 %v2550, 7
    %v2552 = vsub.s32 2, %v2551
    %v2553 = vrot.slane %v1743, %v2552
    %v2554 = vlaneseq
    %v2555 = vshrl.u32 %v2554, 7
    %v2556 = vsub.s32 2, %v2555
    %v2557 = vrot.slane %v1744, %v2556
    %v2558 = vlaneseq
    %v2559 = vshrl.u32 %v2558, 7
    %v2560 = vsub.s32 2, %v2559
    %v2561 = vrot.slane %v1745, %v2560
    %v2562 = vlaneseq
    %v2563 = vshrl.u32 %v2562, 7
    %v2564 = vsub.s32 2, %v2563
    %v2565 = vrot.slane %v1746, %v2564
    %v2566 = vlaneseq
    %v2567 = vshrl.u32 %v2566, 7
    %v2568 = vsub.s32 2, %v2567
    %v2569 = vrot.slane %v1747, %v2568
    %v2570 = vmul.f32 %v2544, %v2549
    %v2571 = vmul.f32 %v2544, %v2553
    %v2572 = vmul.f32 %v2544, %v2557
    %v2573 = vmul.f32 %v2544, %v2561
    %v2574 = vmul.f32 %v2544, %v2565
    %v2575 = vmul.f32 %v2544, %v2569
    %v2576 = vadd.f32 %v2536, %v2570
    %v2577 = vadd.f32 %v2537, %v2571
    %v2578 = vadd.f32 %v2538, %v2572
    %v2579 = vadd.f32 %v2539, %v2573
    %v2580 = vadd.f32 %v2540, %v2574
    %v2581 = vadd.f32 %v2541, %v2575
    %2582 = vset.pattern.permute.xlu0 35
    %2583 = vperm.xlu0 %2582, %v1748
    %v2584 = vpop.permute.xlu0 %2583
    %v2586 = vlaneseq
    %v2587 = vshrl.u32 %v2586, 7
    %v2588 = vsub.s32 3, %v2587
    %v2589 = vrot.slane %v1742, %v2588
    %v2590 = vlaneseq
    %v2591 = vshrl.u32 %v2590, 7
    %v2592 = vsub.s32 3, %v2591
    %v2593 = vrot.slane %v1743, %v2592
    %v2594 = vlaneseq
    %v2595 = vshrl.u32 %v2594, 7
    %v2596 = vsub.s32 3, %v2595
    %v2597 = vrot.slane %v1744, %v2596
    %v2598 = vlaneseq
    %v2599 = vshrl.u32 %v2598, 7
    %v2600 = vsub.s32 3, %v2599
    %v2601 = vrot.slane %v1745, %v2600
    %v2602 = vlaneseq
    %v2603 = vshrl.u32 %v2602, 7
    %v2604 = vsub.s32 3, %v2603
    %v2605 = vrot.slane %v1746, %v2604
    %v2606 = vlaneseq
    %v2607 = vshrl.u32 %v2606, 7
    %v2608 = vsub.s32 3, %v2607
    %v2609 = vrot.slane %v1747, %v2608
    %v2610 = vmul.f32 %v2584, %v2589
    %v2611 = vmul.f32 %v2584, %v2593
    %v2612 = vmul.f32 %v2584, %v2597
    %v2613 = vmul.f32 %v2584, %v2601
    %v2614 = vmul.f32 %v2584, %v2605
    %v2615 = vmul.f32 %v2584, %v2609
    %v2616 = vadd.f32 %v2576, %v2610
    %v2617 = vadd.f32 %v2577, %v2611
    %v2618 = vadd.f32 %v2578, %v2612
    %v2619 = vadd.f32 %v2579, %v2613
    %v2620 = vadd.f32 %v2580, %v2614
    %v2621 = vadd.f32 %v2581, %v2615
    %2622 = vrot.lane.b32.xlu0 %v1742, 127
    %v2623 = vpop.permute.xlu0 %2622
    %2624 = vrot.lane.b32.xlu0 %v1743, 127
    %v2625 = vpop.permute.xlu0 %2624
    %2626 = vrot.lane.b32.xlu0 %v1744, 127
    %v2627 = vpop.permute.xlu0 %2626
    %2628 = vrot.lane.b32.xlu0 %v1745, 127
    %v2629 = vpop.permute.xlu0 %2628
    %2630 = vrot.lane.b32.xlu0 %v1746, 127
    %v2631 = vpop.permute.xlu0 %2630
    %2632 = vrot.lane.b32.xlu0 %v1747, 127
    %v2633 = vpop.permute.xlu0 %2632
    %v2634 = vsel %vm941, %v2631, %v2633
    %v2635 = vsel %vm941, %v2629, %v2631
    %v2636 = vsel %vm941, %v2627, %v2629
    %v2637 = vsel %vm941, %v2625, %v2627
    %v2638 = vsel %vm941, %v2623, %v2625
    %v2639 = vsel %vm941, %v2633, %v2623
    %2640 = vset.pattern.permute.xlu0 40
    %2641 = vperm.xlu0 %2640, %v1748
    %v2642 = vpop.permute.xlu0 %2641
    %v2644 = vlaneseq
    %v2645 = vshrl.u32 %v2644, 7
    %v2646 = vsub.s32 0, %v2645
    %v2647 = vrot.slane %v2638, %v2646
    %v2648 = vlaneseq
    %v2649 = vshrl.u32 %v2648, 7
    %v2650 = vsub.s32 0, %v2649
    %v2651 = vrot.slane %v2637, %v2650
    %v2652 = vlaneseq
    %v2653 = vshrl.u32 %v2652, 7
    %v2654 = vsub.s32 0, %v2653
    %v2655 = vrot.slane %v2636, %v2654
    %v2656 = vlaneseq
    %v2657 = vshrl.u32 %v2656, 7
    %v2658 = vsub.s32 0, %v2657
    %v2659 = vrot.slane %v2635, %v2658
    %v2660 = vlaneseq
    %v2661 = vshrl.u32 %v2660, 7
    %v2662 = vsub.s32 0, %v2661
    %v2663 = vrot.slane %v2634, %v2662
    %v2664 = vlaneseq
    %v2665 = vshrl.u32 %v2664, 7
    %v2666 = vsub.s32 0, %v2665
    %v2667 = vrot.slane %v2639, %v2666
    %v2668 = vmul.f32 %v2642, %v2647
    %v2669 = vmul.f32 %v2642, %v2651
    %v2670 = vmul.f32 %v2642, %v2655
    %v2671 = vmul.f32 %v2642, %v2659
    %v2672 = vmul.f32 %v2642, %v2663
    %v2673 = vmul.f32 %v2642, %v2667
    %v2674 = vadd.f32 %v2616, %v2668
    %v2675 = vadd.f32 %v2617, %v2669
    %v2676 = vadd.f32 %v2618, %v2670
    %v2677 = vadd.f32 %v2619, %v2671
    %v2678 = vadd.f32 %v2620, %v2672
    %v2679 = vadd.f32 %v2621, %v2673
    %2680 = vset.pattern.permute.xlu0 41
    %2681 = vperm.xlu0 %2680, %v1748
    %v2682 = vpop.permute.xlu0 %2681
    %v2684 = vlaneseq
    %v2685 = vshrl.u32 %v2684, 7
    %v2686 = vsub.s32 1, %v2685
    %v2687 = vrot.slane %v2638, %v2686
    %v2688 = vlaneseq
    %v2689 = vshrl.u32 %v2688, 7
    %v2690 = vsub.s32 1, %v2689
    %v2691 = vrot.slane %v2637, %v2690
    %v2692 = vlaneseq
    %v2693 = vshrl.u32 %v2692, 7
    %v2694 = vsub.s32 1, %v2693
    %v2695 = vrot.slane %v2636, %v2694
    %v2696 = vlaneseq
    %v2697 = vshrl.u32 %v2696, 7
    %v2698 = vsub.s32 1, %v2697
    %v2699 = vrot.slane %v2635, %v2698
    %v2700 = vlaneseq
    %v2701 = vshrl.u32 %v2700, 7
    %v2702 = vsub.s32 1, %v2701
    %v2703 = vrot.slane %v2634, %v2702
    %v2704 = vlaneseq
    %v2705 = vshrl.u32 %v2704, 7
    %v2706 = vsub.s32 1, %v2705
    %v2707 = vrot.slane %v2639, %v2706
    %v2708 = vmul.f32 %v2682, %v2687
    %v2709 = vmul.f32 %v2682, %v2691
    %v2710 = vmul.f32 %v2682, %v2695
    %v2711 = vmul.f32 %v2682, %v2699
    %v2712 = vmul.f32 %v2682, %v2703
    %v2713 = vmul.f32 %v2682, %v2707
    %v2714 = vadd.f32 %v2674, %v2708
    %v2715 = vadd.f32 %v2675, %v2709
    %v2716 = vadd.f32 %v2676, %v2710
    %v2717 = vadd.f32 %v2677, %v2711
    %v2718 = vadd.f32 %v2678, %v2712
    %v2719 = vadd.f32 %v2679, %v2713
    %2720 = vset.pattern.permute.xlu0 42
    %2721 = vperm.xlu0 %2720, %v1748
    %v2722 = vpop.permute.xlu0 %2721
    %v2724 = vlaneseq
    %v2725 = vshrl.u32 %v2724, 7
    %v2726 = vsub.s32 2, %v2725
    %v2727 = vrot.slane %v2638, %v2726
    %v2728 = vlaneseq
    %v2729 = vshrl.u32 %v2728, 7
    %v2730 = vsub.s32 2, %v2729
    %v2731 = vrot.slane %v2637, %v2730
    %v2732 = vlaneseq
    %v2733 = vshrl.u32 %v2732, 7
    %v2734 = vsub.s32 2, %v2733
    %v2735 = vrot.slane %v2636, %v2734
    %v2736 = vlaneseq
    %v2737 = vshrl.u32 %v2736, 7
    %v2738 = vsub.s32 2, %v2737
    %v2739 = vrot.slane %v2635, %v2738
    %v2740 = vlaneseq
    %v2741 = vshrl.u32 %v2740, 7
    %v2742 = vsub.s32 2, %v2741
    %v2743 = vrot.slane %v2634, %v2742
    %v2744 = vlaneseq
    %v2745 = vshrl.u32 %v2744, 7
    %v2746 = vsub.s32 2, %v2745
    %v2747 = vrot.slane %v2639, %v2746
    %v2748 = vmul.f32 %v2722, %v2727
    %v2749 = vmul.f32 %v2722, %v2731
    %v2750 = vmul.f32 %v2722, %v2735
    %v2751 = vmul.f32 %v2722, %v2739
    %v2752 = vmul.f32 %v2722, %v2743
    %v2753 = vmul.f32 %v2722, %v2747
    %v2754 = vadd.f32 %v2714, %v2748
    %v2755 = vadd.f32 %v2715, %v2749
    %v2756 = vadd.f32 %v2716, %v2750
    %v2757 = vadd.f32 %v2717, %v2751
    %v2758 = vadd.f32 %v2718, %v2752
    %v2759 = vadd.f32 %v2719, %v2753
    %2760 = vset.pattern.permute.xlu0 43
    %2761 = vperm.xlu0 %2760, %v1748
    %v2762 = vpop.permute.xlu0 %2761
    %v2764 = vlaneseq
    %v2765 = vshrl.u32 %v2764, 7
    %v2766 = vsub.s32 3, %v2765
    %v2767 = vrot.slane %v2638, %v2766
    %v2768 = vlaneseq
    %v2769 = vshrl.u32 %v2768, 7
    %v2770 = vsub.s32 3, %v2769
    %v2771 = vrot.slane %v2637, %v2770
    %v2772 = vlaneseq
    %v2773 = vshrl.u32 %v2772, 7
    %v2774 = vsub.s32 3, %v2773
    %v2775 = vrot.slane %v2636, %v2774
    %v2776 = vlaneseq
    %v2777 = vshrl.u32 %v2776, 7
    %v2778 = vsub.s32 3, %v2777
    %v2779 = vrot.slane %v2635, %v2778
    %v2780 = vlaneseq
    %v2781 = vshrl.u32 %v2780, 7
    %v2782 = vsub.s32 3, %v2781
    %v2783 = vrot.slane %v2634, %v2782
    %v2784 = vlaneseq
    %v2785 = vshrl.u32 %v2784, 7
    %v2786 = vsub.s32 3, %v2785
    %v2787 = vrot.slane %v2639, %v2786
    %v2788 = vmul.f32 %v2762, %v2767
    %v2789 = vmul.f32 %v2762, %v2771
    %v2790 = vmul.f32 %v2762, %v2775
    %v2791 = vmul.f32 %v2762, %v2779
    %v2792 = vmul.f32 %v2762, %v2783
    %v2793 = vmul.f32 %v2762, %v2787
    %v2794 = vadd.f32 %v2754, %v2788
    %v2795 = vadd.f32 %v2755, %v2789
    %v2796 = vadd.f32 %v2756, %v2790
    %v2797 = vadd.f32 %v2757, %v2791
    %v2798 = vadd.f32 %v2758, %v2792
    %v2799 = vadd.f32 %v2759, %v2793
    %2800 = vrot.lane.b32.xlu0 %v1742, 111
    %v2801 = vpop.permute.xlu0 %2800
    %2802 = vrot.lane.b32.xlu0 %v1743, 111
    %v2803 = vpop.permute.xlu0 %2802
    %2804 = vrot.lane.b32.xlu0 %v1744, 111
    %v2805 = vpop.permute.xlu0 %2804
    %2806 = vrot.lane.b32.xlu0 %v1745, 111
    %v2807 = vpop.permute.xlu0 %2806
    %2808 = vrot.lane.b32.xlu0 %v1746, 111
    %v2809 = vpop.permute.xlu0 %2808
    %2810 = vrot.lane.b32.xlu0 %v1747, 111
    %v2811 = vpop.permute.xlu0 %2810
    %v2812 = vsel %vm1120, %v2809, %v2811
    %v2813 = vsel %vm1120, %v2807, %v2809
    %v2814 = vsel %vm1120, %v2805, %v2807
    %v2815 = vsel %vm1120, %v2803, %v2805
    %v2816 = vsel %vm1120, %v2801, %v2803
    %v2817 = vsel %vm1120, %v2811, %v2801
    %2818 = vset.pattern.permute.xlu0 48
    %2819 = vperm.xlu0 %2818, %v1748
    %v2820 = vpop.permute.xlu0 %2819
    %v2822 = vlaneseq
    %v2823 = vshrl.u32 %v2822, 7
    %v2824 = vsub.s32 0, %v2823
    %v2825 = vrot.slane %v2816, %v2824
    %v2826 = vlaneseq
    %v2827 = vshrl.u32 %v2826, 7
    %v2828 = vsub.s32 0, %v2827
    %v2829 = vrot.slane %v2815, %v2828
    %v2830 = vlaneseq
    %v2831 = vshrl.u32 %v2830, 7
    %v2832 = vsub.s32 0, %v2831
    %v2833 = vrot.slane %v2814, %v2832
    %v2834 = vlaneseq
    %v2835 = vshrl.u32 %v2834, 7
    %v2836 = vsub.s32 0, %v2835
    %v2837 = vrot.slane %v2813, %v2836
    %v2838 = vlaneseq
    %v2839 = vshrl.u32 %v2838, 7
    %v2840 = vsub.s32 0, %v2839
    %v2841 = vrot.slane %v2812, %v2840
    %v2842 = vlaneseq
    %v2843 = vshrl.u32 %v2842, 7
    %v2844 = vsub.s32 0, %v2843
    %v2845 = vrot.slane %v2817, %v2844
    %v2846 = vmul.f32 %v2820, %v2825
    %v2847 = vmul.f32 %v2820, %v2829
    %v2848 = vmul.f32 %v2820, %v2833
    %v2849 = vmul.f32 %v2820, %v2837
    %v2850 = vmul.f32 %v2820, %v2841
    %v2851 = vmul.f32 %v2820, %v2845
    %v2852 = vadd.f32 %v2794, %v2846
    %v2853 = vadd.f32 %v2795, %v2847
    %v2854 = vadd.f32 %v2796, %v2848
    %v2855 = vadd.f32 %v2797, %v2849
    %v2856 = vadd.f32 %v2798, %v2850
    %v2857 = vadd.f32 %v2799, %v2851
    %2858 = vset.pattern.permute.xlu0 49
    %2859 = vperm.xlu0 %2858, %v1748
    %v2860 = vpop.permute.xlu0 %2859
    %v2862 = vlaneseq
    %v2863 = vshrl.u32 %v2862, 7
    %v2864 = vsub.s32 1, %v2863
    %v2865 = vrot.slane %v2816, %v2864
    %v2866 = vlaneseq
    %v2867 = vshrl.u32 %v2866, 7
    %v2868 = vsub.s32 1, %v2867
    %v2869 = vrot.slane %v2815, %v2868
    %v2870 = vlaneseq
    %v2871 = vshrl.u32 %v2870, 7
    %v2872 = vsub.s32 1, %v2871
    %v2873 = vrot.slane %v2814, %v2872
    %v2874 = vlaneseq
    %v2875 = vshrl.u32 %v2874, 7
    %v2876 = vsub.s32 1, %v2875
    %v2877 = vrot.slane %v2813, %v2876
    %v2878 = vlaneseq
    %v2879 = vshrl.u32 %v2878, 7
    %v2880 = vsub.s32 1, %v2879
    %v2881 = vrot.slane %v2812, %v2880
    %v2882 = vlaneseq
    %v2883 = vshrl.u32 %v2882, 7
    %v2884 = vsub.s32 1, %v2883
    %v2885 = vrot.slane %v2817, %v2884
    %v2886 = vmul.f32 %v2860, %v2865
    %v2887 = vmul.f32 %v2860, %v2869
    %v2888 = vmul.f32 %v2860, %v2873
    %v2889 = vmul.f32 %v2860, %v2877
    %v2890 = vmul.f32 %v2860, %v2881
    %v2891 = vmul.f32 %v2860, %v2885
    %v2892 = vadd.f32 %v2852, %v2886
    %v2893 = vadd.f32 %v2853, %v2887
    %v2894 = vadd.f32 %v2854, %v2888
    %v2895 = vadd.f32 %v2855, %v2889
    %v2896 = vadd.f32 %v2856, %v2890
    %v2897 = vadd.f32 %v2857, %v2891
    %2898 = vset.pattern.permute.xlu0 50
    %2899 = vperm.xlu0 %2898, %v1748
    %v2900 = vpop.permute.xlu0 %2899
    %v2902 = vlaneseq
    %v2903 = vshrl.u32 %v2902, 7
    %v2904 = vsub.s32 2, %v2903
    %v2905 = vrot.slane %v2816, %v2904
    %v2906 = vlaneseq
    %v2907 = vshrl.u32 %v2906, 7
    %v2908 = vsub.s32 2, %v2907
    %v2909 = vrot.slane %v2815, %v2908
    %v2910 = vlaneseq
    %v2911 = vshrl.u32 %v2910, 7
    %v2912 = vsub.s32 2, %v2911
    %v2913 = vrot.slane %v2814, %v2912
    %v2914 = vlaneseq
    %v2915 = vshrl.u32 %v2914, 7
    %v2916 = vsub.s32 2, %v2915
    %v2917 = vrot.slane %v2813, %v2916
    %v2918 = vlaneseq
    %v2919 = vshrl.u32 %v2918, 7
    %v2920 = vsub.s32 2, %v2919
    %v2921 = vrot.slane %v2812, %v2920
    %v2922 = vlaneseq
    %v2923 = vshrl.u32 %v2922, 7
    %v2924 = vsub.s32 2, %v2923
    %v2925 = vrot.slane %v2817, %v2924
    %v2926 = vmul.f32 %v2900, %v2905
    %v2927 = vmul.f32 %v2900, %v2909
    %v2928 = vmul.f32 %v2900, %v2913
    %v2929 = vmul.f32 %v2900, %v2917
    %v2930 = vmul.f32 %v2900, %v2921
    %v2931 = vmul.f32 %v2900, %v2925
    %v2932 = vadd.f32 %v2892, %v2926
    %v2933 = vadd.f32 %v2893, %v2927
    %v2934 = vadd.f32 %v2894, %v2928
    %v2935 = vadd.f32 %v2895, %v2929
    %v2936 = vadd.f32 %v2896, %v2930
    %v2937 = vadd.f32 %v2897, %v2931
    %2938 = vset.pattern.permute.xlu0 51
    %2939 = vperm.xlu0 %2938, %v1748
    %v2940 = vpop.permute.xlu0 %2939
    %v2942 = vlaneseq
    %v2943 = vshrl.u32 %v2942, 7
    %v2944 = vsub.s32 3, %v2943
    %v2945 = vrot.slane %v2816, %v2944
    %v2946 = vlaneseq
    %v2947 = vshrl.u32 %v2946, 7
    %v2948 = vsub.s32 3, %v2947
    %v2949 = vrot.slane %v2815, %v2948
    %v2950 = vlaneseq
    %v2951 = vshrl.u32 %v2950, 7
    %v2952 = vsub.s32 3, %v2951
    %v2953 = vrot.slane %v2814, %v2952
    %v2954 = vlaneseq
    %v2955 = vshrl.u32 %v2954, 7
    %v2956 = vsub.s32 3, %v2955
    %v2957 = vrot.slane %v2813, %v2956
    %v2958 = vlaneseq
    %v2959 = vshrl.u32 %v2958, 7
    %v2960 = vsub.s32 3, %v2959
    %v2961 = vrot.slane %v2812, %v2960
    %v2962 = vlaneseq
    %v2963 = vshrl.u32 %v2962, 7
    %v2964 = vsub.s32 3, %v2963
    %v2965 = vrot.slane %v2817, %v2964
    %v2966 = vmul.f32 %v2940, %v2945
    %v2967 = vmul.f32 %v2940, %v2949
    %v2968 = vmul.f32 %v2940, %v2953
    %v2969 = vmul.f32 %v2940, %v2957
    %v2970 = vmul.f32 %v2940, %v2961
    %v2971 = vmul.f32 %v2940, %v2965
    %v2972 = vadd.f32 %v2932, %v2966
    %v2973 = vadd.f32 %v2933, %v2967
    %v2974 = vadd.f32 %v2934, %v2968
    %v2975 = vadd.f32 %v2935, %v2969
    %v2976 = vadd.f32 %v2936, %v2970
    %v2977 = vadd.f32 %v2937, %v2971
    %2978 = vrot.lane.b32.xlu0 %v1742, 110
    %v2979 = vpop.permute.xlu0 %2978
    %2980 = vrot.lane.b32.xlu0 %v1743, 110
    %v2981 = vpop.permute.xlu0 %2980
    %2982 = vrot.lane.b32.xlu0 %v1744, 110
    %v2983 = vpop.permute.xlu0 %2982
    %2984 = vrot.lane.b32.xlu0 %v1745, 110
    %v2985 = vpop.permute.xlu0 %2984
    %2986 = vrot.lane.b32.xlu0 %v1746, 110
    %v2987 = vpop.permute.xlu0 %2986
    %2988 = vrot.lane.b32.xlu0 %v1747, 110
    %v2989 = vpop.permute.xlu0 %2988
    %v2990 = vsel %vm1299, %v2987, %v2989
    %v2991 = vsel %vm1299, %v2985, %v2987
    %v2992 = vsel %vm1299, %v2983, %v2985
    %v2993 = vsel %vm1299, %v2981, %v2983
    %v2994 = vsel %vm1299, %v2979, %v2981
    %v2995 = vsel %vm1299, %v2989, %v2979
    %2996 = vset.pattern.permute.xlu0 56
    %2997 = vperm.xlu0 %2996, %v1748
    %v2998 = vpop.permute.xlu0 %2997
    %v3000 = vlaneseq
    %v3001 = vshrl.u32 %v3000, 7
    %v3002 = vsub.s32 0, %v3001
    %v3003 = vrot.slane %v2994, %v3002
    %v3004 = vlaneseq
    %v3005 = vshrl.u32 %v3004, 7
    %v3006 = vsub.s32 0, %v3005
    %v3007 = vrot.slane %v2993, %v3006
    %v3008 = vlaneseq
    %v3009 = vshrl.u32 %v3008, 7
    %v3010 = vsub.s32 0, %v3009
    %v3011 = vrot.slane %v2992, %v3010
    %v3012 = vlaneseq
    %v3013 = vshrl.u32 %v3012, 7
    %v3014 = vsub.s32 0, %v3013
    %v3015 = vrot.slane %v2991, %v3014
    %v3016 = vlaneseq
    %v3017 = vshrl.u32 %v3016, 7
    %v3018 = vsub.s32 0, %v3017
    %v3019 = vrot.slane %v2990, %v3018
    %v3020 = vlaneseq
    %v3021 = vshrl.u32 %v3020, 7
    %v3022 = vsub.s32 0, %v3021
    %v3023 = vrot.slane %v2995, %v3022
    %v3024 = vmul.f32 %v2998, %v3003
    %v3025 = vmul.f32 %v2998, %v3007
    %v3026 = vmul.f32 %v2998, %v3011
    %v3027 = vmul.f32 %v2998, %v3015
    %v3028 = vmul.f32 %v2998, %v3019
    %v3029 = vmul.f32 %v2998, %v3023
    %v3030 = vadd.f32 %v2972, %v3024
    %v3031 = vadd.f32 %v2973, %v3025
    %v3032 = vadd.f32 %v2974, %v3026
    %v3033 = vadd.f32 %v2975, %v3027
    %v3034 = vadd.f32 %v2976, %v3028
    %v3035 = vadd.f32 %v2977, %v3029
    %3036 = vset.pattern.permute.xlu0 57
    %3037 = vperm.xlu0 %3036, %v1748
    %v3038 = vpop.permute.xlu0 %3037
    %v3040 = vlaneseq
    %v3041 = vshrl.u32 %v3040, 7
    %v3042 = vsub.s32 1, %v3041
    %v3043 = vrot.slane %v2994, %v3042
    %v3044 = vlaneseq
    %v3045 = vshrl.u32 %v3044, 7
    %v3046 = vsub.s32 1, %v3045
    %v3047 = vrot.slane %v2993, %v3046
    %v3048 = vlaneseq
    %v3049 = vshrl.u32 %v3048, 7
    %v3050 = vsub.s32 1, %v3049
    %v3051 = vrot.slane %v2992, %v3050
    %v3052 = vlaneseq
    %v3053 = vshrl.u32 %v3052, 7
    %v3054 = vsub.s32 1, %v3053
    %v3055 = vrot.slane %v2991, %v3054
    %v3056 = vlaneseq
    %v3057 = vshrl.u32 %v3056, 7
    %v3058 = vsub.s32 1, %v3057
    %v3059 = vrot.slane %v2990, %v3058
    %v3060 = vlaneseq
    %v3061 = vshrl.u32 %v3060, 7
    %v3062 = vsub.s32 1, %v3061
    %v3063 = vrot.slane %v2995, %v3062
    %v3064 = vmul.f32 %v3038, %v3043
    %v3065 = vmul.f32 %v3038, %v3047
    %v3066 = vmul.f32 %v3038, %v3051
    %v3067 = vmul.f32 %v3038, %v3055
    %v3068 = vmul.f32 %v3038, %v3059
    %v3069 = vmul.f32 %v3038, %v3063
    %v3070 = vadd.f32 %v3030, %v3064
    %v3071 = vadd.f32 %v3031, %v3065
    %v3072 = vadd.f32 %v3032, %v3066
    %v3073 = vadd.f32 %v3033, %v3067
    %v3074 = vadd.f32 %v3034, %v3068
    %v3075 = vadd.f32 %v3035, %v3069
    %3076 = vset.pattern.permute.xlu0 58
    %3077 = vperm.xlu0 %3076, %v1748
    %v3078 = vpop.permute.xlu0 %3077
    %v3080 = vlaneseq
    %v3081 = vshrl.u32 %v3080, 7
    %v3082 = vsub.s32 2, %v3081
    %v3083 = vrot.slane %v2994, %v3082
    %v3084 = vlaneseq
    %v3085 = vshrl.u32 %v3084, 7
    %v3086 = vsub.s32 2, %v3085
    %v3087 = vrot.slane %v2993, %v3086
    %v3088 = vlaneseq
    %v3089 = vshrl.u32 %v3088, 7
    %v3090 = vsub.s32 2, %v3089
    %v3091 = vrot.slane %v2992, %v3090
    %v3092 = vlaneseq
    %v3093 = vshrl.u32 %v3092, 7
    %v3094 = vsub.s32 2, %v3093
    %v3095 = vrot.slane %v2991, %v3094
    %v3096 = vlaneseq
    %v3097 = vshrl.u32 %v3096, 7
    %v3098 = vsub.s32 2, %v3097
    %v3099 = vrot.slane %v2990, %v3098
    %v3100 = vlaneseq
    %v3101 = vshrl.u32 %v3100, 7
    %v3102 = vsub.s32 2, %v3101
    %v3103 = vrot.slane %v2995, %v3102
    %v3104 = vmul.f32 %v3078, %v3083
    %v3105 = vmul.f32 %v3078, %v3087
    %v3106 = vmul.f32 %v3078, %v3091
    %v3107 = vmul.f32 %v3078, %v3095
    %v3108 = vmul.f32 %v3078, %v3099
    %v3109 = vmul.f32 %v3078, %v3103
    %v3110 = vadd.f32 %v3070, %v3104
    %v3111 = vadd.f32 %v3071, %v3105
    %v3112 = vadd.f32 %v3072, %v3106
    %v3113 = vadd.f32 %v3073, %v3107
    %v3114 = vadd.f32 %v3074, %v3108
    %v3115 = vadd.f32 %v3075, %v3109
    %3116 = vset.pattern.permute.xlu0 59
    %3117 = vperm.xlu0 %3116, %v1748
    %v3118 = vpop.permute.xlu0 %3117
    %v3120 = vlaneseq
    %v3121 = vshrl.u32 %v3120, 7
    %v3122 = vsub.s32 3, %v3121
    %v3123 = vrot.slane %v2994, %v3122
    %v3124 = vlaneseq
    %v3125 = vshrl.u32 %v3124, 7
    %v3126 = vsub.s32 3, %v3125
    %v3127 = vrot.slane %v2993, %v3126
    %v3128 = vlaneseq
    %v3129 = vshrl.u32 %v3128, 7
    %v3130 = vsub.s32 3, %v3129
    %v3131 = vrot.slane %v2992, %v3130
    %v3132 = vlaneseq
    %v3133 = vshrl.u32 %v3132, 7
    %v3134 = vsub.s32 3, %v3133
    %v3135 = vrot.slane %v2991, %v3134
    %v3136 = vlaneseq
    %v3137 = vshrl.u32 %v3136, 7
    %v3138 = vsub.s32 3, %v3137
    %v3139 = vrot.slane %v2990, %v3138
    %v3140 = vlaneseq
    %v3141 = vshrl.u32 %v3140, 7
    %v3142 = vsub.s32 3, %v3141
    %v3143 = vrot.slane %v2995, %v3142
    %v3144 = vmul.f32 %v3118, %v3123
    %v3145 = vmul.f32 %v3118, %v3127
    %v3146 = vmul.f32 %v3118, %v3131
    %v3147 = vmul.f32 %v3118, %v3135
    %v3148 = vmul.f32 %v3118, %v3139
    %v3149 = vmul.f32 %v3118, %v3143
    %v3150 = vadd.f32 %v3110, %v3144
    %v3151 = vadd.f32 %v3111, %v3145
    %v3152 = vadd.f32 %v3112, %v3146
    %v3153 = vadd.f32 %v3113, %v3147
    %v3154 = vadd.f32 %v3114, %v3148
    %v3155 = vadd.f32 %v3115, %v3149
    %3156 = vrot.lane.b32.xlu0 %v1742, 109
    %v3157 = vpop.permute.xlu0 %3156
    %3158 = vrot.lane.b32.xlu0 %v1743, 109
    %v3159 = vpop.permute.xlu0 %3158
    %3160 = vrot.lane.b32.xlu0 %v1744, 109
    %v3161 = vpop.permute.xlu0 %3160
    %3162 = vrot.lane.b32.xlu0 %v1745, 109
    %v3163 = vpop.permute.xlu0 %3162
    %3164 = vrot.lane.b32.xlu0 %v1746, 109
    %v3165 = vpop.permute.xlu0 %3164
    %3166 = vrot.lane.b32.xlu0 %v1747, 109
    %v3167 = vpop.permute.xlu0 %3166
    %v3168 = vsel %vm1478, %v3165, %v3167
    %v3169 = vsel %vm1478, %v3163, %v3165
    %v3170 = vsel %vm1478, %v3161, %v3163
    %v3171 = vsel %vm1478, %v3159, %v3161
    %v3172 = vsel %vm1478, %v3157, %v3159
    %v3173 = vsel %vm1478, %v3167, %v3157
    %3174 = vset.pattern.permute.xlu0 64
    %3175 = vperm.xlu0 %3174, %v1748
    %v3176 = vpop.permute.xlu0 %3175
    %v3178 = vlaneseq
    %v3179 = vshrl.u32 %v3178, 7
    %v3180 = vsub.s32 0, %v3179
    %v3181 = vrot.slane %v3172, %v3180
    %v3182 = vlaneseq
    %v3183 = vshrl.u32 %v3182, 7
    %v3184 = vsub.s32 0, %v3183
    %v3185 = vrot.slane %v3171, %v3184
    %v3186 = vlaneseq
    %v3187 = vshrl.u32 %v3186, 7
    %v3188 = vsub.s32 0, %v3187
    %v3189 = vrot.slane %v3170, %v3188
    %v3190 = vlaneseq
    %v3191 = vshrl.u32 %v3190, 7
    %v3192 = vsub.s32 0, %v3191
    %v3193 = vrot.slane %v3169, %v3192
    %v3194 = vlaneseq
    %v3195 = vshrl.u32 %v3194, 7
    %v3196 = vsub.s32 0, %v3195
    %v3197 = vrot.slane %v3168, %v3196
    %v3198 = vlaneseq
    %v3199 = vshrl.u32 %v3198, 7
    %v3200 = vsub.s32 0, %v3199
    %v3201 = vrot.slane %v3173, %v3200
    %v3202 = vmul.f32 %v3176, %v3181
    %v3203 = vmul.f32 %v3176, %v3185
    %v3204 = vmul.f32 %v3176, %v3189
    %v3205 = vmul.f32 %v3176, %v3193
    %v3206 = vmul.f32 %v3176, %v3197
    %v3207 = vmul.f32 %v3176, %v3201
    %v3208 = vadd.f32 %v3150, %v3202
    %v3209 = vadd.f32 %v3151, %v3203
    %v3210 = vadd.f32 %v3152, %v3204
    %v3211 = vadd.f32 %v3153, %v3205
    %v3212 = vadd.f32 %v3154, %v3206
    %v3213 = vadd.f32 %v3155, %v3207
    %3214 = vset.pattern.permute.xlu0 65
    %3215 = vperm.xlu0 %3214, %v1748
    %v3216 = vpop.permute.xlu0 %3215
    %v3218 = vlaneseq
    %v3219 = vshrl.u32 %v3218, 7
    %v3220 = vsub.s32 1, %v3219
    %v3221 = vrot.slane %v3172, %v3220
    %v3222 = vlaneseq
    %v3223 = vshrl.u32 %v3222, 7
    %v3224 = vsub.s32 1, %v3223
    %v3225 = vrot.slane %v3171, %v3224
    %v3226 = vlaneseq
    %v3227 = vshrl.u32 %v3226, 7
    %v3228 = vsub.s32 1, %v3227
    %v3229 = vrot.slane %v3170, %v3228
    %v3230 = vlaneseq
    %v3231 = vshrl.u32 %v3230, 7
    %v3232 = vsub.s32 1, %v3231
    %v3233 = vrot.slane %v3169, %v3232
    %v3234 = vlaneseq
    %v3235 = vshrl.u32 %v3234, 7
    %v3236 = vsub.s32 1, %v3235
    %v3237 = vrot.slane %v3168, %v3236
    %v3238 = vlaneseq
    %v3239 = vshrl.u32 %v3238, 7
    %v3240 = vsub.s32 1, %v3239
    %v3241 = vrot.slane %v3173, %v3240
    %v3242 = vmul.f32 %v3216, %v3221
    %v3243 = vmul.f32 %v3216, %v3225
    %v3244 = vmul.f32 %v3216, %v3229
    %v3245 = vmul.f32 %v3216, %v3233
    %v3246 = vmul.f32 %v3216, %v3237
    %v3247 = vmul.f32 %v3216, %v3241
    %v3248 = vadd.f32 %v3208, %v3242
    %v3249 = vadd.f32 %v3209, %v3243
    %v3250 = vadd.f32 %v3210, %v3244
    %v3251 = vadd.f32 %v3211, %v3245
    %v3252 = vadd.f32 %v3212, %v3246
    %v3253 = vadd.f32 %v3213, %v3247
    %3254 = vset.pattern.permute.xlu0 66
    %3255 = vperm.xlu0 %3254, %v1748
    %v3256 = vpop.permute.xlu0 %3255
    %v3258 = vlaneseq
    %v3259 = vshrl.u32 %v3258, 7
    %v3260 = vsub.s32 2, %v3259
    %v3261 = vrot.slane %v3172, %v3260
    %v3262 = vlaneseq
    %v3263 = vshrl.u32 %v3262, 7
    %v3264 = vsub.s32 2, %v3263
    %v3265 = vrot.slane %v3171, %v3264
    %v3266 = vlaneseq
    %v3267 = vshrl.u32 %v3266, 7
    %v3268 = vsub.s32 2, %v3267
    %v3269 = vrot.slane %v3170, %v3268
    %v3270 = vlaneseq
    %v3271 = vshrl.u32 %v3270, 7
    %v3272 = vsub.s32 2, %v3271
    %v3273 = vrot.slane %v3169, %v3272
    %v3274 = vlaneseq
    %v3275 = vshrl.u32 %v3274, 7
    %v3276 = vsub.s32 2, %v3275
    %v3277 = vrot.slane %v3168, %v3276
    %v3278 = vlaneseq
    %v3279 = vshrl.u32 %v3278, 7
    %v3280 = vsub.s32 2, %v3279
    %v3281 = vrot.slane %v3173, %v3280
    %v3282 = vmul.f32 %v3256, %v3261
    %v3283 = vmul.f32 %v3256, %v3265
    %v3284 = vmul.f32 %v3256, %v3269
    %v3285 = vmul.f32 %v3256, %v3273
    %v3286 = vmul.f32 %v3256, %v3277
    %v3287 = vmul.f32 %v3256, %v3281
    %v3288 = vadd.f32 %v3248, %v3282
    %v3289 = vadd.f32 %v3249, %v3283
    %v3290 = vadd.f32 %v3250, %v3284
    %v3291 = vadd.f32 %v3251, %v3285
    %v3292 = vadd.f32 %v3252, %v3286
    %v3293 = vadd.f32 %v3253, %v3287
    %3294 = vset.pattern.permute.xlu0 67
    %3295 = vperm.xlu0 %3294, %v1748
    %v3296 = vpop.permute.xlu0 %3295
    %v3298 = vlaneseq
    %v3299 = vshrl.u32 %v3298, 7
    %v3300 = vsub.s32 3, %v3299
    %v3301 = vrot.slane %v3172, %v3300
    %v3302 = vlaneseq
    %v3303 = vshrl.u32 %v3302, 7
    %v3304 = vsub.s32 3, %v3303
    %v3305 = vrot.slane %v3171, %v3304
    %v3306 = vlaneseq
    %v3307 = vshrl.u32 %v3306, 7
    %v3308 = vsub.s32 3, %v3307
    %v3309 = vrot.slane %v3170, %v3308
    %v3310 = vlaneseq
    %v3311 = vshrl.u32 %v3310, 7
    %v3312 = vsub.s32 3, %v3311
    %v3313 = vrot.slane %v3169, %v3312
    %v3314 = vlaneseq
    %v3315 = vshrl.u32 %v3314, 7
    %v3316 = vsub.s32 3, %v3315
    %v3317 = vrot.slane %v3168, %v3316
    %v3318 = vlaneseq
    %v3319 = vshrl.u32 %v3318, 7
    %v3320 = vsub.s32 3, %v3319
    %v3321 = vrot.slane %v3173, %v3320
    %v3322 = vmul.f32 %v3296, %v3301
    %v3323 = vmul.f32 %v3296, %v3305
    %v3324 = vmul.f32 %v3296, %v3309
    %v3325 = vmul.f32 %v3296, %v3313
    %v3326 = vmul.f32 %v3296, %v3317
    %v3327 = vmul.f32 %v3296, %v3321
    %v3328 = vadd.f32 %v3288, %v3322
    %v3329 = vadd.f32 %v3289, %v3323
    %v3330 = vadd.f32 %v3290, %v3324
    %v3331 = vadd.f32 %v3291, %v3325
    %v3332 = vadd.f32 %v3292, %v3326
    %v3333 = vadd.f32 %v3293, %v3327
    %v3334 = vld [vmem:[%s6] sm:$0xff]
    %v3335 = vld [vmem:[%s7] sm:$0xff]
    %v3336 = vmul.f32 %v3328, %v1651
    %v3337 = vmul.f32 %v3329, %v1655
    %v3338 = vmul.f32 %v3330, %v1659
    %v3339 = vmul.f32 %v3331, %v1663
    %v3340 = vmul.f32 %v3332, %v1667
    %v3341 = vmul.f32 %v3333, %v1671
    %v3342 = vmul.f32 %v3336, %v3328
    %v3343 = vmul.f32 %v3337, %v3329
    %v3344 = vmul.f32 %v3338, %v3330
    %v3345 = vmul.f32 %v3339, %v3331
    %v3346 = vmul.f32 %v3340, %v3332
    %v3347 = vmul.f32 %v3341, %v3333
    %v3348 = vadd.f32 %v3336, %v3337
    %v3349 = vadd.f32 %v3348, %v3338
    %v3350 = vadd.f32 %v3349, %v3339
    %v3351 = vadd.f32 %v3350, %v3340
    %v3352 = vadd.f32 %v3351, %v3341
    %3353 = vadd.xlane.f32.xlu0 %v3352
    %v3354 = vpop.xlane.xlu0 %3353
    %v3355 = vadd.f32 %v3342, %v3343
    %v3356 = vadd.f32 %v3355, %v3344
    %v3357 = vadd.f32 %v3356, %v3345
    %v3358 = vadd.f32 %v3357, %v3346
    %v3359 = vadd.f32 %v3358, %v3347
    %3360 = vadd.xlane.f32.xlu0 %v3359
    %v3361 = vpop.xlane.xlu0 %3360
    %v3362 = vmul.f32 %v3354, 0.001953125
    %v3363 = vmul.f32 %v3361, 0.001953125
    %v3364 = vmul.f32 %v3362, %v3362
    %v3365 = vsub.f32 %v3363, %v3364
    %v3366 = vmax.f32 %v3365, 0.0
    %v3367 = vadd.f32 %v3366, 1e-05
    %v3368 = vrsqrt.pop %v3367
    %v3369 = vmul.f32 %v3334, %v3368
    %v3370 = vmul.f32 %v3362, %v3369
    %v3371 = vsub.f32 %v3335, %v3370
    %3373 = vset.pattern.permute.xlu0 0
    %3374 = vperm.xlu0 %3373, %v3369
    %v3375 = vpop.permute.xlu0 %3374
    %v3377 = vmul.f32 %v3328, %v3375
    %v3378 = vmul.f32 %v3329, %v3375
    %v3379 = vmul.f32 %v3330, %v3375
    %v3380 = vmul.f32 %v3331, %v3375
    %v3381 = vmul.f32 %v3332, %v3375
    %v3382 = vmul.f32 %v3333, %v3375
    %3384 = vset.pattern.permute.xlu0 0
    %3385 = vperm.xlu0 %3384, %v3371
    %v3386 = vpop.permute.xlu0 %3385
    %v3388 = vadd.f32 %v3377, %v3386
    %v3389 = vadd.f32 %v3378, %v3386
    %v3390 = vadd.f32 %v3379, %v3386
    %v3391 = vadd.f32 %v3380, %v3386
    %v3392 = vadd.f32 %v3381, %v3386
    %v3393 = vadd.f32 %v3382, %v3386
    %v3394 = vadd.f32 %v3388, %v43
    %v3395 = vadd.f32 %v3389, %v44
    %v3396 = vadd.f32 %v3390, %v45
    %v3397 = vadd.f32 %v3391, %v46
    %v3398 = vadd.f32 %v3392, %v47
    %v3399 = vadd.f32 %v3393, %v48
    %v3400 = vmax.f32 %v3394, 0.0
    %v3401 = vmax.f32 %v3395, 0.0
    %v3402 = vmax.f32 %v3396, 0.0
    %v3403 = vmax.f32 %v3397, 0.0
    %v3404 = vmax.f32 %v3398, 0.0
    %v3405 = vmax.f32 %v3399, 0.0
    %3406 = vst [vmem:[#allocation5] sm:$0xff] %v3400
    %3407 = vst [vmem:[#allocation5 + $0x8] sm:$0xff] %v3401
    %3408 = vst [vmem:[#allocation5 + $0x10] sm:$0xff] %v3402
    %3409 = vst [vmem:[#allocation5 + $0x18] sm:$0xff] %v3403
    %3410 = vst [vmem:[#allocation5 + $0x20] sm:$0xff] %v3404
    %3411 = vst [vmem:[#allocation5 + $0x28] sm:$0xff] %v3405
    // Predicated region
    $region38: #{tpu_custom_call.1} parent=1 // pred_check
      _
    $region39: #{tpu_custom_call.1} parent=1 // pred_check_branch
      %3413 = sbr.rel (0) target = $region41
    $region40: #{tpu_custom_call.1} parent=1 // pred_region
      %s3415 = ssub.s32 768, 768
      %3416 = vsyncadd [#allocation4], %s3415
      %s3418 = sshll.u32 [#allocation5], 4
      %s3419 = int_to_ptr.vmem [resolvable:$true] %s3418
      %3421 = dma.vmem_to_hbm [thread:$0]  %s3419, 768, %s8, [#allocation4]
    $region41: #{tpu_custom_call.1} parent=1 // pred_fallthru
      _
    // Predicated region
    $region42: #{tpu_custom_call.1} parent=1 // pred_check
      _
    $region43: #{tpu_custom_call.1} parent=1 // pred_check_branch
      %3423 = sbr.rel (0) target = $region45
    $region44: #{tpu_custom_call.1} parent=1 // pred_region
      %3424 = dma.done [#allocation4], 768
    $region45: #{tpu_custom_call.1} parent=1 // pred_fallthru
      _
    %3425 = vsyncpa [#allocation3], 1
    %3426 = vsyncpa [#allocation4], 1

</llo_original>
